<compile_context>
chip_gen: v7x
topology: tpu7x:2x2x1
jax: 0.10.0
libtpu: 0.0.40
codegen_flags: <defaults>
</compile_context>

<pallas_src>
import functools

import jax
import jax.numpy as jnp
from jax.experimental import pallas as pl
from jax.experimental.pallas import tpu as pltpu

EPS = 1e-5
LANE = 128
TAPS3x3 = tuple((kh, kw) for kh in range(3) for kw in range(3))


def _round_up(x, m):
    return (x + m - 1) // m * m


def _pad_last(a, mult):
    pad = (-a.shape[-1]) % mult
    if pad:
        a = jnp.pad(a, [(0, 0)] * (a.ndim - 1) + [(0, pad)])
    return a


def _vmem_limit_bytes():
    """Derive the scoped-VMEM limit from the actual chip (v7x: 64 MiB/TC)."""
    try:
        cap = int(pltpu.get_tpu_info().vmem_capacity_bytes)
    except Exception:                      # fall back to the smallest current gen
        cap = 64 * 1024 * 1024
    return max(32 * 1024 * 1024, int(cap * 0.7))


# ----------------------------- Pallas kernel ------------------------------- #

def _fused_conv_bn_kernel(*refs, tap_phase, tap_off, ho, wo, relu,
                          chunk_rows, res_mode, sc_off):
    """out = [relu]( sum_t x_tap[t] @ w[t] + bias [+ shortcut] ).

    refs (in order):
      x_ref   : (1, P, Hph, Wph, Cin_p)  bf16  phase-decomposed padded activations
      w_ref   : (T, Cin_p, tn)           bf16  BN-scale-folded weights (tap-major)
      b_ref   : (1, tn)                  f32   folded BN bias
      res_mode == "conv": xsc_ref (1,1,Hx,Wx,Cinx_p) bf16, wsc_ref (1,Cinx_p,tn)
                          bf16, bsc_ref (1,tn) f32   (fused 1x1-conv shortcut)
      res_mode == "add" : r_ref (1, Ho*Wo, tn) bf16  (identity shortcut)
      o_ref   : (1, Ho*Wo, tn)
      acc_ref : (chunk_rows*wo, tn) f32  VMEM scratch accumulator
    """
    if res_mode == "conv":
        x_ref, w_ref, b_ref, xsc_ref, wsc_ref, bsc_ref, o_ref, acc_ref = refs
    elif res_mode == "add":
        x_ref, w_ref, b_ref, r_ref, o_ref, acc_ref = refs
    else:
        x_ref, w_ref, b_ref, o_ref, acc_ref = refs

    cin = x_ref.shape[-1]
    tn = o_ref.shape[-1]

    # Static chunk loop over output rows: bounds the f32 accumulator to the
    # VMEM scratch instead of an (m x tn) traced value that would spill at
    # real ResNet spatial sizes.
    for row0 in range(0, ho, chunk_rows):
        rc = min(chunk_rows, ho - row0)
        mcs = rc * wo
        m0 = row0 * wo

        acc_ref[0:mcs, :] = jnp.zeros((mcs, tn), jnp.float32)
        for t in range(len(tap_phase)):                 # static unroll (<= 9 taps)
            p = tap_phase[t]
            r0, c0 = tap_off[t]
            xt = x_ref[0, p, r0 + row0:r0 + row0 + rc, c0:c0 + wo, :]
            acc_ref[0:mcs, :] += jnp.dot(xt.reshape(mcs, cin), w_ref[t],
                                         preferred_element_type=jnp.float32)

        y = acc_ref[0:mcs, :] + b_ref[...]
        if res_mode == "conv":
            # 1x1-conv + BN shortcut fused into the epilogue (same output
            # pixels, one extra MXU matmul, no HBM round trip).
            cinx = xsc_ref.shape[-1]
            xs = xsc_ref[0, 0, sc_off[0] + row0:sc_off[0] + row0 + rc,
                         sc_off[1]:sc_off[1] + wo, :]
            y = y + jnp.dot(xs.reshape(mcs, cinx), wsc_ref[0],
                            preferred_element_type=jnp.float32) + bsc_ref[...]
        elif res_mode == "add":
            y = y + r_ref[0, m0:m0 + mcs, :].astype(jnp.float32)
        if relu:
            y = jnp.maximum(y, 0.0)
        o_ref[0, m0:m0 + mcs, :] = y.astype(o_ref.dtype)


def fused_conv_bn(xph, w_taps, bias, *, taps, stride, ho, wo, relu,
                  residual=None, shortcut=None, out_dtype=jnp.bfloat16,
                  chunk_pixels=256):
    """One conv (+ folded-BN affine [+ shortcut/residual] [+ ReLU]) per pallas_call.

    xph      : (N, S*S, Hph, Wph, Cin_p) bf16 phase-decomposed padded input
    w_taps   : (T, Cin_p, Cout_p)        bf16 weights with BN scale folded in
    bias     : (1, Cout_p)               f32
    residual : optional (N, Ho*Wo, Cout_p) bf16, added before ReLU
    shortcut : optional (xph_x, wsc, bsc, phase_sel, (r_off, c_off)) -- a 1x1
               stride-s conv + BN computed in-kernel from one phase of xph_x.
    returns  : (N, Ho*Wo, Cout_p) in out_dtype.
    """
    assert residual is None or shortcut is None
    n, p_total, hph, wph, cin_p = xph.shape
    t, _, cout_p = w_taps.shape
    m = ho * wo
    # TODO(synk): select tn per generation (v5e MXU is 4x128, v6e/v7x 2x256).
    tn = 256 if cout_p % 256 == 0 else 128
    n_ct = cout_p // tn

    tap_phase, tap_off = [], []
    for (kh, kw) in taps:
        p = (kh % stride) * stride + (kw % stride)
        r0, c0 = kh // stride, kw // stride
        assert p < p_total and r0 + ho <= hph and c0 + wo <= wph, (
            "tap window exceeds phase block", (kh, kw), (hph, wph), (ho, wo))
        tap_phase.append(p)
        tap_off.append((r0, c0))
    tap_phase, tap_off = tuple(tap_phase), tuple(tap_off)

    chunk_rows = max(1, min(ho, chunk_pixels // max(wo, 1)))
    tm = chunk_rows * wo

    # grid = (cout tiles, batch): the weight/bias block index only changes on
    # the OUTER axis, so the weight tile stays resident across the inner batch
    # steps (no per-step weight re-DMA).  For very activation-heavy early
    # stages the opposite order can be preferable.
    grid = (n_ct, n)
    in_specs = [
        pl.BlockSpec((1, p_total, hph, wph, cin_p), lambda j, b: (b, 0, 0, 0, 0)),
        pl.BlockSpec((t, cin_p, tn), lambda j, b: (0, 0, j)),
        pl.BlockSpec((1, tn), lambda j, b: (0, j)),
    ]
    # TODO(synk): pipeline_mode=pl.Buffered(1) on the weight/bias specs would
    #             halve their VMEM footprint (index constant along inner axis).
    args = [xph, w_taps, bias]

    itemsize_out = jnp.dtype(out_dtype).itemsize
    flops = 2 * n * m * (t * cin_p) * cout_p
    bytes_accessed = (n * n_ct * p_total * hph * wph * cin_p * 2   # activations
                      + t * cin_p * cout_p * 2                     # weights (once / cout tile)
                      + cout_p * 4                                 # bias
                      + n * m * cout_p * itemsize_out)             # output

    res_mode = None
    sc_off = (0, 0)
    if shortcut is not None:
        res_mode = "conv"
        xsc, wsc, bsc, sc_sel, sc_off = shortcut
        nx, px, hx, wx, cx = xsc.shape
        assert nx == n and sc_sel < px
        assert sc_off[0] + ho <= hx and sc_off[1] + wo <= wx
        in_specs += [
            pl.BlockSpec((1, 1, hx, wx, cx), lambda j, b: (b, sc_sel, 0, 0, 0)),
            pl.BlockSpec((1, cx, tn), lambda j, b: (0, 0, j)),
            pl.BlockSpec((1, tn), lambda j, b: (0, j)),
        ]
        args += [xsc, wsc, bsc]
        flops += 2 * n * m * cx * cout_p
        bytes_accessed += n * n_ct * hx * wx * cx * 2 + cx * cout_p * 2 + cout_p * 4
    elif residual is not None:
        res_mode = "add"
        in_specs.append(pl.BlockSpec((1, m, tn), lambda j, b: (b, 0, j)))
        args.append(residual)
        bytes_accessed += n * m * cout_p * 2

    kernel = functools.partial(
        _fused_conv_bn_kernel, tap_phase=tap_phase, tap_off=tap_off,
        ho=ho, wo=wo, relu=relu, chunk_rows=chunk_rows,
        res_mode=res_mode, sc_off=sc_off)

    return pl.pallas_call(
        kernel,
        out_shape=jax.ShapeDtypeStruct((n, m, cout_p), out_dtype),
        grid=grid,
        in_specs=in_specs,
        out_specs=pl.BlockSpec((1, m, tn), lambda j, b: (b, 0, j)),
        scratch_shapes=[pltpu.VMEM((tm, tn), jnp.float32)],
        compiler_params=pltpu.CompilerParams(
            dimension_semantics=("parallel", "parallel"),
            vmem_limit_bytes=_vmem_limit_bytes()),
        cost_estimate=pl.CostEstimate(
            flops=int(flops), transcendentals=0,
            bytes_accessed=int(bytes_accessed)),
    )(*args)


# ------------------------------ JAX glue ----------------------------------- #

def _make_phases(x_nhwc, pad, stride):
    """(N,H,W,C) -> (N, S*S, Hph, Wph, C): padded input split into its stride
    phases so every conv tap becomes a contiguous slice (no im2col inflation)."""
    n, h, w, c = x_nhwc.shape
    s = stride
    xp = jnp.pad(x_nhwc, ((0, 0), (pad, pad), (pad, pad), (0, 0)))
    hp, wp = h + 2 * pad, w + 2 * pad
    hpp, wpp = _round_up(hp, s), _round_up(wp, s)
    xp = jnp.pad(xp, ((0, 0), (0, hpp - hp), (0, wpp - wp), (0, 0)))
    xp = xp.reshape(n, hpp // s, s, wpp // s, s, c)
    xp = jnp.transpose(xp, (0, 2, 4, 1, 3, 5))
    return xp.reshape(n, s * s, hpp // s, wpp // s, c)


def _fold_bn(gamma, beta, mean, var):
    scale = gamma / jnp.sqrt(var + EPS)
    return scale, beta - mean * scale


def _prep_weight(w_oihw, scale, cin_p, cout_p):
    """(Cout,Cin,Kh,Kw) torch conv weight -> (Kh*Kw, Cin_p, Cout_p) bf16 with the
    per-channel BN scale folded into the output channels."""
    cout, cin, kh, kw = w_oihw.shape
    w = jnp.transpose(w_oihw, (2, 3, 1, 0)).reshape(kh * kw, cin, cout)
    w = w * scale[None, None, :]
    w = jnp.pad(w, ((0, 0), (0, cin_p - cin), (0, cout_p - cout)))
    return w.astype(jnp.bfloat16)


def _prep_bias(bias, cout_p):
    return jnp.pad(bias, (0, cout_p - bias.shape[0])).reshape(1, cout_p).astype(jnp.float32)


def residual_block(x_nchw, params, stride):
    """Pallas ResidualBlock forward (eval-mode BN). Input/output are NCHW f32."""
    x = jnp.transpose(x_nchw, (0, 2, 3, 1))               # -> NHWC
    n, h, w, cin = x.shape
    cout = params["w1"].shape[0]
    cin_p, cout_p = _round_up(cin, LANE), _round_up(cout, LANE)

    ho = (h + 2 - 3) // stride + 1
    wo = (w + 2 - 3) // stride + 1

    x_p = _pad_last(x, LANE).astype(jnp.bfloat16)          # lane-padded bf16 NHWC
    xph = _make_phases(x_p, pad=1, stride=stride)          # shared by conv1 & shortcut

    # --- left branch conv1: 3x3 stride s + BN + ReLU ---
    s1, b1 = _fold_bn(*params["bn1"])
    y1 = fused_conv_bn(
        xph, _prep_weight(params["w1"], s1, cin_p, cout_p), _prep_bias(b1, cout_p),
        taps=TAPS3x3, stride=stride, ho=ho, wo=wo, relu=True,
        out_dtype=jnp.bfloat16)                            # (N, Ho*Wo, Cout_p)

    # TODO(synk): write y1 spatially pre-padded from conv1 to remove this pad pass.
    y1ph = _make_phases(y1.reshape(n, ho, wo, cout_p), pad=1, stride=1)

    # --- conv2 (+BN) fused with shortcut add and final ReLU ---
    s2, b2 = _fold_bn(*params["bn2"])
    w2 = _prep_weight(params["w2"], s2, cout_p, cout_p)
    b2p = _prep_bias(b2, cout_p)

    if stride != 1 or cin != cout:
        # 1x1 stride-s conv + BN shortcut == the (1,1) tap of xph; computed in
        # conv2's epilogue from a single phase block (no separate kernel).
        ssc, bsc = _fold_bn(*params["bnsc"])
        sc = (xph,
              _prep_weight(params["wsc"], ssc, cin_p, cout_p),
              _prep_bias(bsc, cout_p),
              (1 % stride) * stride + (1 % stride),
              (1 // stride, 1 // stride))
        out = fused_conv_bn(y1ph, w2, b2p, taps=TAPS3x3, stride=1, ho=ho, wo=wo,
                            relu=True, shortcut=sc, out_dtype=jnp.float32)
    else:
        res = x_p.reshape(n, h * w, cin_p)                 # identity shortcut
        out = fused_conv_bn(y1ph, w2, b2p, taps=TAPS3x3, stride=1, ho=ho, wo=wo,
                            relu=True, residual=res, out_dtype=jnp.float32)

    # TODO(synk): in a full network keep the channel-padded NHWC bf16 layout
    #             between blocks instead of this per-block slice + transpose.
    out = out.reshape(n, ho, wo, cout_p)[..., :cout]
    return jnp.transpose(out, (0, 3, 1, 2))                # -> NCHW


# ---------------------- deterministic parameter init ----------------------- #

def _bn_params(key, c):
    k1, k2, k3, k4 = jax.random.split(key, 4)
    gamma = jax.random.uniform(k1, (c,), jnp.float32, 0.5, 1.5)
    beta = 0.1 * jax.random.normal(k2, (c,), jnp.float32)
    mean = 0.1 * jax.random.normal(k3, (c,), jnp.float32)
    var = jax.random.uniform(k4, (c,), jnp.float32, 0.5, 1.5)
    return (gamma, beta, mean, var)


def init_params(key, cin, cout, stride):
    ks = jax.random.split(key, 6)

    def conv_w(k, co, ci, kh, kw):
        fan_in = ci * kh * kw
        return jax.random.normal(k, (co, ci, kh, kw), jnp.float32) / jnp.sqrt(fan_in)

    params = {
        "w1": conv_w(ks[0], cout, cin, 3, 3),     # Conv2d(cin, cout, 3, stride, pad=1)
        "bn1": _bn_params(ks[1], cout),
        "w2": conv_w(ks[2], cout, cout, 3, 3),    # Conv2d(cout, cout, 3, 1, pad=1)
        "bn2": _bn_params(ks[3], cout),
    }
    if stride != 1 or cin != cout:
        params["wsc"] = conv_w(ks[4], cout, cin, 1, 1)  # Conv2d(cin, cout, 1, stride)
        params["bnsc"] = _bn_params(ks[5], cout)
    return params


# --------------------------- pure-JAX reference ----------------------------- #

def ref_residual_block(x, params, stride):
    def conv(x_, w_, s_, p_):
        return jax.lax.conv_general_dilated(
            x_, w_, (s_, s_), [(p_, p_), (p_, p_)],
            dimension_numbers=("NCHW", "OIHW", "NCHW"))

    def bn(x_, bnp):
        g, b, m, v = bnp
        inv = (g / jnp.sqrt(v + EPS))[None, :, None, None]
        return (x_ - m[None, :, None, None]) * inv + b[None, :, None, None]

    out = jax.nn.relu(bn(conv(x, params["w1"], stride, 1), params["bn1"]))
    out = bn(conv(out, params["w2"], 1, 1), params["bn2"])
    if "wsc" in params:
        sc = bn(conv(x, params["wsc"], stride, 0), params["bnsc"])
    else:
        sc = x
    return jax.nn.relu(out + sc)


def _check(out, ref):
    err = float(jnp.max(jnp.abs(out - ref)))
    rel = float(jnp.linalg.norm(out - ref) / jnp.linalg.norm(ref))
    # kernel runs the matmuls in bf16 (f32 accumulate) with BN scale folded into
    # bf16 weights; the reference is pure f32, so the check is tolerance-based.
    assert rel < 3e-2 and err < 3e-1, (err, rel)


# --------------------------------- main ------------------------------------ #

if __name__ == "__main__":
    key = jax.random.PRNGKey(0)
    kx1, kp1, kx2, kp2 = jax.random.split(key, 4)

    block = jax.jit(residual_block, static_argnums=(2,))

    # Case 1: downsampling block with conv shortcut (inchannel=4, outchannel=8, stride=2)
    x1 = jax.random.normal(kx1, (2, 4, 16, 16), jnp.float32)  # NCHW
    params1 = init_params(kp1, cin=4, cout=8, stride=2)
    out1 = jax.block_until_ready(block(x1, params1, 2))
    ref1 = ref_residual_block(x1, params1, 2)
    assert out1.shape == (2, 8, 8, 8)
    _check(out1, ref1)

    # Case 2: identity-shortcut block (inchannel=outchannel=4, stride=1)
    x2 = jax.random.normal(kx2, (2, 4, 16, 16), jnp.float32)
    params2 = init_params(kp2, cin=4, cout=4, stride=1)
    out2 = jax.block_until_ready(block(x2, params2, 1))
    ref2 = ref_residual_block(x2, params2, 1)
    assert out2.shape == (2, 4, 16, 16)
    _check(out2, ref2)

    print("KERNEL_OK")
</pallas_src>

<mosaic_0001>
module attributes {stable_mosaic.version = 11 : i64} {
  func.func @_fused_conv_bn_kernel(%arg0: i32, %arg1: i32, %arg2: memref<1x4x9x9x128xbf16, #tpu.memory_space<vmem>>, %arg3: memref<9x128x128xbf16, #tpu.memory_space<vmem>>, %arg4: memref<1x128xf32, #tpu.memory_space<vmem>>, %arg5: memref<1x64x128xbf16, #tpu.memory_space<vmem>>, %arg6: memref<64x128xf32, #tpu.memory_space<vmem>>) attributes {dimension_semantics = [#tpu.dimension_semantics<parallel>, #tpu.dimension_semantics<parallel>], iteration_bounds = array<i64: 1, 2>, scalar_prefetch = 0 : i64, scratch_operands = 1 : i64, tpu.core_type = #tpu.core_type<tc>, window_params = [{transform_indices = @transform_0, window_bounds = array<i64: 1, 4, 9, 9, 128>}, {transform_indices = @transform_1, window_bounds = array<i64: 9, 128, 128>}, {transform_indices = @transform_2, window_bounds = array<i64: 1, 128>}, {transform_indices = @transform_3, window_bounds = array<i64: 1, 64, 128>}]} {
    %cst = arith.constant 0.000000e+00 : f32
    %0 = vector.broadcast %cst : f32 to vector<64x128xf32>
    %c0 = arith.constant 0 : index
    %c0_0 = arith.constant 0 : index
    %1 = vector.load %arg6[%c0, %c0_0] : memref<64x128xf32, #tpu.memory_space<vmem>>, vector<64x128xf32>
    tpu.vector_store %arg6[%c0, %c0_0], %0 {strides = array<i32>} : memref<64x128xf32, #tpu.memory_space<vmem>>, vector<64x128xf32>,
    %c0_1 = arith.constant 0 : index
    %c0_2 = arith.constant 0 : index
    %c0_3 = arith.constant 0 : index
    %c0_4 = arith.constant 0 : index
    %c0_5 = arith.constant 0 : index
    %2 = vector.load %arg2[%c0_1, %c0_2, %c0_3, %c0_4, %c0_5] : memref<1x4x9x9x128xbf16, #tpu.memory_space<vmem>>, vector<1x1x8x8x128xbf16>
    %3 = vector.shape_cast %2 : vector<1x1x8x8x128xbf16> to vector<8x8x128xbf16>
    %c0_6 = arith.constant 0 : index
    %c0_7 = arith.constant 0 : index
    %4 = vector.load %arg6[%c0_6, %c0_7] : memref<64x128xf32, #tpu.memory_space<vmem>>, vector<64x128xf32>
    %5 = vector.shape_cast %3 : vector<8x8x128xbf16> to vector<64x128xbf16>
    %c0_8 = arith.constant 0 : index
    %c0_9 = arith.constant 0 : index
    %c0_10 = arith.constant 0 : index
    %6 = vector.load %arg3[%c0_8, %c0_9, %c0_10] : memref<9x128x128xbf16, #tpu.memory_space<vmem>>, vector<1x128x128xbf16>
    %7 = vector.shape_cast %6 : vector<1x128x128xbf16> to vector<128x128xbf16>
    %cst_11 = arith.constant dense<0.000000e+00> : vector<64x128xf32>
    %8 = tpu.matmul %5, %7, %cst_11 {dimension_numbers = #tpu.dot_dimension_numbers<[1], [0], [0], [1], [0, 0, 1, 1], [], []>} : vector<64x128xbf16>, vector<128x128xbf16>, vector<64x128xf32> -> vector<64x128xf32>
    %9 = arith.addf %4, %8 : vector<64x128xf32>
    %c0_12 = arith.constant 0 : index
    %c0_13 = arith.constant 0 : index
    %10 = vector.load %arg6[%c0_12, %c0_13] : memref<64x128xf32, #tpu.memory_space<vmem>>, vector<64x128xf32>
    tpu.vector_store %arg6[%c0_12, %c0_13], %9 {strides = array<i32>} : memref<64x128xf32, #tpu.memory_space<vmem>>, vector<64x128xf32>,
    %c0_14 = arith.constant 0 : index
    %c1 = arith.constant 1 : index
    %c0_15 = arith.constant 0 : index
    %c0_16 = arith.constant 0 : index
    %c0_17 = arith.constant 0 : index
    %11 = vector.load %arg2[%c0_14, %c1, %c0_15, %c0_16, %c0_17] : memref<1x4x9x9x128xbf16, #tpu.memory_space<vmem>>, vector<1x1x8x8x128xbf16>
    %12 = vector.shape_cast %11 : vector<1x1x8x8x128xbf16> to vector<8x8x128xbf16>
    %c0_18 = arith.constant 0 : index
    %c0_19 = arith.constant 0 : index
    %13 = vector.load %arg6[%c0_18, %c0_19] : memref<64x128xf32, #tpu.memory_space<vmem>>, vector<64x128xf32>
    %14 = vector.shape_cast %12 : vector<8x8x128xbf16> to vector<64x128xbf16>
    %c1_20 = arith.constant 1 : index
    %c0_21 = arith.constant 0 : index
    %c0_22 = arith.constant 0 : index
    %15 = vector.load %arg3[%c1_20, %c0_21, %c0_22] : memref<9x128x128xbf16, #tpu.memory_space<vmem>>, vector<1x128x128xbf16>
    %16 = vector.shape_cast %15 : vector<1x128x128xbf16> to vector<128x128xbf16>
    %cst_23 = arith.constant dense<0.000000e+00> : vector<64x128xf32>
    %17 = tpu.matmul %14, %16, %cst_23 {dimension_numbers = #tpu.dot_dimension_numbers<[1], [0], [0], [1], [0, 0, 1, 1], [], []>} : vector<64x128xbf16>, vector<128x128xbf16>, vector<64x128xf32> -> vector<64x128xf32>
    %18 = arith.addf %13, %17 : vector<64x128xf32>
    %c0_24 = arith.constant 0 : index
    %c0_25 = arith.constant 0 : index
    %19 = vector.load %arg6[%c0_24, %c0_25] : memref<64x128xf32, #tpu.memory_space<vmem>>, vector<64x128xf32>
    tpu.vector_store %arg6[%c0_24, %c0_25], %18 {strides = array<i32>} : memref<64x128xf32, #tpu.memory_space<vmem>>, vector<64x128xf32>,
    %c0_26 = arith.constant 0 : index
    %c0_27 = arith.constant 0 : index
    %c0_28 = arith.constant 0 : index
    %c1_29 = arith.constant 1 : index
    %c0_30 = arith.constant 0 : index
    %20 = vector.load %arg2[%c0_26, %c0_27, %c0_28, %c1_29, %c0_30] : memref<1x4x9x9x128xbf16, #tpu.memory_space<vmem>>, vector<1x1x8x8x128xbf16>
    %21 = vector.shape_cast %20 : vector<1x1x8x8x128xbf16> to vector<8x8x128xbf16>
    %c0_31 = arith.constant 0 : index
    %c0_32 = arith.constant 0 : index
    %22 = vector.load %arg6[%c0_31, %c0_32] : memref<64x128xf32, #tpu.memory_space<vmem>>, vector<64x128xf32>
    %23 = vector.shape_cast %21 : vector<8x8x128xbf16> to vector<64x128xbf16>
    %c2 = arith.constant 2 : index
    %c0_33 = arith.constant 0 : index
    %c0_34 = arith.constant 0 : index
    %24 = vector.load %arg3[%c2, %c0_33, %c0_34] : memref<9x128x128xbf16, #tpu.memory_space<vmem>>, vector<1x128x128xbf16>
    %25 = vector.shape_cast %24 : vector<1x128x128xbf16> to vector<128x128xbf16>
    %cst_35 = arith.constant dense<0.000000e+00> : vector<64x128xf32>
    %26 = tpu.matmul %23, %25, %cst_35 {dimension_numbers = #tpu.dot_dimension_numbers<[1], [0], [0], [1], [0, 0, 1, 1], [], []>} : vector<64x128xbf16>, vector<128x128xbf16>, vector<64x128xf32> -> vector<64x128xf32>
    %27 = arith.addf %22, %26 : vector<64x128xf32>
    %c0_36 = arith.constant 0 : index
    %c0_37 = arith.constant 0 : index
    %28 = vector.load %arg6[%c0_36, %c0_37] : memref<64x128xf32, #tpu.memory_space<vmem>>, vector<64x128xf32>
    tpu.vector_store %arg6[%c0_36, %c0_37], %27 {strides = array<i32>} : memref<64x128xf32, #tpu.memory_space<vmem>>, vector<64x128xf32>,
    %c0_38 = arith.constant 0 : index
    %c2_39 = arith.constant 2 : index
    %c0_40 = arith.constant 0 : index
    %c0_41 = arith.constant 0 : index
    %c0_42 = arith.constant 0 : index
    %29 = vector.load %arg2[%c0_38, %c2_39, %c0_40, %c0_41, %c0_42] : memref<1x4x9x9x128xbf16, #tpu.memory_space<vmem>>, vector<1x1x8x8x128xbf16>
    %30 = vector.shape_cast %29 : vector<1x1x8x8x128xbf16> to vector<8x8x128xbf16>
    %c0_43 = arith.constant 0 : index
    %c0_44 = arith.constant 0 : index
    %31 = vector.load %arg6[%c0_43, %c0_44] : memref<64x128xf32, #tpu.memory_space<vmem>>, vector<64x128xf32>
    %32 = vector.shape_cast %30 : vector<8x8x128xbf16> to vector<64x128xbf16>
    %c3 = arith.constant 3 : index
    %c0_45 = arith.constant 0 : index
    %c0_46 = arith.constant 0 : index
    %33 = vector.load %arg3[%c3, %c0_45, %c0_46] : memref<9x128x128xbf16, #tpu.memory_space<vmem>>, vector<1x128x128xbf16>
    %34 = vector.shape_cast %33 : vector<1x128x128xbf16> to vector<128x128xbf16>
    %cst_47 = arith.constant dense<0.000000e+00> : vector<64x128xf32>
    %35 = tpu.matmul %32, %34, %cst_47 {dimension_numbers = #tpu.dot_dimension_numbers<[1], [0], [0], [1], [0, 0, 1, 1], [], []>} : vector<64x128xbf16>, vector<128x128xbf16>, vector<64x128xf32> -> vector<64x128xf32>
    %36 = arith.addf %31, %35 : vector<64x128xf32>
    %c0_48 = arith.constant 0 : index
    %c0_49 = arith.constant 0 : index
    %37 = vector.load %arg6[%c0_48, %c0_49] : memref<64x128xf32, #tpu.memory_space<vmem>>, vector<64x128xf32>
    tpu.vector_store %arg6[%c0_48, %c0_49], %36 {strides = array<i32>} : memref<64x128xf32, #tpu.memory_space<vmem>>, vector<64x128xf32>,
    %c0_50 = arith.constant 0 : index
    %c3_51 = arith.constant 3 : index
    %c0_52 = arith.constant 0 : index
    %c0_53 = arith.constant 0 : index
    %c0_54 = arith.constant 0 : index
    %38 = vector.load %arg2[%c0_50, %c3_51, %c0_52, %c0_53, %c0_54] : memref<1x4x9x9x128xbf16, #tpu.memory_space<vmem>>, vector<1x1x8x8x128xbf16>
    %39 = vector.shape_cast %38 : vector<1x1x8x8x128xbf16> to vector<8x8x128xbf16>
    %c0_55 = arith.constant 0 : index
    %c0_56 = arith.constant 0 : index
    %40 = vector.load %arg6[%c0_55, %c0_56] : memref<64x128xf32, #tpu.memory_space<vmem>>, vector<64x128xf32>
    %41 = vector.shape_cast %39 : vector<8x8x128xbf16> to vector<64x128xbf16>
    %c4 = arith.constant 4 : index
    %c0_57 = arith.constant 0 : index
    %c0_58 = arith.constant 0 : index
    %42 = vector.load %arg3[%c4, %c0_57, %c0_58] : memref<9x128x128xbf16, #tpu.memory_space<vmem>>, vector<1x128x128xbf16>
    %43 = vector.shape_cast %42 : vector<1x128x128xbf16> to vector<128x128xbf16>
    %cst_59 = arith.constant dense<0.000000e+00> : vector<64x128xf32>
    %44 = tpu.matmul %41, %43, %cst_59 {dimension_numbers = #tpu.dot_dimension_numbers<[1], [0], [0], [1], [0, 0, 1, 1], [], []>} : vector<64x128xbf16>, vector<128x128xbf16>, vector<64x128xf32> -> vector<64x128xf32>
    %45 = arith.addf %40, %44 : vector<64x128xf32>
    %c0_60 = arith.constant 0 : index
    %c0_61 = arith.constant 0 : index
    %46 = vector.load %arg6[%c0_60, %c0_61] : memref<64x128xf32, #tpu.memory_space<vmem>>, vector<64x128xf32>
    tpu.vector_store %arg6[%c0_60, %c0_61], %45 {strides = array<i32>} : memref<64x128xf32, #tpu.memory_space<vmem>>, vector<64x128xf32>,
    %c0_62 = arith.constant 0 : index
    %c2_63 = arith.constant 2 : index
    %c0_64 = arith.constant 0 : index
    %c1_65 = arith.constant 1 : index
    %c0_66 = arith.constant 0 : index
    %47 = vector.load %arg2[%c0_62, %c2_63, %c0_64, %c1_65, %c0_66] : memref<1x4x9x9x128xbf16, #tpu.memory_space<vmem>>, vector<1x1x8x8x128xbf16>
    %48 = vector.shape_cast %47 : vector<1x1x8x8x128xbf16> to vector<8x8x128xbf16>
    %c0_67 = arith.constant 0 : index
    %c0_68 = arith.constant 0 : index
    %49 = vector.load %arg6[%c0_67, %c0_68] : memref<64x128xf32, #tpu.memory_space<vmem>>, vector<64x128xf32>
    %50 = vector.shape_cast %48 : vector<8x8x128xbf16> to vector<64x128xbf16>
    %c5 = arith.constant 5 : index
    %c0_69 = arith.constant 0 : index
    %c0_70 = arith.constant 0 : index
    %51 = vector.load %arg3[%c5, %c0_69, %c0_70] : memref<9x128x128xbf16, #tpu.memory_space<vmem>>, vector<1x128x128xbf16>
    %52 = vector.shape_cast %51 : vector<1x128x128xbf16> to vector<128x128xbf16>
    %cst_71 = arith.constant dense<0.000000e+00> : vector<64x128xf32>
    %53 = tpu.matmul %50, %52, %cst_71 {dimension_numbers = #tpu.dot_dimension_numbers<[1], [0], [0], [1], [0, 0, 1, 1], [], []>} : vector<64x128xbf16>, vector<128x128xbf16>, vector<64x128xf32> -> vector<64x128xf32>
    %54 = arith.addf %49, %53 : vector<64x128xf32>
    %c0_72 = arith.constant 0 : index
    %c0_73 = arith.constant 0 : index
    %55 = vector.load %arg6[%c0_72, %c0_73] : memref<64x128xf32, #tpu.memory_space<vmem>>, vector<64x128xf32>
    tpu.vector_store %arg6[%c0_72, %c0_73], %54 {strides = array<i32>} : memref<64x128xf32, #tpu.memory_space<vmem>>, vector<64x128xf32>,
    %c0_74 = arith.constant 0 : index
    %c0_75 = arith.constant 0 : index
    %c1_76 = arith.constant 1 : index
    %c0_77 = arith.constant 0 : index
    %c0_78 = arith.constant 0 : index
    %56 = vector.load %arg2[%c0_74, %c0_75, %c1_76, %c0_77, %c0_78] : memref<1x4x9x9x128xbf16, #tpu.memory_space<vmem>>, vector<1x1x8x8x128xbf16>
    %57 = vector.shape_cast %56 : vector<1x1x8x8x128xbf16> to vector<8x8x128xbf16>
    %c0_79 = arith.constant 0 : index
    %c0_80 = arith.constant 0 : index
    %58 = vector.load %arg6[%c0_79, %c0_80] : memref<64x128xf32, #tpu.memory_space<vmem>>, vector<64x128xf32>
    %59 = vector.shape_cast %57 : vector<8x8x128xbf16> to vector<64x128xbf16>
    %c6 = arith.constant 6 : index
    %c0_81 = arith.constant 0 : index
    %c0_82 = arith.constant 0 : index
    %60 = vector.load %arg3[%c6, %c0_81, %c0_82] : memref<9x128x128xbf16, #tpu.memory_space<vmem>>, vector<1x128x128xbf16>
    %61 = vector.shape_cast %60 : vector<1x128x128xbf16> to vector<128x128xbf16>
    %cst_83 = arith.constant dense<0.000000e+00> : vector<64x128xf32>
    %62 = tpu.matmul %59, %61, %cst_83 {dimension_numbers = #tpu.dot_dimension_numbers<[1], [0], [0], [1], [0, 0, 1, 1], [], []>} : vector<64x128xbf16>, vector<128x128xbf16>, vector<64x128xf32> -> vector<64x128xf32>
    %63 = arith.addf %58, %62 : vector<64x128xf32>
    %c0_84 = arith.constant 0 : index
    %c0_85 = arith.constant 0 : index
    %64 = vector.load %arg6[%c0_84, %c0_85] : memref<64x128xf32, #tpu.memory_space<vmem>>, vector<64x128xf32>
    tpu.vector_store %arg6[%c0_84, %c0_85], %63 {strides = array<i32>} : memref<64x128xf32, #tpu.memory_space<vmem>>, vector<64x128xf32>,
    %c0_86 = arith.constant 0 : index
    %c1_87 = arith.constant 1 : index
    %c1_88 = arith.constant 1 : index
    %c0_89 = arith.constant 0 : index
    %c0_90 = arith.constant 0 : index
    %65 = vector.load %arg2[%c0_86, %c1_87, %c1_88, %c0_89, %c0_90] : memref<1x4x9x9x128xbf16, #tpu.memory_space<vmem>>, vector<1x1x8x8x128xbf16>
    %66 = vector.shape_cast %65 : vector<1x1x8x8x128xbf16> to vector<8x8x128xbf16>
    %c0_91 = arith.constant 0 : index
    %c0_92 = arith.constant 0 : index
    %67 = vector.load %arg6[%c0_91, %c0_92] : memref<64x128xf32, #tpu.memory_space<vmem>>, vector<64x128xf32>
    %68 = vector.shape_cast %66 : vector<8x8x128xbf16> to vector<64x128xbf16>
    %c7 = arith.constant 7 : index
    %c0_93 = arith.constant 0 : index
    %c0_94 = arith.constant 0 : index
    %69 = vector.load %arg3[%c7, %c0_93, %c0_94] : memref<9x128x128xbf16, #tpu.memory_space<vmem>>, vector<1x128x128xbf16>
    %70 = vector.shape_cast %69 : vector<1x128x128xbf16> to vector<128x128xbf16>
    %cst_95 = arith.constant dense<0.000000e+00> : vector<64x128xf32>
    %71 = tpu.matmul %68, %70, %cst_95 {dimension_numbers = #tpu.dot_dimension_numbers<[1], [0], [0], [1], [0, 0, 1, 1], [], []>} : vector<64x128xbf16>, vector<128x128xbf16>, vector<64x128xf32> -> vector<64x128xf32>
    %72 = arith.addf %67, %71 : vector<64x128xf32>
    %c0_96 = arith.constant 0 : index
    %c0_97 = arith.constant 0 : index
    %73 = vector.load %arg6[%c0_96, %c0_97] : memref<64x128xf32, #tpu.memory_space<vmem>>, vector<64x128xf32>
    tpu.vector_store %arg6[%c0_96, %c0_97], %72 {strides = array<i32>} : memref<64x128xf32, #tpu.memory_space<vmem>>, vector<64x128xf32>,
    %c0_98 = arith.constant 0 : index
    %c0_99 = arith.constant 0 : index
    %c1_100 = arith.constant 1 : index
    %c1_101 = arith.constant 1 : index
    %c0_102 = arith.constant 0 : index
    %74 = vector.load %arg2[%c0_98, %c0_99, %c1_100, %c1_101, %c0_102] : memref<1x4x9x9x128xbf16, #tpu.memory_space<vmem>>, vector<1x1x8x8x128xbf16>
    %75 = vector.shape_cast %74 : vector<1x1x8x8x128xbf16> to vector<8x8x128xbf16>
    %c0_103 = arith.constant 0 : index
    %c0_104 = arith.constant 0 : index
    %76 = vector.load %arg6[%c0_103, %c0_104] : memref<64x128xf32, #tpu.memory_space<vmem>>, vector<64x128xf32>
    %77 = vector.shape_cast %75 : vector<8x8x128xbf16> to vector<64x128xbf16>
    %c8 = arith.constant 8 : index
    %c0_105 = arith.constant 0 : index
    %c0_106 = arith.constant 0 : index
    %78 = vector.load %arg3[%c8, %c0_105, %c0_106] : memref<9x128x128xbf16, #tpu.memory_space<vmem>>, vector<1x128x128xbf16>
    %79 = vector.shape_cast %78 : vector<1x128x128xbf16> to vector<128x128xbf16>
    %cst_107 = arith.constant dense<0.000000e+00> : vector<64x128xf32>
    %80 = tpu.matmul %77, %79, %cst_107 {dimension_numbers = #tpu.dot_dimension_numbers<[1], [0], [0], [1], [0, 0, 1, 1], [], []>} : vector<64x128xbf16>, vector<128x128xbf16>, vector<64x128xf32> -> vector<64x128xf32>
    %81 = arith.addf %76, %80 : vector<64x128xf32>
    %c0_108 = arith.constant 0 : index
    %c0_109 = arith.constant 0 : index
    %82 = vector.load %arg6[%c0_108, %c0_109] : memref<64x128xf32, #tpu.memory_space<vmem>>, vector<64x128xf32>
    tpu.vector_store %arg6[%c0_108, %c0_109], %81 {strides = array<i32>} : memref<64x128xf32, #tpu.memory_space<vmem>>, vector<64x128xf32>,
    %c0_110 = arith.constant 0 : index
    %c0_111 = arith.constant 0 : index
    %83 = vector.load %arg6[%c0_110, %c0_111] : memref<64x128xf32, #tpu.memory_space<vmem>>, vector<64x128xf32>
    %c0_112 = arith.constant 0 : index
    %c0_113 = arith.constant 0 : index
    %84 = vector.load %arg4[%c0_112, %c0_113] : memref<1x128xf32, #tpu.memory_space<vmem>>, vector<1x128xf32>
    %85 = vector.broadcast %84 : vector<1x128xf32> to vector<64x128xf32>
    %86 = arith.addf %83, %85 : vector<64x128xf32>
    %cst_114 = arith.constant 0.000000e+00 : f32
    %87 = vector.broadcast %cst_114 : f32 to vector<64x128xf32>
    %88 = arith.maximumf %86, %87 : vector<64x128xf32>
    %89 = arith.truncf %88 : vector<64x128xf32> to vector<64x128xbf16>
    %c0_115 = arith.constant 0 : index
    %c0_116 = arith.constant 0 : index
    %c0_117 = arith.constant 0 : index
    %90 = vector.load %arg5[%c0_115, %c0_116, %c0_117] : memref<1x64x128xbf16, #tpu.memory_space<vmem>>, vector<1x64x128xbf16>
    %91 = vector.shape_cast %90 : vector<1x64x128xbf16> to vector<64x128xbf16>
    %92 = vector.shape_cast %89 : vector<64x128xbf16> to vector<1x64x128xbf16>
    tpu.vector_store %arg5[%c0_115, %c0_116, %c0_117], %92 {strides = array<i32>} : memref<1x64x128xbf16, #tpu.memory_space<vmem>>, vector<1x64x128xbf16>,
    return
  }
  func.func @transform_0(%arg0: i32, %arg1: i32) -> (i32, i32, i32, i32, i32) {
    %c0_i32 = arith.constant 0 : i32
    %c0_i32_0 = arith.constant 0 : i32
    %c0_i32_1 = arith.constant 0 : i32
    %c0_i32_2 = arith.constant 0 : i32
    %c0_i32_3 = arith.constant 0 : i32
    return %arg1, %c0_i32, %c0_i32_0, %c0_i32_1, %c0_i32_2 : i32, i32, i32, i32, i32
  }
  func.func @transform_1(%arg0: i32, %arg1: i32) -> (i32, i32, i32) {
    %c0_i32 = arith.constant 0 : i32
    %c0_i32_0 = arith.constant 0 : i32
    %c0_i32_1 = arith.constant 0 : i32
    return %c0_i32, %c0_i32_0, %arg0 : i32, i32, i32
  }
  func.func @transform_2(%arg0: i32, %arg1: i32) -> (i32, i32) {
    %c0_i32 = arith.constant 0 : i32
    %c0_i32_0 = arith.constant 0 : i32
    return %c0_i32, %arg0 : i32, i32
  }
  func.func @transform_3(%arg0: i32, %arg1: i32) -> (i32, i32, i32) {
    %c0_i32 = arith.constant 0 : i32
    %c0_i32_0 = arith.constant 0 : i32
    return %arg1, %c0_i32, %arg0 : i32, i32, i32
  }
}

module attributes {stable_mosaic.version = 11 : i64} {
  func.func @_fused_conv_bn_kernel(%arg0: i32, %arg1: i32, %arg2: memref<1x1x10x10x128xbf16, #tpu.memory_space<vmem>>, %arg3: memref<9x128x128xbf16, #tpu.memory_space<vmem>>, %arg4: memref<1x128xf32, #tpu.memory_space<vmem>>, %arg5: memref<1x1x9x9x128xbf16, #tpu.memory_space<vmem>>, %arg6: memref<1x128x128xbf16, #tpu.memory_space<vmem>>, %arg7: memref<1x128xf32, #tpu.memory_space<vmem>>, %arg8: memref<1x64x128xf32, #tpu.memory_space<vmem>>, %arg9: memref<64x128xf32, #tpu.memory_space<vmem>>) attributes {dimension_semantics = [#tpu.dimension_semantics<parallel>, #tpu.dimension_semantics<parallel>], iteration_bounds = array<i64: 1, 2>, scalar_prefetch = 0 : i64, scratch_operands = 1 : i64, tpu.core_type = #tpu.core_type<tc>, window_params = [{transform_indices = @transform_0, window_bounds = array<i64: 1, 1, 10, 10, 128>}, {transform_indices = @transform_1, window_bounds = array<i64: 9, 128, 128>}, {transform_indices = @transform_2, window_bounds = array<i64: 1, 128>}, {transform_indices = @transform_3, window_bounds = array<i64: 1, 1, 9, 9, 128>}, {transform_indices = @transform_4, window_bounds = array<i64: 1, 128, 128>}, {transform_indices = @transform_5, window_bounds = array<i64: 1, 128>}, {transform_indices = @transform_6, window_bounds = array<i64: 1, 64, 128>}]} {
    %cst = arith.constant 0.000000e+00 : f32
    %0 = vector.broadcast %cst : f32 to vector<64x128xf32>
    %c0 = arith.constant 0 : index
    %c0_0 = arith.constant 0 : index
    %1 = vector.load %arg9[%c0, %c0_0] : memref<64x128xf32, #tpu.memory_space<vmem>>, vector<64x128xf32>
    tpu.vector_store %arg9[%c0, %c0_0], %0 {strides = array<i32>} : memref<64x128xf32, #tpu.memory_space<vmem>>, vector<64x128xf32>,
    %c0_1 = arith.constant 0 : index
    %c0_2 = arith.constant 0 : index
    %c0_3 = arith.constant 0 : index
    %c0_4 = arith.constant 0 : index
    %c0_5 = arith.constant 0 : index
    %2 = vector.load %arg2[%c0_1, %c0_2, %c0_3, %c0_4, %c0_5] : memref<1x1x10x10x128xbf16, #tpu.memory_space<vmem>>, vector<1x1x8x8x128xbf16>
    %3 = vector.shape_cast %2 : vector<1x1x8x8x128xbf16> to vector<8x8x128xbf16>
    %c0_6 = arith.constant 0 : index
    %c0_7 = arith.constant 0 : index
    %4 = vector.load %arg9[%c0_6, %c0_7] : memref<64x128xf32, #tpu.memory_space<vmem>>, vector<64x128xf32>
    %5 = vector.shape_cast %3 : vector<8x8x128xbf16> to vector<64x128xbf16>
    %c0_8 = arith.constant 0 : index
    %c0_9 = arith.constant 0 : index
    %c0_10 = arith.constant 0 : index
    %6 = vector.load %arg3[%c0_8, %c0_9, %c0_10] : memref<9x128x128xbf16, #tpu.memory_space<vmem>>, vector<1x128x128xbf16>
    %7 = vector.shape_cast %6 : vector<1x128x128xbf16> to vector<128x128xbf16>
    %cst_11 = arith.constant dense<0.000000e+00> : vector<64x128xf32>
    %8 = tpu.matmul %5, %7, %cst_11 {dimension_numbers = #tpu.dot_dimension_numbers<[1], [0], [0], [1], [0, 0, 1, 1], [], []>} : vector<64x128xbf16>, vector<128x128xbf16>, vector<64x128xf32> -> vector<64x128xf32>
    %9 = arith.addf %4, %8 : vector<64x128xf32>
    %c0_12 = arith.constant 0 : index
    %c0_13 = arith.constant 0 : index
    %10 = vector.load %arg9[%c0_12, %c0_13] : memref<64x128xf32, #tpu.memory_space<vmem>>, vector<64x128xf32>
    tpu.vector_store %arg9[%c0_12, %c0_13], %9 {strides = array<i32>} : memref<64x128xf32, #tpu.memory_space<vmem>>, vector<64x128xf32>,
    %c0_14 = arith.constant 0 : index
    %c0_15 = arith.constant 0 : index
    %c0_16 = arith.constant 0 : index
    %c1 = arith.constant 1 : index
    %c0_17 = arith.constant 0 : index
    %11 = vector.load %arg2[%c0_14, %c0_15, %c0_16, %c1, %c0_17] : memref<1x1x10x10x128xbf16, #tpu.memory_space<vmem>>, vector<1x1x8x8x128xbf16>
    %12 = vector.shape_cast %11 : vector<1x1x8x8x128xbf16> to vector<8x8x128xbf16>
    %c0_18 = arith.constant 0 : index
    %c0_19 = arith.constant 0 : index
    %13 = vector.load %arg9[%c0_18, %c0_19] : memref<64x128xf32, #tpu.memory_space<vmem>>, vector<64x128xf32>
    %14 = vector.shape_cast %12 : vector<8x8x128xbf16> to vector<64x128xbf16>
    %c1_20 = arith.constant 1 : index
    %c0_21 = arith.constant 0 : index
    %c0_22 = arith.constant 0 : index
    %15 = vector.load %arg3[%c1_20, %c0_21, %c0_22] : memref<9x128x128xbf16, #tpu.memory_space<vmem>>, vector<1x128x128xbf16>
    %16 = vector.shape_cast %15 : vector<1x128x128xbf16> to vector<128x128xbf16>
    %cst_23 = arith.constant dense<0.000000e+00> : vector<64x128xf32>
    %17 = tpu.matmul %14, %16, %cst_23 {dimension_numbers = #tpu.dot_dimension_numbers<[1], [0], [0], [1], [0, 0, 1, 1], [], []>} : vector<64x128xbf16>, vector<128x128xbf16>, vector<64x128xf32> -> vector<64x128xf32>
    %18 = arith.addf %13, %17 : vector<64x128xf32>
    %c0_24 = arith.constant 0 : index
    %c0_25 = arith.constant 0 : index
    %19 = vector.load %arg9[%c0_24, %c0_25] : memref<64x128xf32, #tpu.memory_space<vmem>>, vector<64x128xf32>
    tpu.vector_store %arg9[%c0_24, %c0_25], %18 {strides = array<i32>} : memref<64x128xf32, #tpu.memory_space<vmem>>, vector<64x128xf32>,
    %c0_26 = arith.constant 0 : index
    %c0_27 = arith.constant 0 : index
    %c0_28 = arith.constant 0 : index
    %c2 = arith.constant 2 : index
    %c0_29 = arith.constant 0 : index
    %20 = vector.load %arg2[%c0_26, %c0_27, %c0_28, %c2, %c0_29] : memref<1x1x10x10x128xbf16, #tpu.memory_space<vmem>>, vector<1x1x8x8x128xbf16>
    %21 = vector.shape_cast %20 : vector<1x1x8x8x128xbf16> to vector<8x8x128xbf16>
    %c0_30 = arith.constant 0 : index
    %c0_31 = arith.constant 0 : index
    %22 = vector.load %arg9[%c0_30, %c0_31] : memref<64x128xf32, #tpu.memory_space<vmem>>, vector<64x128xf32>
    %23 = vector.shape_cast %21 : vector<8x8x128xbf16> to vector<64x128xbf16>
    %c2_32 = arith.constant 2 : index
    %c0_33 = arith.constant 0 : index
    %c0_34 = arith.constant 0 : index
    %24 = vector.load %arg3[%c2_32, %c0_33, %c0_34] : memref<9x128x128xbf16, #tpu.memory_space<vmem>>, vector<1x128x128xbf16>
    %25 = vector.shape_cast %24 : vector<1x128x128xbf16> to vector<128x128xbf16>
    %cst_35 = arith.constant dense<0.000000e+00> : vector<64x128xf32>
    %26 = tpu.matmul %23, %25, %cst_35 {dimension_numbers = #tpu.dot_dimension_numbers<[1], [0], [0], [1], [0, 0, 1, 1], [], []>} : vector<64x128xbf16>, vector<128x128xbf16>, vector<64x128xf32> -> vector<64x128xf32>
    %27 = arith.addf %22, %26 : vector<64x128xf32>
    %c0_36 = arith.constant 0 : index
    %c0_37 = arith.constant 0 : index
    %28 = vector.load %arg9[%c0_36, %c0_37] : memref<64x128xf32, #tpu.memory_space<vmem>>, vector<64x128xf32>
    tpu.vector_store %arg9[%c0_36, %c0_37], %27 {strides = array<i32>} : memref<64x128xf32, #tpu.memory_space<vmem>>, vector<64x128xf32>,
    %c0_38 = arith.constant 0 : index
    %c0_39 = arith.constant 0 : index
    %c1_40 = arith.constant 1 : index
    %c0_41 = arith.constant 0 : index
    %c0_42 = arith.constant 0 : index
    %29 = vector.load %arg2[%c0_38, %c0_39, %c1_40, %c0_41, %c0_42] : memref<1x1x10x10x128xbf16, #tpu.memory_space<vmem>>, vector<1x1x8x8x128xbf16>
    %30 = vector.shape_cast %29 : vector<1x1x8x8x128xbf16> to vector<8x8x128xbf16>
    %c0_43 = arith.constant 0 : index
    %c0_44 = arith.constant 0 : index
    %31 = vector.load %arg9[%c0_43, %c0_44] : memref<64x128xf32, #tpu.memory_space<vmem>>, vector<64x128xf32>
    %32 = vector.shape_cast %30 : vector<8x8x128xbf16> to vector<64x128xbf16>
    %c3 = arith.constant 3 : index
    %c0_45 = arith.constant 0 : index
    %c0_46 = arith.constant 0 : index
    %33 = vector.load %arg3[%c3, %c0_45, %c0_46] : memref<9x128x128xbf16, #tpu.memory_space<vmem>>, vector<1x128x128xbf16>
    %34 = vector.shape_cast %33 : vector<1x128x128xbf16> to vector<128x128xbf16>
    %cst_47 = arith.constant dense<0.000000e+00> : vector<64x128xf32>
    %35 = tpu.matmul %32, %34, %cst_47 {dimension_numbers = #tpu.dot_dimension_numbers<[1], [0], [0], [1], [0, 0, 1, 1], [], []>} : vector<64x128xbf16>, vector<128x128xbf16>, vector<64x128xf32> -> vector<64x128xf32>
    %36 = arith.addf %31, %35 : vector<64x128xf32>
    %c0_48 = arith.constant 0 : index
    %c0_49 = arith.constant 0 : index
    %37 = vector.load %arg9[%c0_48, %c0_49] : memref<64x128xf32, #tpu.memory_space<vmem>>, vector<64x128xf32>
    tpu.vector_store %arg9[%c0_48, %c0_49], %36 {strides = array<i32>} : memref<64x128xf32, #tpu.memory_space<vmem>>, vector<64x128xf32>,
    %c0_50 = arith.constant 0 : index
    %c0_51 = arith.constant 0 : index
    %c1_52 = arith.constant 1 : index
    %c1_53 = arith.constant 1 : index
    %c0_54 = arith.constant 0 : index
    %38 = vector.load %arg2[%c0_50, %c0_51, %c1_52, %c1_53, %c0_54] : memref<1x1x10x10x128xbf16, #tpu.memory_space<vmem>>, vector<1x1x8x8x128xbf16>
    %39 = vector.shape_cast %38 : vector<1x1x8x8x128xbf16> to vector<8x8x128xbf16>
    %c0_55 = arith.constant 0 : index
    %c0_56 = arith.constant 0 : index
    %40 = vector.load %arg9[%c0_55, %c0_56] : memref<64x128xf32, #tpu.memory_space<vmem>>, vector<64x128xf32>
    %41 = vector.shape_cast %39 : vector<8x8x128xbf16> to vector<64x128xbf16>
    %c4 = arith.constant 4 : index
    %c0_57 = arith.constant 0 : index
    %c0_58 = arith.constant 0 : index
    %42 = vector.load %arg3[%c4, %c0_57, %c0_58] : memref<9x128x128xbf16, #tpu.memory_space<vmem>>, vector<1x128x128xbf16>
    %43 = vector.shape_cast %42 : vector<1x128x128xbf16> to vector<128x128xbf16>
    %cst_59 = arith.constant dense<0.000000e+00> : vector<64x128xf32>
    %44 = tpu.matmul %41, %43, %cst_59 {dimension_numbers = #tpu.dot_dimension_numbers<[1], [0], [0], [1], [0, 0, 1, 1], [], []>} : vector<64x128xbf16>, vector<128x128xbf16>, vector<64x128xf32> -> vector<64x128xf32>
    %45 = arith.addf %40, %44 : vector<64x128xf32>
    %c0_60 = arith.constant 0 : index
    %c0_61 = arith.constant 0 : index
    %46 = vector.load %arg9[%c0_60, %c0_61] : memref<64x128xf32, #tpu.memory_space<vmem>>, vector<64x128xf32>
    tpu.vector_store %arg9[%c0_60, %c0_61], %45 {strides = array<i32>} : memref<64x128xf32, #tpu.memory_space<vmem>>, vector<64x128xf32>,
    %c0_62 = arith.constant 0 : index
    %c0_63 = arith.constant 0 : index
    %c1_64 = arith.constant 1 : index
    %c2_65 = arith.constant 2 : index
    %c0_66 = arith.constant 0 : index
    %47 = vector.load %arg2[%c0_62, %c0_63, %c1_64, %c2_65, %c0_66] : memref<1x1x10x10x128xbf16, #tpu.memory_space<vmem>>, vector<1x1x8x8x128xbf16>
    %48 = vector.shape_cast %47 : vector<1x1x8x8x128xbf16> to vector<8x8x128xbf16>
    %c0_67 = arith.constant 0 : index
    %c0_68 = arith.constant 0 : index
    %49 = vector.load %arg9[%c0_67, %c0_68] : memref<64x128xf32, #tpu.memory_space<vmem>>, vector<64x128xf32>
    %50 = vector.shape_cast %48 : vector<8x8x128xbf16> to vector<64x128xbf16>
    %c5 = arith.constant 5 : index
    %c0_69 = arith.constant 0 : index
    %c0_70 = arith.constant 0 : index
    %51 = vector.load %arg3[%c5, %c0_69, %c0_70] : memref<9x128x128xbf16, #tpu.memory_space<vmem>>, vector<1x128x128xbf16>
    %52 = vector.shape_cast %51 : vector<1x128x128xbf16> to vector<128x128xbf16>
    %cst_71 = arith.constant dense<0.000000e+00> : vector<64x128xf32>
    %53 = tpu.matmul %50, %52, %cst_71 {dimension_numbers = #tpu.dot_dimension_numbers<[1], [0], [0], [1], [0, 0, 1, 1], [], []>} : vector<64x128xbf16>, vector<128x128xbf16>, vector<64x128xf32> -> vector<64x128xf32>
    %54 = arith.addf %49, %53 : vector<64x128xf32>
    %c0_72 = arith.constant 0 : index
    %c0_73 = arith.constant 0 : index
    %55 = vector.load %arg9[%c0_72, %c0_73] : memref<64x128xf32, #tpu.memory_space<vmem>>, vector<64x128xf32>
    tpu.vector_store %arg9[%c0_72, %c0_73], %54 {strides = array<i32>} : memref<64x128xf32, #tpu.memory_space<vmem>>, vector<64x128xf32>,
    %c0_74 = arith.constant 0 : index
    %c0_75 = arith.constant 0 : index
    %c2_76 = arith.constant 2 : index
    %c0_77 = arith.constant 0 : index
    %c0_78 = arith.constant 0 : index
    %56 = vector.load %arg2[%c0_74, %c0_75, %c2_76, %c0_77, %c0_78] : memref<1x1x10x10x128xbf16, #tpu.memory_space<vmem>>, vector<1x1x8x8x128xbf16>
    %57 = vector.shape_cast %56 : vector<1x1x8x8x128xbf16> to vector<8x8x128xbf16>
    %c0_79 = arith.constant 0 : index
    %c0_80 = arith.constant 0 : index
    %58 = vector.load %arg9[%c0_79, %c0_80] : memref<64x128xf32, #tpu.memory_space<vmem>>, vector<64x128xf32>
    %59 = vector.shape_cast %57 : vector<8x8x128xbf16> to vector<64x128xbf16>
    %c6 = arith.constant 6 : index
    %c0_81 = arith.constant 0 : index
    %c0_82 = arith.constant 0 : index
    %60 = vector.load %arg3[%c6, %c0_81, %c0_82] : memref<9x128x128xbf16, #tpu.memory_space<vmem>>, vector<1x128x128xbf16>
    %61 = vector.shape_cast %60 : vector<1x128x128xbf16> to vector<128x128xbf16>
    %cst_83 = arith.constant dense<0.000000e+00> : vector<64x128xf32>
    %62 = tpu.matmul %59, %61, %cst_83 {dimension_numbers = #tpu.dot_dimension_numbers<[1], [0], [0], [1], [0, 0, 1, 1], [], []>} : vector<64x128xbf16>, vector<128x128xbf16>, vector<64x128xf32> -> vector<64x128xf32>
    %63 = arith.addf %58, %62 : vector<64x128xf32>
    %c0_84 = arith.constant 0 : index
    %c0_85 = arith.constant 0 : index
    %64 = vector.load %arg9[%c0_84, %c0_85] : memref<64x128xf32, #tpu.memory_space<vmem>>, vector<64x128xf32>
    tpu.vector_store %arg9[%c0_84, %c0_85], %63 {strides = array<i32>} : memref<64x128xf32, #tpu.memory_space<vmem>>, vector<64x128xf32>,
    %c0_86 = arith.constant 0 : index
    %c0_87 = arith.constant 0 : index
    %c2_88 = arith.constant 2 : index
    %c1_89 = arith.constant 1 : index
    %c0_90 = arith.constant 0 : index
    %65 = vector.load %arg2[%c0_86, %c0_87, %c2_88, %c1_89, %c0_90] : memref<1x1x10x10x128xbf16, #tpu.memory_space<vmem>>, vector<1x1x8x8x128xbf16>
    %66 = vector.shape_cast %65 : vector<1x1x8x8x128xbf16> to vector<8x8x128xbf16>
    %c0_91 = arith.constant 0 : index
    %c0_92 = arith.constant 0 : index
    %67 = vector.load %arg9[%c0_91, %c0_92] : memref<64x128xf32, #tpu.memory_space<vmem>>, vector<64x128xf32>
    %68 = vector.shape_cast %66 : vector<8x8x128xbf16> to vector<64x128xbf16>
    %c7 = arith.constant 7 : index
    %c0_93 = arith.constant 0 : index
    %c0_94 = arith.constant 0 : index
    %69 = vector.load %arg3[%c7, %c0_93, %c0_94] : memref<9x128x128xbf16, #tpu.memory_space<vmem>>, vector<1x128x128xbf16>
    %70 = vector.shape_cast %69 : vector<1x128x128xbf16> to vector<128x128xbf16>
    %cst_95 = arith.constant dense<0.000000e+00> : vector<64x128xf32>
    %71 = tpu.matmul %68, %70, %cst_95 {dimension_numbers = #tpu.dot_dimension_numbers<[1], [0], [0], [1], [0, 0, 1, 1], [], []>} : vector<64x128xbf16>, vector<128x128xbf16>, vector<64x128xf32> -> vector<64x128xf32>
    %72 = arith.addf %67, %71 : vector<64x128xf32>
    %c0_96 = arith.constant 0 : index
    %c0_97 = arith.constant 0 : index
    %73 = vector.load %arg9[%c0_96, %c0_97] : memref<64x128xf32, #tpu.memory_space<vmem>>, vector<64x128xf32>
    tpu.vector_store %arg9[%c0_96, %c0_97], %72 {strides = array<i32>} : memref<64x128xf32, #tpu.memory_space<vmem>>, vector<64x128xf32>,
    %c0_98 = arith.constant 0 : index
    %c0_99 = arith.constant 0 : index
    %c2_100 = arith.constant 2 : index
    %c2_101 = arith.constant 2 : index
    %c0_102 = arith.constant 0 : index
    %74 = vector.load %arg2[%c0_98, %c0_99, %c2_100, %c2_101, %c0_102] : memref<1x1x10x10x128xbf16, #tpu.memory_space<vmem>>, vector<1x1x8x8x128xbf16>
    %75 = vector.shape_cast %74 : vector<1x1x8x8x128xbf16> to vector<8x8x128xbf16>
    %c0_103 = arith.constant 0 : index
    %c0_104 = arith.constant 0 : index
    %76 = vector.load %arg9[%c0_103, %c0_104] : memref<64x128xf32, #tpu.memory_space<vmem>>, vector<64x128xf32>
    %77 = vector.shape_cast %75 : vector<8x8x128xbf16> to vector<64x128xbf16>
    %c8 = arith.constant 8 : index
    %c0_105 = arith.constant 0 : index
    %c0_106 = arith.constant 0 : index
    %78 = vector.load %arg3[%c8, %c0_105, %c0_106] : memref<9x128x128xbf16, #tpu.memory_space<vmem>>, vector<1x128x128xbf16>
    %79 = vector.shape_cast %78 : vector<1x128x128xbf16> to vector<128x128xbf16>
    %cst_107 = arith.constant dense<0.000000e+00> : vector<64x128xf32>
    %80 = tpu.matmul %77, %79, %cst_107 {dimension_numbers = #tpu.dot_dimension_numbers<[1], [0], [0], [1], [0, 0, 1, 1], [], []>} : vector<64x128xbf16>, vector<128x128xbf16>, vector<64x128xf32> -> vector<64x128xf32>
    %81 = arith.addf %76, %80 : vector<64x128xf32>
    %c0_108 = arith.constant 0 : index
    %c0_109 = arith.constant 0 : index
    %82 = vector.load %arg9[%c0_108, %c0_109] : memref<64x128xf32, #tpu.memory_space<vmem>>, vector<64x128xf32>
    tpu.vector_store %arg9[%c0_108, %c0_109], %81 {strides = array<i32>} : memref<64x128xf32, #tpu.memory_space<vmem>>, vector<64x128xf32>,
    %c0_110 = arith.constant 0 : index
    %c0_111 = arith.constant 0 : index
    %83 = vector.load %arg9[%c0_110, %c0_111] : memref<64x128xf32, #tpu.memory_space<vmem>>, vector<64x128xf32>
    %c0_112 = arith.constant 0 : index
    %c0_113 = arith.constant 0 : index
    %84 = vector.load %arg4[%c0_112, %c0_113] : memref<1x128xf32, #tpu.memory_space<vmem>>, vector<1x128xf32>
    %85 = vector.broadcast %84 : vector<1x128xf32> to vector<64x128xf32>
    %86 = arith.addf %83, %85 : vector<64x128xf32>
    %c0_114 = arith.constant 0 : index
    %c0_115 = arith.constant 0 : index
    %c0_116 = arith.constant 0 : index
    %c0_117 = arith.constant 0 : index
    %c0_118 = arith.constant 0 : index
    %87 = vector.load %arg5[%c0_114, %c0_115, %c0_116, %c0_117, %c0_118] : memref<1x1x9x9x128xbf16, #tpu.memory_space<vmem>>, vector<1x1x8x8x128xbf16>
    %88 = vector.shape_cast %87 : vector<1x1x8x8x128xbf16> to vector<8x8x128xbf16>
    %89 = vector.shape_cast %88 : vector<8x8x128xbf16> to vector<64x128xbf16>
    %c0_119 = arith.constant 0 : index
    %c0_120 = arith.constant 0 : index
    %c0_121 = arith.constant 0 : index
    %90 = vector.load %arg6[%c0_119, %c0_120, %c0_121] : memref<1x128x128xbf16, #tpu.memory_space<vmem>>, vector<1x128x128xbf16>
    %91 = vector.shape_cast %90 : vector<1x128x128xbf16> to vector<128x128xbf16>
    %cst_122 = arith.constant dense<0.000000e+00> : vector<64x128xf32>
    %92 = tpu.matmul %89, %91, %cst_122 {dimension_numbers = #tpu.dot_dimension_numbers<[1], [0], [0], [1], [0, 0, 1, 1], [], []>} : vector<64x128xbf16>, vector<128x128xbf16>, vector<64x128xf32> -> vector<64x128xf32>
    %93 = arith.addf %86, %92 : vector<64x128xf32>
    %c0_123 = arith.constant 0 : index
    %c0_124 = arith.constant 0 : index
    %94 = vector.load %arg7[%c0_123, %c0_124] : memref<1x128xf32, #tpu.memory_space<vmem>>, vector<1x128xf32>
    %95 = vector.broadcast %94 : vector<1x128xf32> to vector<64x128xf32>
    %96 = arith.addf %93, %95 : vector<64x128xf32>
    %cst_125 = arith.constant 0.000000e+00 : f32
    %97 = vector.broadcast %cst_125 : f32 to vector<64x128xf32>
    %98 = arith.maximumf %96, %97 : vector<64x128xf32>
    %c0_126 = arith.constant 0 : index
    %c0_127 = arith.constant 0 : index
    %c0_128 = arith.constant 0 : index
    %99 = vector.load %arg8[%c0_126, %c0_127, %c0_128] : memref<1x64x128xf32, #tpu.memory_space<vmem>>, vector<1x64x128xf32>
    %100 = vector.shape_cast %99 : vector<1x64x128xf32> to vector<64x128xf32>
    %101 = vector.shape_cast %98 : vector<64x128xf32> to vector<1x64x128xf32>
    tpu.vector_store %arg8[%c0_126, %c0_127, %c0_128], %101 {strides = array<i32>} : memref<1x64x128xf32, #tpu.memory_space<vmem>>, vector<1x64x128xf32>,
    return
  }
  func.func @transform_0(%arg0: i32, %arg1: i32) -> (i32, i32, i32, i32, i32) {
    %c0_i32 = arith.constant 0 : i32
    %c0_i32_0 = arith.constant 0 : i32
    %c0_i32_1 = arith.constant 0 : i32
    %c0_i32_2 = arith.constant 0 : i32
    %c0_i32_3 = arith.constant 0 : i32
    return %arg1, %c0_i32, %c0_i32_0, %c0_i32_1, %c0_i32_2 : i32, i32, i32, i32, i32
  }
  func.func @transform_1(%arg0: i32, %arg1: i32) -> (i32, i32, i32) {
    %c0_i32 = arith.constant 0 : i32
    %c0_i32_0 = arith.constant 0 : i32
    %c0_i32_1 = arith.constant 0 : i32
    return %c0_i32, %c0_i32_0, %arg0 : i32, i32, i32
  }
  func.func @transform_2(%arg0: i32, %arg1: i32) -> (i32, i32) {
    %c0_i32 = arith.constant 0 : i32
    %c0_i32_0 = arith.constant 0 : i32
    return %c0_i32, %arg0 : i32, i32
  }
  func.func @transform_3(%arg0: i32, %arg1: i32) -> (i32, i32, i32, i32, i32) {
    %c3_i32 = arith.constant 3 : i32
    %c0_i32 = arith.constant 0 : i32
    %c0_i32_0 = arith.constant 0 : i32
    %c0_i32_1 = arith.constant 0 : i32
    %c0_i32_2 = arith.constant 0 : i32
    return %arg1, %c3_i32, %c0_i32, %c0_i32_0, %c0_i32_1 : i32, i32, i32, i32, i32
  }
  func.func @transform_4(%arg0: i32, %arg1: i32) -> (i32, i32, i32) {
    %c0_i32 = arith.constant 0 : i32
    %c0_i32_0 = arith.constant 0 : i32
    %c0_i32_1 = arith.constant 0 : i32
    return %c0_i32, %c0_i32_0, %arg0 : i32, i32, i32
  }
  func.func @transform_5(%arg0: i32, %arg1: i32) -> (i32, i32) {
    %c0_i32 = arith.constant 0 : i32
    %c0_i32_0 = arith.constant 0 : i32
    return %c0_i32, %arg0 : i32, i32
  }
  func.func @transform_6(%arg0: i32, %arg1: i32) -> (i32, i32, i32) {
    %c0_i32 = arith.constant 0 : i32
    %c0_i32_0 = arith.constant 0 : i32
    return %arg1, %c0_i32, %arg0 : i32, i32, i32
  }
}

</mosaic_0001>

<llo_original>
// kernel: residual_block.3
$region0: #{residual_block.3}
  #allocation0 [shape = 'u32[]', space=smem, size = 0x4, offset = 0x4, fixed_abs, tag = 'smem constant byte address 0x4 - core index']
  #allocation1 [shape = 'u32[144,128]{1,0:T(1,128)}', space=vmem, size = 0x12000, scoped, tag = 'internal scratch']
  #allocation2 [shape = 'f32[64,128]{1,0:T(8,128)}', space=vmem, size = 0x8000, scoped, tag = 'scratch operand']
  %s0 = inlined_call_operand.vmem [shape: bf16[2,1,10,10,128], index: 0, kind: input, shape index: {}]
  %s1 = inlined_call_operand.vmem [shape: bf16[9,128,128], index: 1, kind: input, shape index: {}]
  %s2 = inlined_call_operand.vmem [shape: f32[1,128], index: 2, kind: input, shape index: {}]
  %s3 = inlined_call_operand.vmem [shape: bf16[2,4,9,9,128], index: 3, kind: input, shape index: {}]
  %s4 = inlined_call_operand.vmem [shape: bf16[1,128,128], index: 4, kind: input, shape index: {}]
  %s5 = inlined_call_operand.vmem [shape: f32[1,128], index: 5, kind: input, shape index: {}]
  %s6 = inlined_call_operand.vmem [shape: f32[2,64,128], index: 6, kind: output, shape index: {}]
  %s7 = sld [smem:[#allocation0]]
  $region57: #{residual_block.3} parent=0
    _
  %s9 = ssub.s32 1, %s7
  %s10 = scalar_select 0, %s9, %s7
  loop: start=0, step=1, limit=4
  $region2: #{residual_block.3} parent=0 // loop_pre_header
    _
  $region3: #{residual_block.3} parent=0 // loop_header
    %s12 = sphi 0, %s16
    %p13 = scmp.ge.s32.totalorder %s12, 4
    %s19 = sphi 0, %s31
    %s20 = sphi 0, %s27
    %s21 = sphi 0, %s19
    %s22 = sphi 0, %s20
    %s23 = sphi 0, %s21
    %s24 = sphi 0, %s22
    %s34 = sphi 0, %s36
    %s37 = sphi 0, %s34
    %s38 = sphi 0, %s37
    %s54 = sphi 0, %s38
    %s60 = sphi 0, %s62
    %s63 = sphi 0, %s60
    %s64 = sphi 0, %s63
    %s80 = sphi 0, %s64
    %s86 = sphi 0, %s88
    %s89 = sphi 0, %s86
    %s90 = sphi 0, %s89
    %s106 = sphi 0, %s90
    %s112 = sphi 0, %s114
    %s115 = sphi 0, %s112
    %s116 = sphi 0, %s115
    %s132 = sphi 0, %s116
    %s138 = sphi 0, %s140
    %s141 = sphi 0, %s138
    %s142 = sphi 0, %s141
    %s158 = sphi 0, %s142
    %s164 = sphi 0, %s166
    %s167 = sphi 0, %s164
    %s168 = sphi 0, %s167
    %s184 = sphi 0, %s168
    %s192 = sphi 0, %s194
    %s195 = sphi 0, %s192
    %s196 = sphi 0, %s195
    %s212 = sphi 0, %s196
  $region4: #{residual_block.3} parent=0 // loop_header_branch
    %15 = sbr.rel (%p13) target = $region8
  $region5: #{residual_block.3} parent=0 // loop_body
    %s17 = ssub.s32 %s12, 1
    %s18 = ssub.s32 %s12, 2
    %s25 = sadd.s32 1, %s20
    %p26 = scmp.ge.s32.totalorder %s25, 2
    %s27 = scalar_select %p26, 0, %s25
    %s28 = sadd.s32 1, %s19
    %s29 = scalar_select %p26, %s28, %s19
    %p30 = scmp.ge.s32.totalorder %s29, 1
    %s31 = scalar_select %p30, 0, %s29
    %s32 = ssub.s32 %s20, %s27
    %p33 = scmp.eq.s32.totalorder %s32, 0
    %s35 = sadd.s32 %s34, 1
    %s36 = scalar_select %p33, %s34, %s35
    %p39 = pneg %p33
    %p40 = scmp.eq.s32.totalorder %s12, 1
    %p41 = por %p39, %p40
    %p42 = scmp.ne.s32.totalorder %s34, %s37
    %p43 = scmp.eq.s32.totalorder %s12, 0
    %p44 = por %p42, %p43
    %p45 = scmp.ne.s32.totalorder %s34, %s37
    %p46 = scmp.eq.s32.totalorder %s17, 1
    %p47 = por %p45, %p46
    %p48 = scmp.ne.s32.totalorder %s37, %s38
    %p49 = scmp.eq.s32.totalorder %s17, 0
    %p50 = por %p48, %p49
    %p51 = scmp.ne.s32.totalorder %s37, %s38
    %p52 = scmp.eq.s32.totalorder %s18, 1
    %p53 = por %p51, %p52
    %p55 = scmp.ne.s32.totalorder %s38, %s54
    %p56 = scmp.eq.s32.totalorder %s18, 0
    %p57 = por %p55, %p56
    %s58 = ssub.s32 %s19, %s31
    %p59 = scmp.eq.s32.totalorder %s58, 0
    %s61 = sadd.s32 %s60, 1
    %s62 = scalar_select %p59, %s60, %s61
    %p65 = pneg %p59
    %p66 = scmp.eq.s32.totalorder %s12, 1
    %p67 = por %p65, %p66
    %p68 = scmp.ne.s32.totalorder %s60, %s63
    %p69 = scmp.eq.s32.totalorder %s12, 0
    %p70 = por %p68, %p69
    %p71 = scmp.ne.s32.totalorder %s60, %s63
    %p72 = scmp.eq.s32.totalorder %s17, 1
    %p73 = por %p71, %p72
    %p74 = scmp.ne.s32.totalorder %s63, %s64
    %p75 = scmp.eq.s32.totalorder %s17, 0
    %p76 = por %p74, %p75
    %p77 = scmp.ne.s32.totalorder %s63, %s64
    %p78 = scmp.eq.s32.totalorder %s18, 1
    %p79 = por %p77, %p78
    %p81 = scmp.ne.s32.totalorder %s64, %s80
    %p82 = scmp.eq.s32.totalorder %s18, 0
    %p83 = por %p81, %p82
    %s84 = ssub.s32 %s19, %s31
    %p85 = scmp.eq.s32.totalorder %s84, 0
    %s87 = sadd.s32 %s86, 1
    %s88 = scalar_select %p85, %s86, %s87
    %p91 = pneg %p85
    %p92 = scmp.eq.s32.totalorder %s12, 1
    %p93 = por %p91, %p92
    %p94 = scmp.ne.s32.totalorder %s86, %s89
    %p95 = scmp.eq.s32.totalorder %s12, 0
    %p96 = por %p94, %p95
    %p97 = scmp.ne.s32.totalorder %s86, %s89
    %p98 = scmp.eq.s32.totalorder %s17, 1
    %p99 = por %p97, %p98
    %p100 = scmp.ne.s32.totalorder %s89, %s90
    %p101 = scmp.eq.s32.totalorder %s17, 0
    %p102 = por %p100, %p101
    %p103 = scmp.ne.s32.totalorder %s89, %s90
    %p104 = scmp.eq.s32.totalorder %s18, 1
    %p105 = por %p103, %p104
    %p107 = scmp.ne.s32.totalorder %s90, %s106
    %p108 = scmp.eq.s32.totalorder %s18, 0
    %p109 = por %p107, %p108
    %s110 = ssub.s32 %s20, %s27
    %p111 = scmp.eq.s32.totalorder %s110, 0
    %s113 = sadd.s32 %s112, 1
    %s114 = scalar_select %p111, %s112, %s113
    %p117 = pneg %p111
    %p118 = scmp.eq.s32.totalorder %s12, 1
    %p119 = por %p117, %p118
    %p120 = scmp.ne.s32.totalorder %s112, %s115
    %p121 = scmp.eq.s32.totalorder %s12, 0
    %p122 = por %p120, %p121
    %p123 = scmp.ne.s32.totalorder %s112, %s115
    %p124 = scmp.eq.s32.totalorder %s17, 1
    %p125 = por %p123, %p124
    %p126 = scmp.ne.s32.totalorder %s115, %s116
    %p127 = scmp.eq.s32.totalorder %s17, 0
    %p128 = por %p126, %p127
    %p129 = scmp.ne.s32.totalorder %s115, %s116
    %p130 = scmp.eq.s32.totalorder %s18, 1
    %p131 = por %p129, %p130
    %p133 = scmp.ne.s32.totalorder %s116, %s132
    %p134 = scmp.eq.s32.totalorder %s18, 0
    %p135 = por %p133, %p134
    %s136 = ssub.s32 %s19, %s31
    %p137 = scmp.eq.s32.totalorder %s136, 0
    %s139 = sadd.s32 %s138, 1
    %s140 = scalar_select %p137, %s138, %s139
    %p143 = pneg %p137
    %p144 = scmp.eq.s32.totalorder %s12, 1
    %p145 = por %p143, %p144
    %p146 = scmp.ne.s32.totalorder %s138, %s141
    %p147 = scmp.eq.s32.totalorder %s12, 0
    %p148 = por %p146, %p147
    %p149 = scmp.ne.s32.totalorder %s138, %s141
    %p150 = scmp.eq.s32.totalorder %s17, 1
    %p151 = por %p149, %p150
    %p152 = scmp.ne.s32.totalorder %s141, %s142
    %p153 = scmp.eq.s32.totalorder %s17, 0
    %p154 = por %p152, %p153
    %p155 = scmp.ne.s32.totalorder %s141, %s142
    %p156 = scmp.eq.s32.totalorder %s18, 1
    %p157 = por %p155, %p156
    %p159 = scmp.ne.s32.totalorder %s142, %s158
    %p160 = scmp.eq.s32.totalorder %s18, 0
    %p161 = por %p159, %p160
    %s162 = ssub.s32 %s19, %s31
    %p163 = scmp.eq.s32.totalorder %s162, 0
    %s165 = sadd.s32 %s164, 1
    %s166 = scalar_select %p163, %s164, %s165
    %p169 = pneg %p163
    %p170 = scmp.eq.s32.totalorder %s12, 1
    %p171 = por %p169, %p170
    %p172 = scmp.ne.s32.totalorder %s164, %s167
    %p173 = scmp.eq.s32.totalorder %s12, 0
    %p174 = por %p172, %p173
    %p175 = scmp.ne.s32.totalorder %s164, %s167
    %p176 = scmp.eq.s32.totalorder %s17, 1
    %p177 = por %p175, %p176
    %p178 = scmp.ne.s32.totalorder %s167, %s168
    %p179 = scmp.eq.s32.totalorder %s17, 0
    %p180 = por %p178, %p179
    %p181 = scmp.ne.s32.totalorder %s167, %s168
    %p182 = scmp.eq.s32.totalorder %s18, 1
    %p183 = por %p181, %p182
    %p185 = scmp.ne.s32.totalorder %s168, %s184
    %p186 = scmp.eq.s32.totalorder %s18, 0
    %p187 = por %p185, %p186
    %s188 = ssub.s32 %s20, %s27
    %s189 = ssub.s32 %s19, %s31
    %s190 = sor.u32 %s188, %s189
    %p191 = scmp.eq.s32.totalorder %s190, 0
    %s193 = sadd.s32 %s192, 1
    %s194 = scalar_select %p191, %s192, %s193
    %p197 = pneg %p191
    %p198 = scmp.eq.s32.totalorder %s12, 1
    %p199 = por %p197, %p198
    %p200 = scmp.ne.s32.totalorder %s192, %s195
    %p201 = scmp.eq.s32.totalorder %s12, 0
    %p202 = por %p200, %p201
    %p203 = scmp.ne.s32.totalorder %s192, %s195
    %p204 = scmp.eq.s32.totalorder %s17, 1
    %p205 = por %p203, %p204
    %p206 = scmp.ne.s32.totalorder %s195, %s196
    %p207 = scmp.eq.s32.totalorder %s17, 0
    %p208 = por %p206, %p207
    %p209 = scmp.ne.s32.totalorder %s195, %s196
    %p210 = scmp.eq.s32.totalorder %s18, 1
    %p211 = por %p209, %p210
    %p213 = scmp.ne.s32.totalorder %s196, %s212
    %p214 = scmp.eq.s32.totalorder %s18, 0
    %p215 = por %p213, %p214
    %p216 = scmp.le.s32.totalorder 1, %s12
    %p217 = scmp.lt.s32.totalorder %s12, 3
    %p218 = pnand %p216, %p217
    %p219 = pneg %p218
    // Predicated region
    $region9: #{residual_block.3} parent=5 // pred_check
      _
    $region10: #{residual_block.3} parent=5 // pred_check_branch
      %221 = sbr.rel (%p218) target = $region12
    $region11: #{residual_block.3} parent=5 // pred_region
      %s222 = ssub.s32 %s12, 1
      // Predicated region
      $region13: #{residual_block.3} parent=11 // pred_check
        %p223 = pneg %p76
      $region14: #{residual_block.3} parent=11 // pred_check_branch
        %225 = sbr.rel (%p223) target = $region16
      $region15: #{residual_block.3} parent=11 // pred_region
        %p226 = scmp.lt.s32.totalorder %s21, 0
        %s227 = scalar_select %p226, %s21, 0
        %s228 = smul.addr %s227, 4
        %s229 = scalar_lea.vmem %s1, %s228
      $region16: #{residual_block.3} parent=11 // pred_fallthru
        _
      // Predicated region
      $region17: #{residual_block.3} parent=11 // pred_check
        %p230 = pneg %p102
      $region18: #{residual_block.3} parent=11 // pred_check_branch
        %232 = sbr.rel (%p230) target = $region20
      $region19: #{residual_block.3} parent=11 // pred_region
        %p233 = scmp.lt.s32.totalorder %s21, 0
        %s234 = scalar_select %p233, %s21, 0
        %s235 = scalar_lea.vmem %s2, %s234
      $region20: #{residual_block.3} parent=11 // pred_fallthru
        _
      // Predicated region
      $region21: #{residual_block.3} parent=11 // pred_check
        %p236 = pneg %p154
      $region22: #{residual_block.3} parent=11 // pred_check_branch
        %238 = sbr.rel (%p236) target = $region24
      $region23: #{residual_block.3} parent=11 // pred_region
        %p239 = scmp.lt.s32.totalorder %s21, 0
        %s240 = scalar_select %p239, %s21, 0
        %s241 = smul.addr %s240, 4
        %s242 = scalar_lea.vmem %s4, %s241
      $region24: #{residual_block.3} parent=11 // pred_fallthru
        _
      // Predicated region
      $region25: #{residual_block.3} parent=11 // pred_check
        %p243 = pneg %p180
      $region26: #{residual_block.3} parent=11 // pred_check_branch
        %245 = sbr.rel (%p243) target = $region28
      $region27: #{residual_block.3} parent=11 // pred_region
        %p246 = scmp.lt.s32.totalorder %s21, 0
        %s247 = scalar_select %p246, %s21, 0
        %s248 = scalar_lea.vmem %s5, %s247
      $region28: #{residual_block.3} parent=11 // pred_fallthru
        _
    $region12: #{residual_block.3} parent=5 // pred_fallthru
      _
    %p249 = scmp.lt.s32.totalorder %s12, 2
    // Predicated region
    $region29: #{residual_block.3} parent=5 // pred_check
      %p250 = pneg %p249
    $region30: #{residual_block.3} parent=5 // pred_check_branch
      %252 = sbr.rel (%p250) target = $region32
    $region31: #{residual_block.3} parent=5 // pred_region
      // Predicated region
      $region33: #{residual_block.3} parent=31 // pred_check
        %p253 = pneg %p44
      $region34: #{residual_block.3} parent=31 // pred_check_branch
        %255 = sbr.rel (%p253) target = $region36
      $region35: #{residual_block.3} parent=31 // pred_region
        %p256 = scmp.lt.s32.totalorder %s20, 1
        %s257 = scalar_select %p256, %s20, 1
        %s258 = smul.addr %s257, 20
        %s259 = smul.addr %s258, 4
        %s260 = scalar_lea.vmem %s0, %s259
      $region36: #{residual_block.3} parent=31 // pred_fallthru
        _
      // Predicated region
      $region37: #{residual_block.3} parent=31 // pred_check
        %p261 = pneg %p122
      $region38: #{residual_block.3} parent=31 // pred_check_branch
        %263 = sbr.rel (%p261) target = $region40
      $region39: #{residual_block.3} parent=31 // pred_region
        %p264 = scmp.lt.s32.totalorder %s20, 1
        %s265 = scalar_select %p264, %s20, 1
        %s266 = smul.addr %s265, 72
        %s267 = sadd.s32 54, %s266
        %s268 = smul.addr %s267, 4
        %s269 = scalar_lea.vmem %s3, %s268
      $region40: #{residual_block.3} parent=31 // pred_fallthru
        _
    $region32: #{residual_block.3} parent=5 // pred_fallthru
      _
    %p270 = scmp.le.s32.totalorder 1, %s12
    %p271 = scmp.lt.s32.totalorder %s12, 3
    %p272 = pnand %p270, %p271
    %p273 = pneg %p272
    // Predicated region
    $region41: #{residual_block.3} parent=5 // pred_check
      _
    $region42: #{residual_block.3} parent=5 // pred_check_branch
      %275 = sbr.rel (%p272) target = $region44
    $region43: #{residual_block.3} parent=5 // pred_region
      %s276 = ssub.s32 %s12, 1
      %p277 = scmp.lt.s32.totalorder %s22, 1
      %s278 = scalar_select %p277, %s22, 1
      %s279 = smul.addr %s278, 20
      %s280 = smul.addr %s279, 4
      %s281 = scalar_lea.vmem %s0, %s280
      %p282 = pneg %p50
      %p283 = pneg %p47
      %p284 = scmp.lt.s32.totalorder %s21, 0
      %s285 = scalar_select %p284, %s21, 0
      %s286 = smul.addr %s285, 4
      %s287 = scalar_lea.vmem %s1, %s286
      %p288 = pneg %p76
      %p289 = pneg %p73
      %p290 = scmp.lt.s32.totalorder %s21, 0
      %s291 = scalar_select %p290, %s21, 0
      %s292 = scalar_lea.vmem %s2, %s291
      %p293 = pneg %p102
      %p294 = pneg %p99
      %p295 = scmp.lt.s32.totalorder %s22, 1
      %s296 = scalar_select %p295, %s22, 1
      %s297 = smul.addr %s296, 72
      %s298 = sadd.s32 54, %s297
      %s299 = smul.addr %s298, 4
      %s300 = scalar_lea.vmem %s3, %s299
      %p301 = pneg %p128
      %p302 = pneg %p125
      %p303 = scmp.lt.s32.totalorder %s21, 0
      %s304 = scalar_select %p303, %s21, 0
      %s305 = smul.addr %s304, 4
      %s306 = scalar_lea.vmem %s4, %s305
      %p307 = pneg %p154
      %p308 = pneg %p151
      %p309 = scmp.lt.s32.totalorder %s21, 0
      %s310 = scalar_select %p309, %s21, 0
      %s311 = scalar_lea.vmem %s5, %s310
      %p312 = pneg %p180
      %p313 = pneg %p177
      %p314 = pneg %p208
      %p315 = pneg %p205
      %p316 = scmp.lt.s32.totalorder %s22, 1
      %s317 = scalar_select %p316, %s22, 1
      %p318 = scmp.lt.s32.totalorder %s21, 0
      %s319 = scalar_select %p318, %s21, 0
      %s320 = smul.addr %s317, 8
      %s321 = sadd.s32 %s319, %s320
      %s322 = smul.addr %s321, 8
      %s323 = scalar_lea.vmem %s6, %s322
      %p324 = scmp.lt.s32.totalorder %s22, 1
      %s325 = scalar_select %p324, %s22, 1
      %s326 = smul.addr %s325, 20
      %s327 = smul.addr %s326, 4
      %s328 = scalar_lea.vmem %s0, %s327
      %p329 = scmp.lt.s32.totalorder %s21, 0
      %s330 = scalar_select %p329, %s21, 0
      %s331 = smul.addr %s330, 4
      %s332 = scalar_lea.vmem %s1, %s331
      %p333 = scmp.lt.s32.totalorder %s21, 0
      %s334 = scalar_select %p333, %s21, 0
      %s335 = scalar_lea.vmem %s2, %s334
      %p336 = scmp.lt.s32.totalorder %s22, 1
      %s337 = scalar_select %p336, %s22, 1
      %s338 = smul.addr %s337, 72
      %s339 = sadd.s32 54, %s338
      %s340 = smul.addr %s339, 4
      %s341 = scalar_lea.vmem %s3, %s340
      %p342 = scmp.lt.s32.totalorder %s21, 0
      %s343 = scalar_select %p342, %s21, 0
      %s344 = smul.addr %s343, 4
      %s345 = scalar_lea.vmem %s4, %s344
      %p346 = scmp.lt.s32.totalorder %s21, 0
      %s347 = scalar_select %p346, %s21, 0
      %s348 = scalar_lea.vmem %s5, %s347
      %p349 = scmp.lt.s32.totalorder %s22, 1
      %s350 = scalar_select %p349, %s22, 1
      %p351 = scmp.lt.s32.totalorder %s21, 0
      %s352 = scalar_select %p351, %s21, 0
      %s353 = smul.addr %s350, 8
      %s354 = sadd.s32 %s352, %s353
      %s355 = smul.addr %s354, 8
      %s356 = scalar_lea.vmem %s6, %s355
      %358 = vst [vmem:[#allocation2] sm:$0xff] 0.0
      %359 = vst [vmem:[#allocation2 + $0x8] sm:$0xff] 0.0
      %360 = vst [vmem:[#allocation2 + $0x10] sm:$0xff] 0.0
      %361 = vst [vmem:[#allocation2 + $0x18] sm:$0xff] 0.0
      %362 = vst [vmem:[#allocation2 + $0x20] sm:$0xff] 0.0
      %363 = vst [vmem:[#allocation2 + $0x28] sm:$0xff] 0.0
      %364 = vst [vmem:[#allocation2 + $0x30] sm:$0xff] 0.0
      %365 = vst [vmem:[#allocation2 + $0x38] sm:$0xff] 0.0
      %v366 = vld [vmem:[%s328] sm:$0xf]
      %v367 = vld [vmem:[%s328 + $0x8] sm:$0xf]
      %v368 = vld [vmem:[%s328 + $0x10] sm:$0xf]
      %v369 = vld [vmem:[%s328 + $0x18] sm:$0xf]
      %v370 = vld [vmem:[%s328 + $0x20] sm:$0xf]
      %v371 = vld [vmem:[%s328 + $0x28] sm:$0xf]
      %v372 = vld [vmem:[%s328 + $0x30] sm:$0xf]
      %v373 = vld [vmem:[%s328 + $0x38] sm:$0xf]
      %v374 = vld [vmem:[#allocation2] sm:$0xff]
      %v375 = vld [vmem:[#allocation2 + $0x8] sm:$0xff]
      %v376 = vld [vmem:[#allocation2 + $0x10] sm:$0xff]
      %v377 = vld [vmem:[#allocation2 + $0x18] sm:$0xff]
      %v378 = vld [vmem:[#allocation2 + $0x20] sm:$0xff]
      %v379 = vld [vmem:[#allocation2 + $0x28] sm:$0xff]
      %v380 = vld [vmem:[#allocation2 + $0x30] sm:$0xff]
      %v381 = vld [vmem:[#allocation2 + $0x38] sm:$0xff]
      %v382 = vld [vmem:[%s332] sm:$0xf]
      %v383 = vld [vmem:[%s332 + $0x4] sm:$0xf]
      %v384 = vld [vmem:[%s332 + $0x8] sm:$0xf]
      %v385 = vld [vmem:[%s332 + $0xc] sm:$0xf]
      %v386 = vld [vmem:[%s332 + $0x10] sm:$0xf]
      %v387 = vld [vmem:[%s332 + $0x14] sm:$0xf]
      %v388 = vld [vmem:[%s332 + $0x18] sm:$0xf]
      %v389 = vld [vmem:[%s332 + $0x1c] sm:$0xf]
      %v390 = vld [vmem:[%s332 + $0x20] sm:$0xf]
      %v391 = vld [vmem:[%s332 + $0x24] sm:$0xf]
      %v392 = vld [vmem:[%s332 + $0x28] sm:$0xf]
      %v393 = vld [vmem:[%s332 + $0x2c] sm:$0xf]
      %v394 = vld [vmem:[%s332 + $0x30] sm:$0xf]
      %v395 = vld [vmem:[%s332 + $0x34] sm:$0xf]
      %v396 = vld [vmem:[%s332 + $0x38] sm:$0xf]
      %v397 = vld [vmem:[%s332 + $0x3c] sm:$0xf]
      %v406 = vunpack.c.l.b16 %v366
      %v407 = vunpack.c.l.b16 %v367
      %v408 = vunpack.c.l.b16 %v368
      %v409 = vunpack.c.l.b16 %v369
      %v410 = vunpack.c.l.b16 %v370
      %v411 = vunpack.c.l.b16 %v371
      %v412 = vunpack.c.l.b16 %v372
      %v413 = vunpack.c.l.b16 %v373
      %v414 = vpack.c.b16 %v407, %v406
      %v415 = vpack.c.b16 %v409, %v408
      %v416 = vpack.c.b16 %v411, %v410
      %v417 = vpack.c.b16 %v413, %v412
      %v438 = vunpack.c.l.b16 %v382
      %v439 = vunpack.c.l.b16 %v383
      %v440 = vunpack.c.l.b16 %v384
      %v441 = vunpack.c.l.b16 %v385
      %v442 = vunpack.c.l.b16 %v386
      %v443 = vunpack.c.l.b16 %v387
      %v444 = vunpack.c.l.b16 %v388
      %v445 = vunpack.c.l.b16 %v389
      %v446 = vunpack.c.l.b16 %v390
      %v447 = vunpack.c.l.b16 %v391
      %v448 = vunpack.c.l.b16 %v392
      %v449 = vunpack.c.l.b16 %v393
      %v450 = vunpack.c.l.b16 %v394
      %v451 = vunpack.c.l.b16 %v395
      %v452 = vunpack.c.l.b16 %v396
      %v453 = vunpack.c.l.b16 %v397
      %v454 = vpack.c.b16 %v439, %v438
      %v455 = vpack.c.b16 %v441, %v440
      %v456 = vpack.c.b16 %v443, %v442
      %v457 = vpack.c.b16 %v445, %v444
      %v458 = vpack.c.b16 %v447, %v446
      %v459 = vpack.c.b16 %v449, %v448
      %v460 = vpack.c.b16 %v451, %v450
      %v461 = vpack.c.b16 %v453, %v452
      %470 = vmatprep.subr.bf16.mxu0 0
      %471 = vmatpush1.bf16.msra.mxu0 %v454
      %472 = vmatprep.subr.bf16.mxu0 0
      %473 = vmatpush1.bf16.msra.mxu0 %v455
      %474 = vmatprep.subr.bf16.mxu0 0
      %475 = vmatpush1.bf16.msra.mxu0 %v456
      %476 = vmatprep.subr.bf16.mxu0 0
      %477 = vmatpush1.bf16.msra.mxu0 %v457
      %478 = vmatprep.subr.bf16.mxu0 0
      %479 = vmatpush1.bf16.msra.mxu0 %v458
      %480 = vmatprep.subr.bf16.mxu0 0
      %481 = vmatpush1.bf16.msra.mxu0 %v459
      %482 = vmatprep.subr.bf16.mxu0 0
      %483 = vmatpush1.bf16.msra.mxu0 %v460
      %484 = vmatprep.subr.bf16.mxu0 0
      %485 = vmatpush1.bf16.msra.mxu0 %v461
      %486 = vmatprep.subr.bf16.mxu0 0
      %487 = vmatpush1.bf16.msra.mxu0 0
      %488 = vmatprep.subr.bf16.mxu0 0
      %489 = vmatpush1.bf16.msra.mxu0 0
      %490 = vmatprep.subr.bf16.mxu0 0
      %491 = vmatpush1.bf16.msra.mxu0 0
      %492 = vmatprep.subr.bf16.mxu0 0
      %493 = vmatpush1.bf16.msra.mxu0 0
      %494 = vmatprep.subr.bf16.mxu0 0
      %495 = vmatpush1.bf16.msra.mxu0 0
      %496 = vmatprep.subr.bf16.mxu0 0
      %497 = vmatpush1.bf16.msra.mxu0 0
      %498 = vmatprep.subr.bf16.mxu0 0
      %499 = vmatpush1.bf16.msra.mxu0 0
      %500 = vmatprep.subr.bf16.mxu0 0
      %501 = vmatpush1.bf16.msra.mxu0 0
      %502 = vmatprep.mubr.bf16.mxu0 0
      %503 = vmatmul.mubr.bf16.gmra.mrb[0].mxu0 %v414
      %v504 = vpop.f32.mrb[0].mxu0
      %v505 = vadd.f32 0.0, %v504
      %v506 = vpop.f32.mrb[0].mxu0
      %v507 = vpop.f32.mrb[0].mxu0
      %v508 = vadd.f32 0.0, %v507
      %v509 = vpop.f32.mrb[0].mxu0
      %510 = vmatprep.mubr.bf16.mxu0 0
      %511 = vmatmul.mubr.bf16.gmra.mrb[0].mxu0 %v415
      %v512 = vpop.f32.mrb[0].mxu0
      %v513 = vadd.f32 0.0, %v512
      %v514 = vpop.f32.mrb[0].mxu0
      %v515 = vpop.f32.mrb[0].mxu0
      %v516 = vadd.f32 0.0, %v515
      %v517 = vpop.f32.mrb[0].mxu0
      %518 = vmatprep.mubr.bf16.mxu0 0
      %519 = vmatmul.mubr.bf16.gmra.mrb[0].mxu0 %v416
      %v520 = vpop.f32.mrb[0].mxu0
      %v521 = vadd.f32 0.0, %v520
      %v522 = vpop.f32.mrb[0].mxu0
      %v523 = vpop.f32.mrb[0].mxu0
      %v524 = vadd.f32 0.0, %v523
      %v525 = vpop.f32.mrb[0].mxu0
      %526 = vmatprep.mubr.bf16.mxu0 0
      %527 = vmatmul.mubr.bf16.gmra.mrb[0].mxu0 %v417
      %v528 = vpop.f32.mrb[0].mxu0
      %v529 = vadd.f32 0.0, %v528
      %v530 = vpop.f32.mrb[0].mxu0
      %v531 = vpop.f32.mrb[0].mxu0
      %v532 = vadd.f32 0.0, %v531
      %v533 = vpop.f32.mrb[0].mxu0
      %534 = vdwg.mxu0
      %v535 = vadd.f32 %v374, %v505
      %v536 = vadd.f32 %v375, %v508
      %v537 = vadd.f32 %v376, %v513
      %v538 = vadd.f32 %v377, %v516
      %v539 = vadd.f32 %v378, %v521
      %v540 = vadd.f32 %v379, %v524
      %v541 = vadd.f32 %v380, %v529
      %v542 = vadd.f32 %v381, %v532
      %543 = vst [vmem:[#allocation2] sm:$0xff] %v535
      %544 = vst [vmem:[#allocation2 + $0x8] sm:$0xff] %v536
      %545 = vst [vmem:[#allocation2 + $0x10] sm:$0xff] %v537
      %546 = vst [vmem:[#allocation2 + $0x18] sm:$0xff] %v538
      %547 = vst [vmem:[#allocation2 + $0x20] sm:$0xff] %v539
      %548 = vst [vmem:[#allocation2 + $0x28] sm:$0xff] %v540
      %549 = vst [vmem:[#allocation2 + $0x30] sm:$0xff] %v541
      %550 = vst [vmem:[#allocation2 + $0x38] sm:$0xff] %v542
      %v551 = vld [vmem:[%s328] sm:$0xf]
      %v552 = vld [vmem:[%s328 + $0x4] sm:$0x1]
      %v553 = vld [vmem:[%s328 + $0x8] sm:$0xf]
      %v554 = vld [vmem:[%s328 + $0xc] sm:$0x1]
      %v555 = vld [vmem:[%s328 + $0x10] sm:$0xf]
      %v556 = vld [vmem:[%s328 + $0x14] sm:$0x1]
      %v557 = vld [vmem:[%s328 + $0x18] sm:$0xf]
      %v558 = vld [vmem:[%s328 + $0x1c] sm:$0x1]
      %v559 = vld [vmem:[%s328 + $0x20] sm:$0xf]
      %v560 = vld [vmem:[%s328 + $0x24] sm:$0x1]
      %v561 = vld [vmem:[%s328 + $0x28] sm:$0xf]
      %v562 = vld [vmem:[%s328 + $0x2c] sm:$0x1]
      %v563 = vld [vmem:[%s328 + $0x30] sm:$0xf]
      %v564 = vld [vmem:[%s328 + $0x34] sm:$0x1]
      %v565 = vld [vmem:[%s328 + $0x38] sm:$0xf]
      %v566 = vld [vmem:[%s328 + $0x3c] sm:$0x1]
      %v567 = vld [vmem:[#allocation2] sm:$0xff]
      %v568 = vld [vmem:[#allocation2 + $0x8] sm:$0xff]
      %v569 = vld [vmem:[#allocation2 + $0x10] sm:$0xff]
      %v570 = vld [vmem:[#allocation2 + $0x18] sm:$0xff]
      %v571 = vld [vmem:[#allocation2 + $0x20] sm:$0xff]
      %v572 = vld [vmem:[#allocation2 + $0x28] sm:$0xff]
      %v573 = vld [vmem:[#allocation2 + $0x30] sm:$0xff]
      %v574 = vld [vmem:[#allocation2 + $0x38] sm:$0xff]
      %vm575 = vsmask.f32 3328
      %vm576 = vsmask.f32 7440
      %vm577 = vmor %vm575, %vm576
      %v579 = vshrl.u32 %v551, 16
      %v581 = vrot.slane %v579, 4
      %v582 = vshll.u32 %v551, 16
      %v584 = vrot.slane %v582, 5
      %v585 = vor.u32 %v581, %v584
      %v586 = vrot.slane %v585, 4
      %v588 = vshll.u32 %v552, 16
      %v590 = vrot.slane %v588, 5
      %v591 = vsel %vm577, %v586, %v590
      %v593 = vshrl.u32 %v553, 16
      %v595 = vrot.slane %v593, 4
      %v596 = vshll.u32 %v553, 16
      %v598 = vrot.slane %v596, 5
      %v599 = vor.u32 %v595, %v598
      %v600 = vrot.slane %v599, 4
      %v602 = vshll.u32 %v554, 16
      %v604 = vrot.slane %v602, 5
      %v605 = vsel %vm577, %v600, %v604
      %v607 = vshrl.u32 %v555, 16
      %v609 = vrot.slane %v607, 4
      %v610 = vshll.u32 %v555, 16
      %v612 = vrot.slane %v610, 5
      %v613 = vor.u32 %v609, %v612
      %v614 = vrot.slane %v613, 4
      %v616 = vshll.u32 %v556, 16
      %v618 = vrot.slane %v616, 5
      %v619 = vsel %vm577, %v614, %v618
      %v621 = vshrl.u32 %v557, 16
      %v623 = vrot.slane %v621, 4
      %v624 = vshll.u32 %v557, 16
      %v626 = vrot.slane %v624, 5
      %v627 = vor.u32 %v623, %v626
      %v628 = vrot.slane %v627, 4
      %v630 = vshll.u32 %v558, 16
      %v632 = vrot.slane %v630, 5
      %v633 = vsel %vm577, %v628, %v632
      %v635 = vshrl.u32 %v559, 16
      %v637 = vrot.slane %v635, 4
      %v638 = vshll.u32 %v559, 16
      %v640 = vrot.slane %v638, 5
      %v641 = vor.u32 %v637, %v640
      %v642 = vrot.slane %v641, 4
      %v644 = vshll.u32 %v560, 16
      %v646 = vrot.slane %v644, 5
      %v647 = vsel %vm577, %v642, %v646
      %v649 = vshrl.u32 %v561, 16
      %v651 = vrot.slane %v649, 4
      %v652 = vshll.u32 %v561, 16
      %v654 = vrot.slane %v652, 5
      %v655 = vor.u32 %v651, %v654
      %v656 = vrot.slane %v655, 4
      %v658 = vshll.u32 %v562, 16
      %v660 = vrot.slane %v658, 5
      %v661 = vsel %vm577, %v656, %v660
      %v663 = vshrl.u32 %v563, 16
      %v665 = vrot.slane %v663, 4
      %v666 = vshll.u32 %v563, 16
      %v668 = vrot.slane %v666, 5
      %v669 = vor.u32 %v665, %v668
      %v670 = vrot.slane %v669, 4
      %v672 = vshll.u32 %v564, 16
      %v674 = vrot.slane %v672, 5
      %v675 = vsel %vm577, %v670, %v674
      %v677 = vshrl.u32 %v565, 16
      %v679 = vrot.slane %v677, 4
      %v680 = vshll.u32 %v565, 16
      %v682 = vrot.slane %v680, 5
      %v683 = vor.u32 %v679, %v682
      %v684 = vrot.slane %v683, 4
      %v686 = vshll.u32 %v566, 16
      %v688 = vrot.slane %v686, 5
      %v689 = vsel %vm577, %v684, %v688
      %s690 = scalar_lea.vmem %s332, 64
      %v691 = vld [vmem:[%s690] sm:$0xf]
      %v692 = vld [vmem:[%s690 + $0x4] sm:$0xf]
      %v693 = vld [vmem:[%s690 + $0x8] sm:$0xf]
      %v694 = vld [vmem:[%s690 + $0xc] sm:$0xf]
      %v695 = vld [vmem:[%s690 + $0x10] sm:$0xf]
      %v696 = vld [vmem:[%s690 + $0x14] sm:$0xf]
      %v697 = vld [vmem:[%s690 + $0x18] sm:$0xf]
      %v698 = vld [vmem:[%s690 + $0x1c] sm:$0xf]
      %v699 = vld [vmem:[%s690 + $0x20] sm:$0xf]
      %v700 = vld [vmem:[%s690 + $0x24] sm:$0xf]
      %v701 = vld [vmem:[%s690 + $0x28] sm:$0xf]
      %v702 = vld [vmem:[%s690 + $0x2c] sm:$0xf]
      %v703 = vld [vmem:[%s690 + $0x30] sm:$0xf]
      %v704 = vld [vmem:[%s690 + $0x34] sm:$0xf]
      %v705 = vld [vmem:[%s690 + $0x38] sm:$0xf]
      %v706 = vld [vmem:[%s690 + $0x3c] sm:$0xf]
      %v707 = vunpack.c.l.b16 %v591
      %v708 = vunpack.c.l.b16 %v605
      %v709 = vunpack.c.l.b16 %v619
      %v710 = vunpack.c.l.b16 %v633
      %v711 = vunpack.c.l.b16 %v647
      %v712 = vunpack.c.l.b16 %v661
      %v713 = vunpack.c.l.b16 %v675
      %v714 = vunpack.c.l.b16 %v689
      %v715 = vpack.c.b16 %v708, %v707
      %v716 = vpack.c.b16 %v710, %v709
      %v717 = vpack.c.b16 %v712, %v711
      %v718 = vpack.c.b16 %v714, %v713
      %v739 = vunpack.c.l.b16 %v691
      %v740 = vunpack.c.l.b16 %v692
      %v741 = vunpack.c.l.b16 %v693
      %v742 = vunpack.c.l.b16 %v694
      %v743 = vunpack.c.l.b16 %v695
      %v744 = vunpack.c.l.b16 %v696
      %v745 = vunpack.c.l.b16 %v697
      %v746 = vunpack.c.l.b16 %v698
      %v747 = vunpack.c.l.b16 %v699
      %v748 = vunpack.c.l.b16 %v700
      %v749 = vunpack.c.l.b16 %v701
      %v750 = vunpack.c.l.b16 %v702
      %v751 = vunpack.c.l.b16 %v703
      %v752 = vunpack.c.l.b16 %v704
      %v753 = vunpack.c.l.b16 %v705
      %v754 = vunpack.c.l.b16 %v706
      %v755 = vpack.c.b16 %v740, %v739
      %v756 = vpack.c.b16 %v742, %v741
      %v757 = vpack.c.b16 %v744, %v743
      %v758 = vpack.c.b16 %v746, %v745
      %v759 = vpack.c.b16 %v748, %v747
      %v760 = vpack.c.b16 %v750, %v749
      %v761 = vpack.c.b16 %v752, %v751
      %v762 = vpack.c.b16 %v754, %v753
      %771 = vmatprep.subr.bf16.mxu0 0
      %772 = vmatpush1.bf16.msra.mxu0 %v755
      %773 = vmatprep.subr.bf16.mxu0 0
      %774 = vmatpush1.bf16.msra.mxu0 %v756
      %775 = vmatprep.subr.bf16.mxu0 0
      %776 = vmatpush1.bf16.msra.mxu0 %v757
      %777 = vmatprep.subr.bf16.mxu0 0
      %778 = vmatpush1.bf16.msra.mxu0 %v758
      %779 = vmatprep.subr.bf16.mxu0 0
      %780 = vmatpush1.bf16.msra.mxu0 %v759
      %781 = vmatprep.subr.bf16.mxu0 0
      %782 = vmatpush1.bf16.msra.mxu0 %v760
      %783 = vmatprep.subr.bf16.mxu0 0
      %784 = vmatpush1.bf16.msra.mxu0 %v761
      %785 = vmatprep.subr.bf16.mxu0 0
      %786 = vmatpush1.bf16.msra.mxu0 %v762
      %787 = vmatprep.subr.bf16.mxu0 0
      %788 = vmatpush1.bf16.msra.mxu0 0
      %789 = vmatprep.subr.bf16.mxu0 0
      %790 = vmatpush1.bf16.msra.mxu0 0
      %791 = vmatprep.subr.bf16.mxu0 0
      %792 = vmatpush1.bf16.msra.mxu0 0
      %793 = vmatprep.subr.bf16.mxu0 0
      %794 = vmatpush1.bf16.msra.mxu0 0
      %795 = vmatprep.subr.bf16.mxu0 0
      %796 = vmatpush1.bf16.msra.mxu0 0
      %797 = vmatprep.subr.bf16.mxu0 0
      %798 = vmatpush1.bf16.msra.mxu0 0
      %799 = vmatprep.subr.bf16.mxu0 0
      %800 = vmatpush1.bf16.msra.mxu0 0
      %801 = vmatprep.subr.bf16.mxu0 0
      %802 = vmatpush1.bf16.msra.mxu0 0
      %803 = vmatprep.mubr.bf16.mxu0 0
      %804 = vmatmul.mubr.bf16.gmra.mrb[0].mxu0 %v715
      %v805 = vpop.f32.mrb[0].mxu0
      %v806 = vadd.f32 0.0, %v805
      %v807 = vpop.f32.mrb[0].mxu0
      %v808 = vpop.f32.mrb[0].mxu0
      %v809 = vadd.f32 0.0, %v808
      %v810 = vpop.f32.mrb[0].mxu0
      %811 = vmatprep.mubr.bf16.mxu0 0
      %812 = vmatmul.mubr.bf16.gmra.mrb[0].mxu0 %v716
      %v813 = vpop.f32.mrb[0].mxu0
      %v814 = vadd.f32 0.0, %v813
      %v815 = vpop.f32.mrb[0].mxu0
      %v816 = vpop.f32.mrb[0].mxu0
      %v817 = vadd.f32 0.0, %v816
      %v818 = vpop.f32.mrb[0].mxu0
      %819 = vmatprep.mubr.bf16.mxu0 0
      %820 = vmatmul.mubr.bf16.gmra.mrb[0].mxu0 %v717
      %v821 = vpop.f32.mrb[0].mxu0
      %v822 = vadd.f32 0.0, %v821
      %v823 = vpop.f32.mrb[0].mxu0
      %v824 = vpop.f32.mrb[0].mxu0
      %v825 = vadd.f32 0.0, %v824
      %v826 = vpop.f32.mrb[0].mxu0
      %827 = vmatprep.mubr.bf16.mxu0 0
      %828 = vmatmul.mubr.bf16.gmra.mrb[0].mxu0 %v718
      %v829 = vpop.f32.mrb[0].mxu0
      %v830 = vadd.f32 0.0, %v829
      %v831 = vpop.f32.mrb[0].mxu0
      %v832 = vpop.f32.mrb[0].mxu0
      %v833 = vadd.f32 0.0, %v832
      %v834 = vpop.f32.mrb[0].mxu0
      %835 = vdwg.mxu0
      %v836 = vadd.f32 %v567, %v806
      %v837 = vadd.f32 %v568, %v809
      %v838 = vadd.f32 %v569, %v814
      %v839 = vadd.f32 %v570, %v817
      %v840 = vadd.f32 %v571, %v822
      %v841 = vadd.f32 %v572, %v825
      %v842 = vadd.f32 %v573, %v830
      %v843 = vadd.f32 %v574, %v833
      %844 = vst [vmem:[#allocation2] sm:$0xff] %v836
      %845 = vst [vmem:[#allocation2 + $0x8] sm:$0xff] %v837
      %846 = vst [vmem:[#allocation2 + $0x10] sm:$0xff] %v838
      %847 = vst [vmem:[#allocation2 + $0x18] sm:$0xff] %v839
      %848 = vst [vmem:[#allocation2 + $0x20] sm:$0xff] %v840
      %849 = vst [vmem:[#allocation2 + $0x28] sm:$0xff] %v841
      %850 = vst [vmem:[#allocation2 + $0x30] sm:$0xff] %v842
      %851 = vst [vmem:[#allocation2 + $0x38] sm:$0xff] %v843
      %v852 = vld [vmem:[%s328] sm:$0xe]
      %v853 = vld [vmem:[%s328 + $0x4] sm:$0x1]
      %v854 = vld [vmem:[%s328 + $0x8] sm:$0xe]
      %v855 = vld [vmem:[%s328 + $0xc] sm:$0x1]
      %v856 = vld [vmem:[%s328 + $0x10] sm:$0xe]
      %v857 = vld [vmem:[%s328 + $0x14] sm:$0x1]
      %v858 = vld [vmem:[%s328 + $0x18] sm:$0xe]
      %v859 = vld [vmem:[%s328 + $0x1c] sm:$0x1]
      %v860 = vld [vmem:[%s328 + $0x20] sm:$0xe]
      %v861 = vld [vmem:[%s328 + $0x24] sm:$0x1]
      %v862 = vld [vmem:[%s328 + $0x28] sm:$0xe]
      %v863 = vld [vmem:[%s328 + $0x2c] sm:$0x1]
      %v864 = vld [vmem:[%s328 + $0x30] sm:$0xe]
      %v865 = vld [vmem:[%s328 + $0x34] sm:$0x1]
      %v866 = vld [vmem:[%s328 + $0x38] sm:$0xe]
      %v867 = vld [vmem:[%s328 + $0x3c] sm:$0x1]
      %v868 = vld [vmem:[#allocation2] sm:$0xff]
      %v869 = vld [vmem:[#allocation2 + $0x8] sm:$0xff]
      %v870 = vld [vmem:[#allocation2 + $0x10] sm:$0xff]
      %v871 = vld [vmem:[#allocation2 + $0x18] sm:$0xff]
      %v872 = vld [vmem:[#allocation2 + $0x20] sm:$0xff]
      %v873 = vld [vmem:[#allocation2 + $0x28] sm:$0xff]
      %v874 = vld [vmem:[#allocation2 + $0x30] sm:$0xff]
      %v875 = vld [vmem:[#allocation2 + $0x38] sm:$0xff]
      %vm892 = vcmask 1042432
      %vm893 = vcmask 1046532
      %vm894 = vmor %vm892, %vm893
      %v895 = vrot.slane %v852, 5
      %v896 = vrot.slane %v895, 4
      %v897 = vrot.slane %v853, 5
      %v898 = vsel %vm894, %v896, %v897
      %v899 = vrot.slane %v854, 5
      %v900 = vrot.slane %v899, 4
      %v901 = vrot.slane %v855, 5
      %v902 = vsel %vm894, %v900, %v901
      %v903 = vrot.slane %v856, 5
      %v904 = vrot.slane %v903, 4
      %v905 = vrot.slane %v857, 5
      %v906 = vsel %vm894, %v904, %v905
      %v907 = vrot.slane %v858, 5
      %v908 = vrot.slane %v907, 4
      %v909 = vrot.slane %v859, 5
      %v910 = vsel %vm894, %v908, %v909
      %v911 = vrot.slane %v860, 5
      %v912 = vrot.slane %v911, 4
      %v913 = vrot.slane %v861, 5
      %v914 = vsel %vm894, %v912, %v913
      %v915 = vrot.slane %v862, 5
      %v916 = vrot.slane %v915, 4
      %v917 = vrot.slane %v863, 5
      %v918 = vsel %vm894, %v916, %v917
      %v919 = vrot.slane %v864, 5
      %v920 = vrot.slane %v919, 4
      %v921 = vrot.slane %v865, 5
      %v922 = vsel %vm894, %v920, %v921
      %v923 = vrot.slane %v866, 5
      %v924 = vrot.slane %v923, 4
      %v925 = vrot.slane %v867, 5
      %v926 = vsel %vm894, %v924, %v925
      %s927 = scalar_lea.vmem %s332, 128
      %v928 = vld [vmem:[%s927] sm:$0xf]
      %v929 = vld [vmem:[%s927 + $0x4] sm:$0xf]
      %v930 = vld [vmem:[%s927 + $0x8] sm:$0xf]
      %v931 = vld [vmem:[%s927 + $0xc] sm:$0xf]
      %v932 = vld [vmem:[%s927 + $0x10] sm:$0xf]
      %v933 = vld [vmem:[%s927 + $0x14] sm:$0xf]
      %v934 = vld [vmem:[%s927 + $0x18] sm:$0xf]
      %v935 = vld [vmem:[%s927 + $0x1c] sm:$0xf]
      %v936 = vld [vmem:[%s927 + $0x20] sm:$0xf]
      %v937 = vld [vmem:[%s927 + $0x24] sm:$0xf]
      %v938 = vld [vmem:[%s927 + $0x28] sm:$0xf]
      %v939 = vld [vmem:[%s927 + $0x2c] sm:$0xf]
      %v940 = vld [vmem:[%s927 + $0x30] sm:$0xf]
      %v941 = vld [vmem:[%s927 + $0x34] sm:$0xf]
      %v942 = vld [vmem:[%s927 + $0x38] sm:$0xf]
      %v943 = vld [vmem:[%s927 + $0x3c] sm:$0xf]
      %v944 = vunpack.c.l.b16 %v898
      %v945 = vunpack.c.l.b16 %v902
      %v946 = vunpack.c.l.b16 %v906
      %v947 = vunpack.c.l.b16 %v910
      %v948 = vunpack.c.l.b16 %v914
      %v949 = vunpack.c.l.b16 %v918
      %v950 = vunpack.c.l.b16 %v922
      %v951 = vunpack.c.l.b16 %v926
      %v952 = vpack.c.b16 %v945, %v944
      %v953 = vpack.c.b16 %v947, %v946
      %v954 = vpack.c.b16 %v949, %v948
      %v955 = vpack.c.b16 %v951, %v950
      %v976 = vunpack.c.l.b16 %v928
      %v977 = vunpack.c.l.b16 %v929
      %v978 = vunpack.c.l.b16 %v930
      %v979 = vunpack.c.l.b16 %v931
      %v980 = vunpack.c.l.b16 %v932
      %v981 = vunpack.c.l.b16 %v933
      %v982 = vunpack.c.l.b16 %v934
      %v983 = vunpack.c.l.b16 %v935
      %v984 = vunpack.c.l.b16 %v936
      %v985 = vunpack.c.l.b16 %v937
      %v986 = vunpack.c.l.b16 %v938
      %v987 = vunpack.c.l.b16 %v939
      %v988 = vunpack.c.l.b16 %v940
      %v989 = vunpack.c.l.b16 %v941
      %v990 = vunpack.c.l.b16 %v942
      %v991 = vunpack.c.l.b16 %v943
      %v992 = vpack.c.b16 %v977, %v976
      %v993 = vpack.c.b16 %v979, %v978
      %v994 = vpack.c.b16 %v981, %v980
      %v995 = vpack.c.b16 %v983, %v982
      %v996 = vpack.c.b16 %v985, %v984
      %v997 = vpack.c.b16 %v987, %v986
      %v998 = vpack.c.b16 %v989, %v988
      %v999 = vpack.c.b16 %v991, %v990
      %1008 = vmatprep.subr.bf16.mxu0 0
      %1009 = vmatpush1.bf16.msra.mxu0 %v992
      %1010 = vmatprep.subr.bf16.mxu0 0
      %1011 = vmatpush1.bf16.msra.mxu0 %v993
      %1012 = vmatprep.subr.bf16.mxu0 0
      %1013 = vmatpush1.bf16.msra.mxu0 %v994
      %1014 = vmatprep.subr.bf16.mxu0 0
      %1015 = vmatpush1.bf16.msra.mxu0 %v995
      %1016 = vmatprep.subr.bf16.mxu0 0
      %1017 = vmatpush1.bf16.msra.mxu0 %v996
      %1018 = vmatprep.subr.bf16.mxu0 0
      %1019 = vmatpush1.bf16.msra.mxu0 %v997
      %1020 = vmatprep.subr.bf16.mxu0 0
      %1021 = vmatpush1.bf16.msra.mxu0 %v998
      %1022 = vmatprep.subr.bf16.mxu0 0
      %1023 = vmatpush1.bf16.msra.mxu0 %v999
      %1024 = vmatprep.subr.bf16.mxu0 0
      %1025 = vmatpush1.bf16.msra.mxu0 0
      %1026 = vmatprep.subr.bf16.mxu0 0
      %1027 = vmatpush1.bf16.msra.mxu0 0
      %1028 = vmatprep.subr.bf16.mxu0 0
      %1029 = vmatpush1.bf16.msra.mxu0 0
      %1030 = vmatprep.subr.bf16.mxu0 0
      %1031 = vmatpush1.bf16.msra.mxu0 0
      %1032 = vmatprep.subr.bf16.mxu0 0
      %1033 = vmatpush1.bf16.msra.mxu0 0
      %1034 = vmatprep.subr.bf16.mxu0 0
      %1035 = vmatpush1.bf16.msra.mxu0 0
      %1036 = vmatprep.subr.bf16.mxu0 0
      %1037 = vmatpush1.bf16.msra.mxu0 0
      %1038 = vmatprep.subr.bf16.mxu0 0
      %1039 = vmatpush1.bf16.msra.mxu0 0
      %1040 = vmatprep.mubr.bf16.mxu0 0
      %1041 = vmatmul.mubr.bf16.gmra.mrb[0].mxu0 %v952
      %v1042 = vpop.f32.mrb[0].mxu0
      %v1043 = vadd.f32 0.0, %v1042
      %v1044 = vpop.f32.mrb[0].mxu0
      %v1045 = vpop.f32.mrb[0].mxu0
      %v1046 = vadd.f32 0.0, %v1045
      %v1047 = vpop.f32.mrb[0].mxu0
      %1048 = vmatprep.mubr.bf16.mxu0 0
      %1049 = vmatmul.mubr.bf16.gmra.mrb[0].mxu0 %v953
      %v1050 = vpop.f32.mrb[0].mxu0
      %v1051 = vadd.f32 0.0, %v1050
      %v1052 = vpop.f32.mrb[0].mxu0
      %v1053 = vpop.f32.mrb[0].mxu0
      %v1054 = vadd.f32 0.0, %v1053
      %v1055 = vpop.f32.mrb[0].mxu0
      %1056 = vmatprep.mubr.bf16.mxu0 0
      %1057 = vmatmul.mubr.bf16.gmra.mrb[0].mxu0 %v954
      %v1058 = vpop.f32.mrb[0].mxu0
      %v1059 = vadd.f32 0.0, %v1058
      %v1060 = vpop.f32.mrb[0].mxu0
      %v1061 = vpop.f32.mrb[0].mxu0
      %v1062 = vadd.f32 0.0, %v1061
      %v1063 = vpop.f32.mrb[0].mxu0
      %1064 = vmatprep.mubr.bf16.mxu0 0
      %1065 = vmatmul.mubr.bf16.gmra.mrb[0].mxu0 %v955
      %v1066 = vpop.f32.mrb[0].mxu0
      %v1067 = vadd.f32 0.0, %v1066
      %v1068 = vpop.f32.mrb[0].mxu0
      %v1069 = vpop.f32.mrb[0].mxu0
      %v1070 = vadd.f32 0.0, %v1069
      %v1071 = vpop.f32.mrb[0].mxu0
      %1072 = vdwg.mxu0
      %v1073 = vadd.f32 %v868, %v1043
      %v1074 = vadd.f32 %v869, %v1046
      %v1075 = vadd.f32 %v870, %v1051
      %v1076 = vadd.f32 %v871, %v1054
      %v1077 = vadd.f32 %v872, %v1059
      %v1078 = vadd.f32 %v873, %v1062
      %v1079 = vadd.f32 %v874, %v1067
      %v1080 = vadd.f32 %v875, %v1070
      %1081 = vst [vmem:[#allocation2] sm:$0xff] %v1073
      %1082 = vst [vmem:[#allocation2 + $0x8] sm:$0xff] %v1074
      %1083 = vst [vmem:[#allocation2 + $0x10] sm:$0xff] %v1075
      %1084 = vst [vmem:[#allocation2 + $0x18] sm:$0xff] %v1076
      %1085 = vst [vmem:[#allocation2 + $0x20] sm:$0xff] %v1077
      %1086 = vst [vmem:[#allocation2 + $0x28] sm:$0xff] %v1078
      %1087 = vst [vmem:[#allocation2 + $0x30] sm:$0xff] %v1079
      %1088 = vst [vmem:[#allocation2 + $0x38] sm:$0xff] %v1080
      %s1089 = scalar_lea.vmem %s328, 8
      %v1090 = vld [vmem:[%s1089] sm:$0xf]
      %v1091 = vld [vmem:[%s1089 + $0x8] sm:$0xf]
      %v1092 = vld [vmem:[%s1089 + $0x10] sm:$0xf]
      %v1093 = vld [vmem:[%s1089 + $0x18] sm:$0xf]
      %v1094 = vld [vmem:[%s1089 + $0x20] sm:$0xf]
      %v1095 = vld [vmem:[%s1089 + $0x28] sm:$0xf]
      %v1096 = vld [vmem:[%s1089 + $0x30] sm:$0xf]
      %v1097 = vld [vmem:[%s1089 + $0x38] sm:$0xf]
      %v1098 = vld [vmem:[#allocation2] sm:$0xff]
      %v1099 = vld [vmem:[#allocation2 + $0x8] sm:$0xff]
      %v1100 = vld [vmem:[#allocation2 + $0x10] sm:$0xff]
      %v1101 = vld [vmem:[#allocation2 + $0x18] sm:$0xff]
      %v1102 = vld [vmem:[#allocation2 + $0x20] sm:$0xff]
      %v1103 = vld [vmem:[#allocation2 + $0x28] sm:$0xff]
      %v1104 = vld [vmem:[#allocation2 + $0x30] sm:$0xff]
      %v1105 = vld [vmem:[#allocation2 + $0x38] sm:$0xff]
      %s1106 = scalar_lea.vmem %s332, 192
      %v1107 = vld [vmem:[%s1106] sm:$0xf]
      %v1108 = vld [vmem:[%s1106 + $0x4] sm:$0xf]
      %v1109 = vld [vmem:[%s1106 + $0x8] sm:$0xf]
      %v1110 = vld [vmem:[%s1106 + $0xc] sm:$0xf]
      %v1111 = vld [vmem:[%s1106 + $0x10] sm:$0xf]
      %v1112 = vld [vmem:[%s1106 + $0x14] sm:$0xf]
      %v1113 = vld [vmem:[%s1106 + $0x18] sm:$0xf]
      %v1114 = vld [vmem:[%s1106 + $0x1c] sm:$0xf]
      %v1115 = vld [vmem:[%s1106 + $0x20] sm:$0xf]
      %v1116 = vld [vmem:[%s1106 + $0x24] sm:$0xf]
      %v1117 = vld [vmem:[%s1106 + $0x28] sm:$0xf]
      %v1118 = vld [vmem:[%s1106 + $0x2c] sm:$0xf]
      %v1119 = vld [vmem:[%s1106 + $0x30] sm:$0xf]
      %v1120 = vld [vmem:[%s1106 + $0x34] sm:$0xf]
      %v1121 = vld [vmem:[%s1106 + $0x38] sm:$0xf]
      %v1122 = vld [vmem:[%s1106 + $0x3c] sm:$0xf]
      %v1131 = vunpack.c.l.b16 %v1090
      %v1132 = vunpack.c.l.b16 %v1091
      %v1133 = vunpack.c.l.b16 %v1092
      %v1134 = vunpack.c.l.b16 %v1093
      %v1135 = vunpack.c.l.b16 %v1094
      %v1136 = vunpack.c.l.b16 %v1095
      %v1137 = vunpack.c.l.b16 %v1096
      %v1138 = vunpack.c.l.b16 %v1097
      %v1139 = vpack.c.b16 %v1132, %v1131
      %v1140 = vpack.c.b16 %v1134, %v1133
      %v1141 = vpack.c.b16 %v1136, %v1135
      %v1142 = vpack.c.b16 %v1138, %v1137
      %v1163 = vunpack.c.l.b16 %v1107
      %v1164 = vunpack.c.l.b16 %v1108
      %v1165 = vunpack.c.l.b16 %v1109
      %v1166 = vunpack.c.l.b16 %v1110
      %v1167 = vunpack.c.l.b16 %v1111
      %v1168 = vunpack.c.l.b16 %v1112
      %v1169 = vunpack.c.l.b16 %v1113
      %v1170 = vunpack.c.l.b16 %v1114
      %v1171 = vunpack.c.l.b16 %v1115
      %v1172 = vunpack.c.l.b16 %v1116
      %v1173 = vunpack.c.l.b16 %v1117
      %v1174 = vunpack.c.l.b16 %v1118
      %v1175 = vunpack.c.l.b16 %v1119
      %v1176 = vunpack.c.l.b16 %v1120
      %v1177 = vunpack.c.l.b16 %v1121
      %v1178 = vunpack.c.l.b16 %v1122
      %v1179 = vpack.c.b16 %v1164, %v1163
      %v1180 = vpack.c.b16 %v1166, %v1165
      %v1181 = vpack.c.b16 %v1168, %v1167
      %v1182 = vpack.c.b16 %v1170, %v1169
      %v1183 = vpack.c.b16 %v1172, %v1171
      %v1184 = vpack.c.b16 %v1174, %v1173
      %v1185 = vpack.c.b16 %v1176, %v1175
      %v1186 = vpack.c.b16 %v1178, %v1177
      %1195 = vmatprep.subr.bf16.mxu0 0
      %1196 = vmatpush1.bf16.msra.mxu0 %v1179
      %1197 = vmatprep.subr.bf16.mxu0 0
      %1198 = vmatpush1.bf16.msra.mxu0 %v1180
      %1199 = vmatprep.subr.bf16.mxu0 0
      %1200 = vmatpush1.bf16.msra.mxu0 %v1181
      %1201 = vmatprep.subr.bf16.mxu0 0
      %1202 = vmatpush1.bf16.msra.mxu0 %v1182
      %1203 = vmatprep.subr.bf16.mxu0 0
      %1204 = vmatpush1.bf16.msra.mxu0 %v1183
      %1205 = vmatprep.subr.bf16.mxu0 0
      %1206 = vmatpush1.bf16.msra.mxu0 %v1184
      %1207 = vmatprep.subr.bf16.mxu0 0
      %1208 = vmatpush1.bf16.msra.mxu0 %v1185
      %1209 = vmatprep.subr.bf16.mxu0 0
      %1210 = vmatpush1.bf16.msra.mxu0 %v1186
      %1211 = vmatprep.subr.bf16.mxu0 0
      %1212 = vmatpush1.bf16.msra.mxu0 0
      %1213 = vmatprep.subr.bf16.mxu0 0
      %1214 = vmatpush1.bf16.msra.mxu0 0
      %1215 = vmatprep.subr.bf16.mxu0 0
      %1216 = vmatpush1.bf16.msra.mxu0 0
      %1217 = vmatprep.subr.bf16.mxu0 0
      %1218 = vmatpush1.bf16.msra.mxu0 0
      %1219 = vmatprep.subr.bf16.mxu0 0
      %1220 = vmatpush1.bf16.msra.mxu0 0
      %1221 = vmatprep.subr.bf16.mxu0 0
      %1222 = vmatpush1.bf16.msra.mxu0 0
      %1223 = vmatprep.subr.bf16.mxu0 0
      %1224 = vmatpush1.bf16.msra.mxu0 0
      %1225 = vmatprep.subr.bf16.mxu0 0
      %1226 = vmatpush1.bf16.msra.mxu0 0
      %1227 = vmatprep.mubr.bf16.mxu0 0
      %1228 = vmatmul.mubr.bf16.gmra.mrb[0].mxu0 %v1139
      %v1229 = vpop.f32.mrb[0].mxu0
      %v1230 = vadd.f32 0.0, %v1229
      %v1231 = vpop.f32.mrb[0].mxu0
      %v1232 = vpop.f32.mrb[0].mxu0
      %v1233 = vadd.f32 0.0, %v1232
      %v1234 = vpop.f32.mrb[0].mxu0
      %1235 = vmatprep.mubr.bf16.mxu0 0
      %1236 = vmatmul.mubr.bf16.gmra.mrb[0].mxu0 %v1140
      %v1237 = vpop.f32.mrb[0].mxu0
      %v1238 = vadd.f32 0.0, %v1237
      %v1239 = vpop.f32.mrb[0].mxu0
      %v1240 = vpop.f32.mrb[0].mxu0
      %v1241 = vadd.f32 0.0, %v1240
      %v1242 = vpop.f32.mrb[0].mxu0
      %1243 = vmatprep.mubr.bf16.mxu0 0
      %1244 = vmatmul.mubr.bf16.gmra.mrb[0].mxu0 %v1141
      %v1245 = vpop.f32.mrb[0].mxu0
      %v1246 = vadd.f32 0.0, %v1245
      %v1247 = vpop.f32.mrb[0].mxu0
      %v1248 = vpop.f32.mrb[0].mxu0
      %v1249 = vadd.f32 0.0, %v1248
      %v1250 = vpop.f32.mrb[0].mxu0
      %1251 = vmatprep.mubr.bf16.mxu0 0
      %1252 = vmatmul.mubr.bf16.gmra.mrb[0].mxu0 %v1142
      %v1253 = vpop.f32.mrb[0].mxu0
      %v1254 = vadd.f32 0.0, %v1253
      %v1255 = vpop.f32.mrb[0].mxu0
      %v1256 = vpop.f32.mrb[0].mxu0
      %v1257 = vadd.f32 0.0, %v1256
      %v1258 = vpop.f32.mrb[0].mxu0
      %1259 = vdwg.mxu0
      %v1260 = vadd.f32 %v1098, %v1230
      %v1261 = vadd.f32 %v1099, %v1233
      %v1262 = vadd.f32 %v1100, %v1238
      %v1263 = vadd.f32 %v1101, %v1241
      %v1264 = vadd.f32 %v1102, %v1246
      %v1265 = vadd.f32 %v1103, %v1249
      %v1266 = vadd.f32 %v1104, %v1254
      %v1267 = vadd.f32 %v1105, %v1257
      %1268 = vst [vmem:[#allocation2] sm:$0xff] %v1260
      %1269 = vst [vmem:[#allocation2 + $0x8] sm:$0xff] %v1261
      %1270 = vst [vmem:[#allocation2 + $0x10] sm:$0xff] %v1262
      %1271 = vst [vmem:[#allocation2 + $0x18] sm:$0xff] %v1263
      %1272 = vst [vmem:[#allocation2 + $0x20] sm:$0xff] %v1264
      %1273 = vst [vmem:[#allocation2 + $0x28] sm:$0xff] %v1265
      %1274 = vst [vmem:[#allocation2 + $0x30] sm:$0xff] %v1266
      %1275 = vst [vmem:[#allocation2 + $0x38] sm:$0xff] %v1267
      %v1276 = vld [vmem:[%s1089] sm:$0xf]
      %v1277 = vld [vmem:[%s1089 + $0x4] sm:$0x1]
      %v1278 = vld [vmem:[%s1089 + $0x8] sm:$0xf]
      %v1279 = vld [vmem:[%s1089 + $0xc] sm:$0x1]
      %v1280 = vld [vmem:[%s1089 + $0x10] sm:$0xf]
      %v1281 = vld [vmem:[%s1089 + $0x14] sm:$0x1]
      %v1282 = vld [vmem:[%s1089 + $0x18] sm:$0xf]
      %v1283 = vld [vmem:[%s1089 + $0x1c] sm:$0x1]
      %v1284 = vld [vmem:[%s1089 + $0x20] sm:$0xf]
      %v1285 = vld [vmem:[%s1089 + $0x24] sm:$0x1]
      %v1286 = vld [vmem:[%s1089 + $0x28] sm:$0xf]
      %v1287 = vld [vmem:[%s1089 + $0x2c] sm:$0x1]
      %v1288 = vld [vmem:[%s1089 + $0x30] sm:$0xf]
      %v1289 = vld [vmem:[%s1089 + $0x34] sm:$0x1]
      %v1290 = vld [vmem:[%s1089 + $0x38] sm:$0xf]
      %v1291 = vld [vmem:[%s1089 + $0x3c] sm:$0x1]
      %v1292 = vld [vmem:[#allocation2] sm:$0xff]
      %v1293 = vld [vmem:[#allocation2 + $0x8] sm:$0xff]
      %v1294 = vld [vmem:[#allocation2 + $0x10] sm:$0xff]
      %v1295 = vld [vmem:[#allocation2 + $0x18] sm:$0xff]
      %v1296 = vld [vmem:[#allocation2 + $0x20] sm:$0xff]
      %v1297 = vld [vmem:[#allocation2 + $0x28] sm:$0xff]
      %v1298 = vld [vmem:[#allocation2 + $0x30] sm:$0xff]
      %v1299 = vld [vmem:[#allocation2 + $0x38] sm:$0xff]
      %v1301 = vshrl.u32 %v1276, 16
      %v1303 = vrot.slane %v1301, 4
      %v1304 = vshll.u32 %v1276, 16
      %v1306 = vrot.slane %v1304, 5
      %v1307 = vor.u32 %v1303, %v1306
      %v1308 = vrot.slane %v1307, 4
      %v1310 = vshll.u32 %v1277, 16
      %v1312 = vrot.slane %v1310, 5
      %v1313 = vsel %vm577, %v1308, %v1312
      %v1315 = vshrl.u32 %v1278, 16
      %v1317 = vrot.slane %v1315, 4
      %v1318 = vshll.u32 %v1278, 16
      %v1320 = vrot.slane %v1318, 5
      %v1321 = vor.u32 %v1317, %v1320
      %v1322 = vrot.slane %v1321, 4
      %v1324 = vshll.u32 %v1279, 16
      %v1326 = vrot.slane %v1324, 5
      %v1327 = vsel %vm577, %v1322, %v1326
      %v1329 = vshrl.u32 %v1280, 16
      %v1331 = vrot.slane %v1329, 4
      %v1332 = vshll.u32 %v1280, 16
      %v1334 = vrot.slane %v1332, 5
      %v1335 = vor.u32 %v1331, %v1334
      %v1336 = vrot.slane %v1335, 4
      %v1338 = vshll.u32 %v1281, 16
      %v1340 = vrot.slane %v1338, 5
      %v1341 = vsel %vm577, %v1336, %v1340
      %v1343 = vshrl.u32 %v1282, 16
      %v1345 = vrot.slane %v1343, 4
      %v1346 = vshll.u32 %v1282, 16
      %v1348 = vrot.slane %v1346, 5
      %v1349 = vor.u32 %v1345, %v1348
      %v1350 = vrot.slane %v1349, 4
      %v1352 = vshll.u32 %v1283, 16
      %v1354 = vrot.slane %v1352, 5
      %v1355 = vsel %vm577, %v1350, %v1354
      %v1357 = vshrl.u32 %v1284, 16
      %v1359 = vrot.slane %v1357, 4
      %v1360 = vshll.u32 %v1284, 16
      %v1362 = vrot.slane %v1360, 5
      %v1363 = vor.u32 %v1359, %v1362
      %v1364 = vrot.slane %v1363, 4
      %v1366 = vshll.u32 %v1285, 16
      %v1368 = vrot.slane %v1366, 5
      %v1369 = vsel %vm577, %v1364, %v1368
      %v1371 = vshrl.u32 %v1286, 16
      %v1373 = vrot.slane %v1371, 4
      %v1374 = vshll.u32 %v1286, 16
      %v1376 = vrot.slane %v1374, 5
      %v1377 = vor.u32 %v1373, %v1376
      %v1378 = vrot.slane %v1377, 4
      %v1380 = vshll.u32 %v1287, 16
      %v1382 = vrot.slane %v1380, 5
      %v1383 = vsel %vm577, %v1378, %v1382
      %v1385 = vshrl.u32 %v1288, 16
      %v1387 = vrot.slane %v1385, 4
      %v1388 = vshll.u32 %v1288, 16
      %v1390 = vrot.slane %v1388, 5
      %v1391 = vor.u32 %v1387, %v1390
      %v1392 = vrot.slane %v1391, 4
      %v1394 = vshll.u32 %v1289, 16
      %v1396 = vrot.slane %v1394, 5
      %v1397 = vsel %vm577, %v1392, %v1396
      %v1399 = vshrl.u32 %v1290, 16
      %v1401 = vrot.slane %v1399, 4
      %v1402 = vshll.u32 %v1290, 16
      %v1404 = vrot.slane %v1402, 5
      %v1405 = vor.u32 %v1401, %v1404
      %v1406 = vrot.slane %v1405, 4
      %v1408 = vshll.u32 %v1291, 16
      %v1410 = vrot.slane %v1408, 5
      %v1411 = vsel %vm577, %v1406, %v1410
      %s1412 = scalar_lea.vmem %s332, 256
      %v1413 = vld [vmem:[%s1412] sm:$0xf]
      %v1414 = vld [vmem:[%s1412 + $0x4] sm:$0xf]
      %v1415 = vld [vmem:[%s1412 + $0x8] sm:$0xf]
      %v1416 = vld [vmem:[%s1412 + $0xc] sm:$0xf]
      %v1417 = vld [vmem:[%s1412 + $0x10] sm:$0xf]
      %v1418 = vld [vmem:[%s1412 + $0x14] sm:$0xf]
      %v1419 = vld [vmem:[%s1412 + $0x18] sm:$0xf]
      %v1420 = vld [vmem:[%s1412 + $0x1c] sm:$0xf]
      %v1421 = vld [vmem:[%s1412 + $0x20] sm:$0xf]
      %v1422 = vld [vmem:[%s1412 + $0x24] sm:$0xf]
      %v1423 = vld [vmem:[%s1412 + $0x28] sm:$0xf]
      %v1424 = vld [vmem:[%s1412 + $0x2c] sm:$0xf]
      %v1425 = vld [vmem:[%s1412 + $0x30] sm:$0xf]
      %v1426 = vld [vmem:[%s1412 + $0x34] sm:$0xf]
      %v1427 = vld [vmem:[%s1412 + $0x38] sm:$0xf]
      %v1428 = vld [vmem:[%s1412 + $0x3c] sm:$0xf]
      %v1429 = vunpack.c.l.b16 %v1313
      %v1430 = vunpack.c.l.b16 %v1327
      %v1431 = vunpack.c.l.b16 %v1341
      %v1432 = vunpack.c.l.b16 %v1355
      %v1433 = vunpack.c.l.b16 %v1369
      %v1434 = vunpack.c.l.b16 %v1383
      %v1435 = vunpack.c.l.b16 %v1397
      %v1436 = vunpack.c.l.b16 %v1411
      %v1437 = vpack.c.b16 %v1430, %v1429
      %v1438 = vpack.c.b16 %v1432, %v1431
      %v1439 = vpack.c.b16 %v1434, %v1433
      %v1440 = vpack.c.b16 %v1436, %v1435
      %v1461 = vunpack.c.l.b16 %v1413
      %v1462 = vunpack.c.l.b16 %v1414
      %v1463 = vunpack.c.l.b16 %v1415
      %v1464 = vunpack.c.l.b16 %v1416
      %v1465 = vunpack.c.l.b16 %v1417
      %v1466 = vunpack.c.l.b16 %v1418
      %v1467 = vunpack.c.l.b16 %v1419
      %v1468 = vunpack.c.l.b16 %v1420
      %v1469 = vunpack.c.l.b16 %v1421
      %v1470 = vunpack.c.l.b16 %v1422
      %v1471 = vunpack.c.l.b16 %v1423
      %v1472 = vunpack.c.l.b16 %v1424
      %v1473 = vunpack.c.l.b16 %v1425
      %v1474 = vunpack.c.l.b16 %v1426
      %v1475 = vunpack.c.l.b16 %v1427
      %v1476 = vunpack.c.l.b16 %v1428
      %v1477 = vpack.c.b16 %v1462, %v1461
      %v1478 = vpack.c.b16 %v1464, %v1463
      %v1479 = vpack.c.b16 %v1466, %v1465
      %v1480 = vpack.c.b16 %v1468, %v1467
      %v1481 = vpack.c.b16 %v1470, %v1469
      %v1482 = vpack.c.b16 %v1472, %v1471
      %v1483 = vpack.c.b16 %v1474, %v1473
      %v1484 = vpack.c.b16 %v1476, %v1475
      %1493 = vmatprep.subr.bf16.mxu0 0
      %1494 = vmatpush1.bf16.msra.mxu0 %v1477
      %1495 = vmatprep.subr.bf16.mxu0 0
      %1496 = vmatpush1.bf16.msra.mxu0 %v1478
      %1497 = vmatprep.subr.bf16.mxu0 0
      %1498 = vmatpush1.bf16.msra.mxu0 %v1479
      %1499 = vmatprep.subr.bf16.mxu0 0
      %1500 = vmatpush1.bf16.msra.mxu0 %v1480
      %1501 = vmatprep.subr.bf16.mxu0 0
      %1502 = vmatpush1.bf16.msra.mxu0 %v1481
      %1503 = vmatprep.subr.bf16.mxu0 0
      %1504 = vmatpush1.bf16.msra.mxu0 %v1482
      %1505 = vmatprep.subr.bf16.mxu0 0
      %1506 = vmatpush1.bf16.msra.mxu0 %v1483
      %1507 = vmatprep.subr.bf16.mxu0 0
      %1508 = vmatpush1.bf16.msra.mxu0 %v1484
      %1509 = vmatprep.subr.bf16.mxu0 0
      %1510 = vmatpush1.bf16.msra.mxu0 0
      %1511 = vmatprep.subr.bf16.mxu0 0
      %1512 = vmatpush1.bf16.msra.mxu0 0
      %1513 = vmatprep.subr.bf16.mxu0 0
      %1514 = vmatpush1.bf16.msra.mxu0 0
      %1515 = vmatprep.subr.bf16.mxu0 0
      %1516 = vmatpush1.bf16.msra.mxu0 0
      %1517 = vmatprep.subr.bf16.mxu0 0
      %1518 = vmatpush1.bf16.msra.mxu0 0
      %1519 = vmatprep.subr.bf16.mxu0 0
      %1520 = vmatpush1.bf16.msra.mxu0 0
      %1521 = vmatprep.subr.bf16.mxu0 0
      %1522 = vmatpush1.bf16.msra.mxu0 0
      %1523 = vmatprep.subr.bf16.mxu0 0
      %1524 = vmatpush1.bf16.msra.mxu0 0
      %1525 = vmatprep.mubr.bf16.mxu0 0
      %1526 = vmatmul.mubr.bf16.gmra.mrb[0].mxu0 %v1437
      %v1527 = vpop.f32.mrb[0].mxu0
      %v1528 = vadd.f32 0.0, %v1527
      %v1529 = vpop.f32.mrb[0].mxu0
      %v1530 = vpop.f32.mrb[0].mxu0
      %v1531 = vadd.f32 0.0, %v1530
      %v1532 = vpop.f32.mrb[0].mxu0
      %1533 = vmatprep.mubr.bf16.mxu0 0
      %1534 = vmatmul.mubr.bf16.gmra.mrb[0].mxu0 %v1438
      %v1535 = vpop.f32.mrb[0].mxu0
      %v1536 = vadd.f32 0.0, %v1535
      %v1537 = vpop.f32.mrb[0].mxu0
      %v1538 = vpop.f32.mrb[0].mxu0
      %v1539 = vadd.f32 0.0, %v1538
      %v1540 = vpop.f32.mrb[0].mxu0
      %1541 = vmatprep.mubr.bf16.mxu0 0
      %1542 = vmatmul.mubr.bf16.gmra.mrb[0].mxu0 %v1439
      %v1543 = vpop.f32.mrb[0].mxu0
      %v1544 = vadd.f32 0.0, %v1543
      %v1545 = vpop.f32.mrb[0].mxu0
      %v1546 = vpop.f32.mrb[0].mxu0
      %v1547 = vadd.f32 0.0, %v1546
      %v1548 = vpop.f32.mrb[0].mxu0
      %1549 = vmatprep.mubr.bf16.mxu0 0
      %1550 = vmatmul.mubr.bf16.gmra.mrb[0].mxu0 %v1440
      %v1551 = vpop.f32.mrb[0].mxu0
      %v1552 = vadd.f32 0.0, %v1551
      %v1553 = vpop.f32.mrb[0].mxu0
      %v1554 = vpop.f32.mrb[0].mxu0
      %v1555 = vadd.f32 0.0, %v1554
      %v1556 = vpop.f32.mrb[0].mxu0
      %1557 = vdwg.mxu0
      %v1558 = vadd.f32 %v1292, %v1528
      %v1559 = vadd.f32 %v1293, %v1531
      %v1560 = vadd.f32 %v1294, %v1536
      %v1561 = vadd.f32 %v1295, %v1539
      %v1562 = vadd.f32 %v1296, %v1544
      %v1563 = vadd.f32 %v1297, %v1547
      %v1564 = vadd.f32 %v1298, %v1552
      %v1565 = vadd.f32 %v1299, %v1555
      %1566 = vst [vmem:[#allocation2] sm:$0xff] %v1558
      %1567 = vst [vmem:[#allocation2 + $0x8] sm:$0xff] %v1559
      %1568 = vst [vmem:[#allocation2 + $0x10] sm:$0xff] %v1560
      %1569 = vst [vmem:[#allocation2 + $0x18] sm:$0xff] %v1561
      %1570 = vst [vmem:[#allocation2 + $0x20] sm:$0xff] %v1562
      %1571 = vst [vmem:[#allocation2 + $0x28] sm:$0xff] %v1563
      %1572 = vst [vmem:[#allocation2 + $0x30] sm:$0xff] %v1564
      %1573 = vst [vmem:[#allocation2 + $0x38] sm:$0xff] %v1565
      %v1574 = vld [vmem:[%s1089] sm:$0xe]
      %v1575 = vld [vmem:[%s1089 + $0x4] sm:$0x1]
      %v1576 = vld [vmem:[%s1089 + $0x8] sm:$0xe]
      %v1577 = vld [vmem:[%s1089 + $0xc] sm:$0x1]
      %v1578 = vld [vmem:[%s1089 + $0x10] sm:$0xe]
      %v1579 = vld [vmem:[%s1089 + $0x14] sm:$0x1]
      %v1580 = vld [vmem:[%s1089 + $0x18] sm:$0xe]
      %v1581 = vld [vmem:[%s1089 + $0x1c] sm:$0x1]
      %v1582 = vld [vmem:[%s1089 + $0x20] sm:$0xe]
      %v1583 = vld [vmem:[%s1089 + $0x24] sm:$0x1]
      %v1584 = vld [vmem:[%s1089 + $0x28] sm:$0xe]
      %v1585 = vld [vmem:[%s1089 + $0x2c] sm:$0x1]
      %v1586 = vld [vmem:[%s1089 + $0x30] sm:$0xe]
      %v1587 = vld [vmem:[%s1089 + $0x34] sm:$0x1]
      %v1588 = vld [vmem:[%s1089 + $0x38] sm:$0xe]
      %v1589 = vld [vmem:[%s1089 + $0x3c] sm:$0x1]
      %v1590 = vld [vmem:[#allocation2] sm:$0xff]
      %v1591 = vld [vmem:[#allocation2 + $0x8] sm:$0xff]
      %v1592 = vld [vmem:[#allocation2 + $0x10] sm:$0xff]
      %v1593 = vld [vmem:[#allocation2 + $0x18] sm:$0xff]
      %v1594 = vld [vmem:[#allocation2 + $0x20] sm:$0xff]
      %v1595 = vld [vmem:[#allocation2 + $0x28] sm:$0xff]
      %v1596 = vld [vmem:[#allocation2 + $0x30] sm:$0xff]
      %v1597 = vld [vmem:[#allocation2 + $0x38] sm:$0xff]
      %v1614 = vrot.slane %v1574, 5
      %v1615 = vrot.slane %v1614, 4
      %v1616 = vrot.slane %v1575, 5
      %v1617 = vsel %vm894, %v1615, %v1616
      %v1618 = vrot.slane %v1576, 5
      %v1619 = vrot.slane %v1618, 4
      %v1620 = vrot.slane %v1577, 5
      %v1621 = vsel %vm894, %v1619, %v1620
      %v1622 = vrot.slane %v1578, 5
      %v1623 = vrot.slane %v1622, 4
      %v1624 = vrot.slane %v1579, 5
      %v1625 = vsel %vm894, %v1623, %v1624
      %v1626 = vrot.slane %v1580, 5
      %v1627 = vrot.slane %v1626, 4
      %v1628 = vrot.slane %v1581, 5
      %v1629 = vsel %vm894, %v1627, %v1628
      %v1630 = vrot.slane %v1582, 5
      %v1631 = vrot.slane %v1630, 4
      %v1632 = vrot.slane %v1583, 5
      %v1633 = vsel %vm894, %v1631, %v1632
      %v1634 = vrot.slane %v1584, 5
      %v1635 = vrot.slane %v1634, 4
      %v1636 = vrot.slane %v1585, 5
      %v1637 = vsel %vm894, %v1635, %v1636
      %v1638 = vrot.slane %v1586, 5
      %v1639 = vrot.slane %v1638, 4
      %v1640 = vrot.slane %v1587, 5
      %v1641 = vsel %vm894, %v1639, %v1640
      %v1642 = vrot.slane %v1588, 5
      %v1643 = vrot.slane %v1642, 4
      %v1644 = vrot.slane %v1589, 5
      %v1645 = vsel %vm894, %v1643, %v1644
      %s1646 = scalar_lea.vmem %s332, 320
      %v1647 = vld [vmem:[%s1646] sm:$0xf]
      %v1648 = vld [vmem:[%s1646 + $0x4] sm:$0xf]
      %v1649 = vld [vmem:[%s1646 + $0x8] sm:$0xf]
      %v1650 = vld [vmem:[%s1646 + $0xc] sm:$0xf]
      %v1651 = vld [vmem:[%s1646 + $0x10] sm:$0xf]
      %v1652 = vld [vmem:[%s1646 + $0x14] sm:$0xf]
      %v1653 = vld [vmem:[%s1646 + $0x18] sm:$0xf]
      %v1654 = vld [vmem:[%s1646 + $0x1c] sm:$0xf]
      %v1655 = vld [vmem:[%s1646 + $0x20] sm:$0xf]
      %v1656 = vld [vmem:[%s1646 + $0x24] sm:$0xf]
      %v1657 = vld [vmem:[%s1646 + $0x28] sm:$0xf]
      %v1658 = vld [vmem:[%s1646 + $0x2c] sm:$0xf]
      %v1659 = vld [vmem:[%s1646 + $0x30] sm:$0xf]
      %v1660 = vld [vmem:[%s1646 + $0x34] sm:$0xf]
      %v1661 = vld [vmem:[%s1646 + $0x38] sm:$0xf]
      %v1662 = vld [vmem:[%s1646 + $0x3c] sm:$0xf]
      %v1663 = vunpack.c.l.b16 %v1617
      %v1664 = vunpack.c.l.b16 %v1621
      %v1665 = vunpack.c.l.b16 %v1625
      %v1666 = vunpack.c.l.b16 %v1629
      %v1667 = vunpack.c.l.b16 %v1633
      %v1668 = vunpack.c.l.b16 %v1637
      %v1669 = vunpack.c.l.b16 %v1641
      %v1670 = vunpack.c.l.b16 %v1645
      %v1671 = vpack.c.b16 %v1664, %v1663
      %v1672 = vpack.c.b16 %v1666, %v1665
      %v1673 = vpack.c.b16 %v1668, %v1667
      %v1674 = vpack.c.b16 %v1670, %v1669
      %v1695 = vunpack.c.l.b16 %v1647
      %v1696 = vunpack.c.l.b16 %v1648
      %v1697 = vunpack.c.l.b16 %v1649
      %v1698 = vunpack.c.l.b16 %v1650
      %v1699 = vunpack.c.l.b16 %v1651
      %v1700 = vunpack.c.l.b16 %v1652
      %v1701 = vunpack.c.l.b16 %v1653
      %v1702 = vunpack.c.l.b16 %v1654
      %v1703 = vunpack.c.l.b16 %v1655
      %v1704 = vunpack.c.l.b16 %v1656
      %v1705 = vunpack.c.l.b16 %v1657
      %v1706 = vunpack.c.l.b16 %v1658
      %v1707 = vunpack.c.l.b16 %v1659
      %v1708 = vunpack.c.l.b16 %v1660
      %v1709 = vunpack.c.l.b16 %v1661
      %v1710 = vunpack.c.l.b16 %v1662
      %v1711 = vpack.c.b16 %v1696, %v1695
      %v1712 = vpack.c.b16 %v1698, %v1697
      %v1713 = vpack.c.b16 %v1700, %v1699
      %v1714 = vpack.c.b16 %v1702, %v1701
      %v1715 = vpack.c.b16 %v1704, %v1703
      %v1716 = vpack.c.b16 %v1706, %v1705
      %v1717 = vpack.c.b16 %v1708, %v1707
      %v1718 = vpack.c.b16 %v1710, %v1709
      %1727 = vmatprep.subr.bf16.mxu0 0
      %1728 = vmatpush1.bf16.msra.mxu0 %v1711
      %1729 = vmatprep.subr.bf16.mxu0 0
      %1730 = vmatpush1.bf16.msra.mxu0 %v1712
      %1731 = vmatprep.subr.bf16.mxu0 0
      %1732 = vmatpush1.bf16.msra.mxu0 %v1713
      %1733 = vmatprep.subr.bf16.mxu0 0
      %1734 = vmatpush1.bf16.msra.mxu0 %v1714
      %1735 = vmatprep.subr.bf16.mxu0 0
      %1736 = vmatpush1.bf16.msra.mxu0 %v1715
      %1737 = vmatprep.subr.bf16.mxu0 0
      %1738 = vmatpush1.bf16.msra.mxu0 %v1716
      %1739 = vmatprep.subr.bf16.mxu0 0
      %1740 = vmatpush1.bf16.msra.mxu0 %v1717
      %1741 = vmatprep.subr.bf16.mxu0 0
      %1742 = vmatpush1.bf16.msra.mxu0 %v1718
      %1743 = vmatprep.subr.bf16.mxu0 0
      %1744 = vmatpush1.bf16.msra.mxu0 0
      %1745 = vmatprep.subr.bf16.mxu0 0
      %1746 = vmatpush1.bf16.msra.mxu0 0
      %1747 = vmatprep.subr.bf16.mxu0 0
      %1748 = vmatpush1.bf16.msra.mxu0 0
      %1749 = vmatprep.subr.bf16.mxu0 0
      %1750 = vmatpush1.bf16.msra.mxu0 0
      %1751 = vmatprep.subr.bf16.mxu0 0
      %1752 = vmatpush1.bf16.msra.mxu0 0
      %1753 = vmatprep.subr.bf16.mxu0 0
      %1754 = vmatpush1.bf16.msra.mxu0 0
      %1755 = vmatprep.subr.bf16.mxu0 0
      %1756 = vmatpush1.bf16.msra.mxu0 0
      %1757 = vmatprep.subr.bf16.mxu0 0
      %1758 = vmatpush1.bf16.msra.mxu0 0
      %1759 = vmatprep.mubr.bf16.mxu0 0
      %1760 = vmatmul.mubr.bf16.gmra.mrb[0].mxu0 %v1671
      %v1761 = vpop.f32.mrb[0].mxu0
      %v1762 = vadd.f32 0.0, %v1761
      %v1763 = vpop.f32.mrb[0].mxu0
      %v1764 = vpop.f32.mrb[0].mxu0
      %v1765 = vadd.f32 0.0, %v1764
      %v1766 = vpop.f32.mrb[0].mxu0
      %1767 = vmatprep.mubr.bf16.mxu0 0
      %1768 = vmatmul.mubr.bf16.gmra.mrb[0].mxu0 %v1672
      %v1769 = vpop.f32.mrb[0].mxu0
      %v1770 = vadd.f32 0.0, %v1769
      %v1771 = vpop.f32.mrb[0].mxu0
      %v1772 = vpop.f32.mrb[0].mxu0
      %v1773 = vadd.f32 0.0, %v1772
      %v1774 = vpop.f32.mrb[0].mxu0
      %1775 = vmatprep.mubr.bf16.mxu0 0
      %1776 = vmatmul.mubr.bf16.gmra.mrb[0].mxu0 %v1673
      %v1777 = vpop.f32.mrb[0].mxu0
      %v1778 = vadd.f32 0.0, %v1777
      %v1779 = vpop.f32.mrb[0].mxu0
      %v1780 = vpop.f32.mrb[0].mxu0
      %v1781 = vadd.f32 0.0, %v1780
      %v1782 = vpop.f32.mrb[0].mxu0
      %1783 = vmatprep.mubr.bf16.mxu0 0
      %1784 = vmatmul.mubr.bf16.gmra.mrb[0].mxu0 %v1674
      %v1785 = vpop.f32.mrb[0].mxu0
      %v1786 = vadd.f32 0.0, %v1785
      %v1787 = vpop.f32.mrb[0].mxu0
      %v1788 = vpop.f32.mrb[0].mxu0
      %v1789 = vadd.f32 0.0, %v1788
      %v1790 = vpop.f32.mrb[0].mxu0
      %1791 = vdwg.mxu0
      %v1792 = vadd.f32 %v1590, %v1762
      %v1793 = vadd.f32 %v1591, %v1765
      %v1794 = vadd.f32 %v1592, %v1770
      %v1795 = vadd.f32 %v1593, %v1773
      %v1796 = vadd.f32 %v1594, %v1778
      %v1797 = vadd.f32 %v1595, %v1781
      %v1798 = vadd.f32 %v1596, %v1786
      %v1799 = vadd.f32 %v1597, %v1789
      %1800 = vst [vmem:[#allocation2] sm:$0xff] %v1792
      %1801 = vst [vmem:[#allocation2 + $0x8] sm:$0xff] %v1793
      %1802 = vst [vmem:[#allocation2 + $0x10] sm:$0xff] %v1794
      %1803 = vst [vmem:[#allocation2 + $0x18] sm:$0xff] %v1795
      %1804 = vst [vmem:[#allocation2 + $0x20] sm:$0xff] %v1796
      %1805 = vst [vmem:[#allocation2 + $0x28] sm:$0xff] %v1797
      %1806 = vst [vmem:[#allocation2 + $0x30] sm:$0xff] %v1798
      %1807 = vst [vmem:[#allocation2 + $0x38] sm:$0xff] %v1799
      %s1808 = scalar_lea.vmem %s328, 16
      %v1809 = vld [vmem:[%s1808] sm:$0xf]
      %v1810 = vld [vmem:[%s1808 + $0x8] sm:$0xf]
      %v1811 = vld [vmem:[%s1808 + $0x10] sm:$0xf]
      %v1812 = vld [vmem:[%s1808 + $0x18] sm:$0xf]
      %v1813 = vld [vmem:[%s1808 + $0x20] sm:$0xf]
      %v1814 = vld [vmem:[%s1808 + $0x28] sm:$0xf]
      %v1815 = vld [vmem:[%s1808 + $0x30] sm:$0xf]
      %v1816 = vld [vmem:[%s1808 + $0x38] sm:$0xf]
      %v1817 = vld [vmem:[#allocation2] sm:$0xff]
      %v1818 = vld [vmem:[#allocation2 + $0x8] sm:$0xff]
      %v1819 = vld [vmem:[#allocation2 + $0x10] sm:$0xff]
      %v1820 = vld [vmem:[#allocation2 + $0x18] sm:$0xff]
      %v1821 = vld [vmem:[#allocation2 + $0x20] sm:$0xff]
      %v1822 = vld [vmem:[#allocation2 + $0x28] sm:$0xff]
      %v1823 = vld [vmem:[#allocation2 + $0x30] sm:$0xff]
      %v1824 = vld [vmem:[#allocation2 + $0x38] sm:$0xff]
      %s1825 = scalar_lea.vmem %s332, 384
      %v1826 = vld [vmem:[%s1825] sm:$0xf]
      %v1827 = vld [vmem:[%s1825 + $0x4] sm:$0xf]
      %v1828 = vld [vmem:[%s1825 + $0x8] sm:$0xf]
      %v1829 = vld [vmem:[%s1825 + $0xc] sm:$0xf]
      %v1830 = vld [vmem:[%s1825 + $0x10] sm:$0xf]
      %v1831 = vld [vmem:[%s1825 + $0x14] sm:$0xf]
      %v1832 = vld [vmem:[%s1825 + $0x18] sm:$0xf]
      %v1833 = vld [vmem:[%s1825 + $0x1c] sm:$0xf]
      %v1834 = vld [vmem:[%s1825 + $0x20] sm:$0xf]
      %v1835 = vld [vmem:[%s1825 + $0x24] sm:$0xf]
      %v1836 = vld [vmem:[%s1825 + $0x28] sm:$0xf]
      %v1837 = vld [vmem:[%s1825 + $0x2c] sm:$0xf]
      %v1838 = vld [vmem:[%s1825 + $0x30] sm:$0xf]
      %v1839 = vld [vmem:[%s1825 + $0x34] sm:$0xf]
      %v1840 = vld [vmem:[%s1825 + $0x38] sm:$0xf]
      %v1841 = vld [vmem:[%s1825 + $0x3c] sm:$0xf]
      %v1850 = vunpack.c.l.b16 %v1809
      %v1851 = vunpack.c.l.b16 %v1810
      %v1852 = vunpack.c.l.b16 %v1811
      %v1853 = vunpack.c.l.b16 %v1812
      %v1854 = vunpack.c.l.b16 %v1813
      %v1855 = vunpack.c.l.b16 %v1814
      %v1856 = vunpack.c.l.b16 %v1815
      %v1857 = vunpack.c.l.b16 %v1816
      %v1858 = vpack.c.b16 %v1851, %v1850
      %v1859 = vpack.c.b16 %v1853, %v1852
      %v1860 = vpack.c.b16 %v1855, %v1854
      %v1861 = vpack.c.b16 %v1857, %v1856
      %v1882 = vunpack.c.l.b16 %v1826
      %v1883 = vunpack.c.l.b16 %v1827
      %v1884 = vunpack.c.l.b16 %v1828
      %v1885 = vunpack.c.l.b16 %v1829
      %v1886 = vunpack.c.l.b16 %v1830
      %v1887 = vunpack.c.l.b16 %v1831
      %v1888 = vunpack.c.l.b16 %v1832
      %v1889 = vunpack.c.l.b16 %v1833
      %v1890 = vunpack.c.l.b16 %v1834
      %v1891 = vunpack.c.l.b16 %v1835
      %v1892 = vunpack.c.l.b16 %v1836
      %v1893 = vunpack.c.l.b16 %v1837
      %v1894 = vunpack.c.l.b16 %v1838
      %v1895 = vunpack.c.l.b16 %v1839
      %v1896 = vunpack.c.l.b16 %v1840
      %v1897 = vunpack.c.l.b16 %v1841
      %v1898 = vpack.c.b16 %v1883, %v1882
      %v1899 = vpack.c.b16 %v1885, %v1884
      %v1900 = vpack.c.b16 %v1887, %v1886
      %v1901 = vpack.c.b16 %v1889, %v1888
      %v1902 = vpack.c.b16 %v1891, %v1890
      %v1903 = vpack.c.b16 %v1893, %v1892
      %v1904 = vpack.c.b16 %v1895, %v1894
      %v1905 = vpack.c.b16 %v1897, %v1896
      %1914 = vmatprep.subr.bf16.mxu0 0
      %1915 = vmatpush1.bf16.msra.mxu0 %v1898
      %1916 = vmatprep.subr.bf16.mxu0 0
      %1917 = vmatpush1.bf16.msra.mxu0 %v1899
      %1918 = vmatprep.subr.bf16.mxu0 0
      %1919 = vmatpush1.bf16.msra.mxu0 %v1900
      %1920 = vmatprep.subr.bf16.mxu0 0
      %1921 = vmatpush1.bf16.msra.mxu0 %v1901
      %1922 = vmatprep.subr.bf16.mxu0 0
      %1923 = vmatpush1.bf16.msra.mxu0 %v1902
      %1924 = vmatprep.subr.bf16.mxu0 0
      %1925 = vmatpush1.bf16.msra.mxu0 %v1903
      %1926 = vmatprep.subr.bf16.mxu0 0
      %1927 = vmatpush1.bf16.msra.mxu0 %v1904
      %1928 = vmatprep.subr.bf16.mxu0 0
      %1929 = vmatpush1.bf16.msra.mxu0 %v1905
      %1930 = vmatprep.subr.bf16.mxu0 0
      %1931 = vmatpush1.bf16.msra.mxu0 0
      %1932 = vmatprep.subr.bf16.mxu0 0
      %1933 = vmatpush1.bf16.msra.mxu0 0
      %1934 = vmatprep.subr.bf16.mxu0 0
      %1935 = vmatpush1.bf16.msra.mxu0 0
      %1936 = vmatprep.subr.bf16.mxu0 0
      %1937 = vmatpush1.bf16.msra.mxu0 0
      %1938 = vmatprep.subr.bf16.mxu0 0
      %1939 = vmatpush1.bf16.msra.mxu0 0
      %1940 = vmatprep.subr.bf16.mxu0 0
      %1941 = vmatpush1.bf16.msra.mxu0 0
      %1942 = vmatprep.subr.bf16.mxu0 0
      %1943 = vmatpush1.bf16.msra.mxu0 0
      %1944 = vmatprep.subr.bf16.mxu0 0
      %1945 = vmatpush1.bf16.msra.mxu0 0
      %1946 = vmatprep.mubr.bf16.mxu0 0
      %1947 = vmatmul.mubr.bf16.gmra.mrb[0].mxu0 %v1858
      %v1948 = vpop.f32.mrb[0].mxu0
      %v1949 = vadd.f32 0.0, %v1948
      %v1950 = vpop.f32.mrb[0].mxu0
      %v1951 = vpop.f32.mrb[0].mxu0
      %v1952 = vadd.f32 0.0, %v1951
      %v1953 = vpop.f32.mrb[0].mxu0
      %1954 = vmatprep.mubr.bf16.mxu0 0
      %1955 = vmatmul.mubr.bf16.gmra.mrb[0].mxu0 %v1859
      %v1956 = vpop.f32.mrb[0].mxu0
      %v1957 = vadd.f32 0.0, %v1956
      %v1958 = vpop.f32.mrb[0].mxu0
      %v1959 = vpop.f32.mrb[0].mxu0
      %v1960 = vadd.f32 0.0, %v1959
      %v1961 = vpop.f32.mrb[0].mxu0
      %1962 = vmatprep.mubr.bf16.mxu0 0
      %1963 = vmatmul.mubr.bf16.gmra.mrb[0].mxu0 %v1860
      %v1964 = vpop.f32.mrb[0].mxu0
      %v1965 = vadd.f32 0.0, %v1964
      %v1966 = vpop.f32.mrb[0].mxu0
      %v1967 = vpop.f32.mrb[0].mxu0
      %v1968 = vadd.f32 0.0, %v1967
      %v1969 = vpop.f32.mrb[0].mxu0
      %1970 = vmatprep.mubr.bf16.mxu0 0
      %1971 = vmatmul.mubr.bf16.gmra.mrb[0].mxu0 %v1861
      %v1972 = vpop.f32.mrb[0].mxu0
      %v1973 = vadd.f32 0.0, %v1972
      %v1974 = vpop.f32.mrb[0].mxu0
      %v1975 = vpop.f32.mrb[0].mxu0
      %v1976 = vadd.f32 0.0, %v1975
      %v1977 = vpop.f32.mrb[0].mxu0
      %1978 = vdwg.mxu0
      %v1979 = vadd.f32 %v1817, %v1949
      %v1980 = vadd.f32 %v1818, %v1952
      %v1981 = vadd.f32 %v1819, %v1957
      %v1982 = vadd.f32 %v1820, %v1960
      %v1983 = vadd.f32 %v1821, %v1965
      %v1984 = vadd.f32 %v1822, %v1968
      %v1985 = vadd.f32 %v1823, %v1973
      %v1986 = vadd.f32 %v1824, %v1976
      %1987 = vst [vmem:[#allocation2] sm:$0xff] %v1979
      %1988 = vst [vmem:[#allocation2 + $0x8] sm:$0xff] %v1980
      %1989 = vst [vmem:[#allocation2 + $0x10] sm:$0xff] %v1981
      %1990 = vst [vmem:[#allocation2 + $0x18] sm:$0xff] %v1982
      %1991 = vst [vmem:[#allocation2 + $0x20] sm:$0xff] %v1983
      %1992 = vst [vmem:[#allocation2 + $0x28] sm:$0xff] %v1984
      %1993 = vst [vmem:[#allocation2 + $0x30] sm:$0xff] %v1985
      %1994 = vst [vmem:[#allocation2 + $0x38] sm:$0xff] %v1986
      %v1995 = vld [vmem:[%s1808] sm:$0xf]
      %v1996 = vld [vmem:[%s1808 + $0x4] sm:$0x1]
      %v1997 = vld [vmem:[%s1808 + $0x8] sm:$0xf]
      %v1998 = vld [vmem:[%s1808 + $0xc] sm:$0x1]
      %v1999 = vld [vmem:[%s1808 + $0x10] sm:$0xf]
      %v2000 = vld [vmem:[%s1808 + $0x14] sm:$0x1]
      %v2001 = vld [vmem:[%s1808 + $0x18] sm:$0xf]
      %v2002 = vld [vmem:[%s1808 + $0x1c] sm:$0x1]
      %v2003 = vld [vmem:[%s1808 + $0x20] sm:$0xf]
      %v2004 = vld [vmem:[%s1808 + $0x24] sm:$0x1]
      %v2005 = vld [vmem:[%s1808 + $0x28] sm:$0xf]
      %v2006 = vld [vmem:[%s1808 + $0x2c] sm:$0x1]
      %v2007 = vld [vmem:[%s1808 + $0x30] sm:$0xf]
      %v2008 = vld [vmem:[%s1808 + $0x34] sm:$0x1]
      %v2009 = vld [vmem:[%s1808 + $0x38] sm:$0xf]
      %v2010 = vld [vmem:[%s1808 + $0x3c] sm:$0x1]
      %v2011 = vld [vmem:[#allocation2] sm:$0xff]
      %v2012 = vld [vmem:[#allocation2 + $0x8] sm:$0xff]
      %v2013 = vld [vmem:[#allocation2 + $0x10] sm:$0xff]
      %v2014 = vld [vmem:[#allocation2 + $0x18] sm:$0xff]
      %v2015 = vld [vmem:[#allocation2 + $0x20] sm:$0xff]
      %v2016 = vld [vmem:[#allocation2 + $0x28] sm:$0xff]
      %v2017 = vld [vmem:[#allocation2 + $0x30] sm:$0xff]
      %v2018 = vld [vmem:[#allocation2 + $0x38] sm:$0xff]
      %v2020 = vshrl.u32 %v1995, 16
      %v2022 = vrot.slane %v2020, 4
      %v2023 = vshll.u32 %v1995, 16
      %v2025 = vrot.slane %v2023, 5
      %v2026 = vor.u32 %v2022, %v2025
      %v2027 = vrot.slane %v2026, 4
      %v2029 = vshll.u32 %v1996, 16
      %v2031 = vrot.slane %v2029, 5
      %v2032 = vsel %vm577, %v2027, %v2031
      %v2034 = vshrl.u32 %v1997, 16
      %v2036 = vrot.slane %v2034, 4
      %v2037 = vshll.u32 %v1997, 16
      %v2039 = vrot.slane %v2037, 5
      %v2040 = vor.u32 %v2036, %v2039
      %v2041 = vrot.slane %v2040, 4
      %v2043 = vshll.u32 %v1998, 16
      %v2045 = vrot.slane %v2043, 5
      %v2046 = vsel %vm577, %v2041, %v2045
      %v2048 = vshrl.u32 %v1999, 16
      %v2050 = vrot.slane %v2048, 4
      %v2051 = vshll.u32 %v1999, 16
      %v2053 = vrot.slane %v2051, 5
      %v2054 = vor.u32 %v2050, %v2053
      %v2055 = vrot.slane %v2054, 4
      %v2057 = vshll.u32 %v2000, 16
      %v2059 = vrot.slane %v2057, 5
      %v2060 = vsel %vm577, %v2055, %v2059
      %v2062 = vshrl.u32 %v2001, 16
      %v2064 = vrot.slane %v2062, 4
      %v2065 = vshll.u32 %v2001, 16
      %v2067 = vrot.slane %v2065, 5
      %v2068 = vor.u32 %v2064, %v2067
      %v2069 = vrot.slane %v2068, 4
      %v2071 = vshll.u32 %v2002, 16
      %v2073 = vrot.slane %v2071, 5
      %v2074 = vsel %vm577, %v2069, %v2073
      %v2076 = vshrl.u32 %v2003, 16
      %v2078 = vrot.slane %v2076, 4
      %v2079 = vshll.u32 %v2003, 16
      %v2081 = vrot.slane %v2079, 5
      %v2082 = vor.u32 %v2078, %v2081
      %v2083 = vrot.slane %v2082, 4
      %v2085 = vshll.u32 %v2004, 16
      %v2087 = vrot.slane %v2085, 5
      %v2088 = vsel %vm577, %v2083, %v2087
      %v2090 = vshrl.u32 %v2005, 16
      %v2092 = vrot.slane %v2090, 4
      %v2093 = vshll.u32 %v2005, 16
      %v2095 = vrot.slane %v2093, 5
      %v2096 = vor.u32 %v2092, %v2095
      %v2097 = vrot.slane %v2096, 4
      %v2099 = vshll.u32 %v2006, 16
      %v2101 = vrot.slane %v2099, 5
      %v2102 = vsel %vm577, %v2097, %v2101
      %v2104 = vshrl.u32 %v2007, 16
      %v2106 = vrot.slane %v2104, 4
      %v2107 = vshll.u32 %v2007, 16
      %v2109 = vrot.slane %v2107, 5
      %v2110 = vor.u32 %v2106, %v2109
      %v2111 = vrot.slane %v2110, 4
      %v2113 = vshll.u32 %v2008, 16
      %v2115 = vrot.slane %v2113, 5
      %v2116 = vsel %vm577, %v2111, %v2115
      %v2118 = vshrl.u32 %v2009, 16
      %v2120 = vrot.slane %v2118, 4
      %v2121 = vshll.u32 %v2009, 16
      %v2123 = vrot.slane %v2121, 5
      %v2124 = vor.u32 %v2120, %v2123
      %v2125 = vrot.slane %v2124, 4
      %v2127 = vshll.u32 %v2010, 16
      %v2129 = vrot.slane %v2127, 5
      %v2130 = vsel %vm577, %v2125, %v2129
      %s2131 = scalar_lea.vmem %s332, 448
      %v2132 = vld [vmem:[%s2131] sm:$0xf]
      %v2133 = vld [vmem:[%s2131 + $0x4] sm:$0xf]
      %v2134 = vld [vmem:[%s2131 + $0x8] sm:$0xf]
      %v2135 = vld [vmem:[%s2131 + $0xc] sm:$0xf]
      %v2136 = vld [vmem:[%s2131 + $0x10] sm:$0xf]
      %v2137 = vld [vmem:[%s2131 + $0x14] sm:$0xf]
      %v2138 = vld [vmem:[%s2131 + $0x18] sm:$0xf]
      %v2139 = vld [vmem:[%s2131 + $0x1c] sm:$0xf]
      %v2140 = vld [vmem:[%s2131 + $0x20] sm:$0xf]
      %v2141 = vld [vmem:[%s2131 + $0x24] sm:$0xf]
      %v2142 = vld [vmem:[%s2131 + $0x28] sm:$0xf]
      %v2143 = vld [vmem:[%s2131 + $0x2c] sm:$0xf]
      %v2144 = vld [vmem:[%s2131 + $0x30] sm:$0xf]
      %v2145 = vld [vmem:[%s2131 + $0x34] sm:$0xf]
      %v2146 = vld [vmem:[%s2131 + $0x38] sm:$0xf]
      %v2147 = vld [vmem:[%s2131 + $0x3c] sm:$0xf]
      %v2148 = vunpack.c.l.b16 %v2032
      %v2149 = vunpack.c.l.b16 %v2046
      %v2150 = vunpack.c.l.b16 %v2060
      %v2151 = vunpack.c.l.b16 %v2074
      %v2152 = vunpack.c.l.b16 %v2088
      %v2153 = vunpack.c.l.b16 %v2102
      %v2154 = vunpack.c.l.b16 %v2116
      %v2155 = vunpack.c.l.b16 %v2130
      %v2156 = vpack.c.b16 %v2149, %v2148
      %v2157 = vpack.c.b16 %v2151, %v2150
      %v2158 = vpack.c.b16 %v2153, %v2152
      %v2159 = vpack.c.b16 %v2155, %v2154
      %v2180 = vunpack.c.l.b16 %v2132
      %v2181 = vunpack.c.l.b16 %v2133
      %v2182 = vunpack.c.l.b16 %v2134
      %v2183 = vunpack.c.l.b16 %v2135
      %v2184 = vunpack.c.l.b16 %v2136
      %v2185 = vunpack.c.l.b16 %v2137
      %v2186 = vunpack.c.l.b16 %v2138
      %v2187 = vunpack.c.l.b16 %v2139
      %v2188 = vunpack.c.l.b16 %v2140
      %v2189 = vunpack.c.l.b16 %v2141
      %v2190 = vunpack.c.l.b16 %v2142
      %v2191 = vunpack.c.l.b16 %v2143
      %v2192 = vunpack.c.l.b16 %v2144
      %v2193 = vunpack.c.l.b16 %v2145
      %v2194 = vunpack.c.l.b16 %v2146
      %v2195 = vunpack.c.l.b16 %v2147
      %v2196 = vpack.c.b16 %v2181, %v2180
      %v2197 = vpack.c.b16 %v2183, %v2182
      %v2198 = vpack.c.b16 %v2185, %v2184
      %v2199 = vpack.c.b16 %v2187, %v2186
      %v2200 = vpack.c.b16 %v2189, %v2188
      %v2201 = vpack.c.b16 %v2191, %v2190
      %v2202 = vpack.c.b16 %v2193, %v2192
      %v2203 = vpack.c.b16 %v2195, %v2194
      %2212 = vmatprep.subr.bf16.mxu0 0
      %2213 = vmatpush1.bf16.msra.mxu0 %v2196
      %2214 = vmatprep.subr.bf16.mxu0 0
      %2215 = vmatpush1.bf16.msra.mxu0 %v2197
      %2216 = vmatprep.subr.bf16.mxu0 0
      %2217 = vmatpush1.bf16.msra.mxu0 %v2198
      %2218 = vmatprep.subr.bf16.mxu0 0
      %2219 = vmatpush1.bf16.msra.mxu0 %v2199
      %2220 = vmatprep.subr.bf16.mxu0 0
      %2221 = vmatpush1.bf16.msra.mxu0 %v2200
      %2222 = vmatprep.subr.bf16.mxu0 0
      %2223 = vmatpush1.bf16.msra.mxu0 %v2201
      %2224 = vmatprep.subr.bf16.mxu0 0
      %2225 = vmatpush1.bf16.msra.mxu0 %v2202
      %2226 = vmatprep.subr.bf16.mxu0 0
      %2227 = vmatpush1.bf16.msra.mxu0 %v2203
      %2228 = vmatprep.subr.bf16.mxu0 0
      %2229 = vmatpush1.bf16.msra.mxu0 0
      %2230 = vmatprep.subr.bf16.mxu0 0
      %2231 = vmatpush1.bf16.msra.mxu0 0
      %2232 = vmatprep.subr.bf16.mxu0 0
      %2233 = vmatpush1.bf16.msra.mxu0 0
      %2234 = vmatprep.subr.bf16.mxu0 0
      %2235 = vmatpush1.bf16.msra.mxu0 0
      %2236 = vmatprep.subr.bf16.mxu0 0
      %2237 = vmatpush1.bf16.msra.mxu0 0
      %2238 = vmatprep.subr.bf16.mxu0 0
      %2239 = vmatpush1.bf16.msra.mxu0 0
      %2240 = vmatprep.subr.bf16.mxu0 0
      %2241 = vmatpush1.bf16.msra.mxu0 0
      %2242 = vmatprep.subr.bf16.mxu0 0
      %2243 = vmatpush1.bf16.msra.mxu0 0
      %2244 = vmatprep.mubr.bf16.mxu0 0
      %2245 = vmatmul.mubr.bf16.gmra.mrb[0].mxu0 %v2156
      %v2246 = vpop.f32.mrb[0].mxu0
      %v2247 = vadd.f32 0.0, %v2246
      %v2248 = vpop.f32.mrb[0].mxu0
      %v2249 = vpop.f32.mrb[0].mxu0
      %v2250 = vadd.f32 0.0, %v2249
      %v2251 = vpop.f32.mrb[0].mxu0
      %2252 = vmatprep.mubr.bf16.mxu0 0
      %2253 = vmatmul.mubr.bf16.gmra.mrb[0].mxu0 %v2157
      %v2254 = vpop.f32.mrb[0].mxu0
      %v2255 = vadd.f32 0.0, %v2254
      %v2256 = vpop.f32.mrb[0].mxu0
      %v2257 = vpop.f32.mrb[0].mxu0
      %v2258 = vadd.f32 0.0, %v2257
      %v2259 = vpop.f32.mrb[0].mxu0
      %2260 = vmatprep.mubr.bf16.mxu0 0
      %2261 = vmatmul.mubr.bf16.gmra.mrb[0].mxu0 %v2158
      %v2262 = vpop.f32.mrb[0].mxu0
      %v2263 = vadd.f32 0.0, %v2262
      %v2264 = vpop.f32.mrb[0].mxu0
      %v2265 = vpop.f32.mrb[0].mxu0
      %v2266 = vadd.f32 0.0, %v2265
      %v2267 = vpop.f32.mrb[0].mxu0
      %2268 = vmatprep.mubr.bf16.mxu0 0
      %2269 = vmatmul.mubr.bf16.gmra.mrb[0].mxu0 %v2159
      %v2270 = vpop.f32.mrb[0].mxu0
      %v2271 = vadd.f32 0.0, %v2270
      %v2272 = vpop.f32.mrb[0].mxu0
      %v2273 = vpop.f32.mrb[0].mxu0
      %v2274 = vadd.f32 0.0, %v2273
      %v2275 = vpop.f32.mrb[0].mxu0
      %2276 = vdwg.mxu0
      %v2277 = vadd.f32 %v2011, %v2247
      %v2278 = vadd.f32 %v2012, %v2250
      %v2279 = vadd.f32 %v2013, %v2255
      %v2280 = vadd.f32 %v2014, %v2258
      %v2281 = vadd.f32 %v2015, %v2263
      %v2282 = vadd.f32 %v2016, %v2266
      %v2283 = vadd.f32 %v2017, %v2271
      %v2284 = vadd.f32 %v2018, %v2274
      %2285 = vst [vmem:[#allocation2] sm:$0xff] %v2277
      %2286 = vst [vmem:[#allocation2 + $0x8] sm:$0xff] %v2278
      %2287 = vst [vmem:[#allocation2 + $0x10] sm:$0xff] %v2279
      %2288 = vst [vmem:[#allocation2 + $0x18] sm:$0xff] %v2280
      %2289 = vst [vmem:[#allocation2 + $0x20] sm:$0xff] %v2281
      %2290 = vst [vmem:[#allocation2 + $0x28] sm:$0xff] %v2282
      %2291 = vst [vmem:[#allocation2 + $0x30] sm:$0xff] %v2283
      %2292 = vst [vmem:[#allocation2 + $0x38] sm:$0xff] %v2284
      %v2293 = vld [vmem:[%s1808] sm:$0xe]
      %v2294 = vld [vmem:[%s1808 + $0x4] sm:$0x1]
      %v2295 = vld [vmem:[%s1808 + $0x8] sm:$0xe]
      %v2296 = vld [vmem:[%s1808 + $0xc] sm:$0x1]
      %v2297 = vld [vmem:[%s1808 + $0x10] sm:$0xe]
      %v2298 = vld [vmem:[%s1808 + $0x14] sm:$0x1]
      %v2299 = vld [vmem:[%s1808 + $0x18] sm:$0xe]
      %v2300 = vld [vmem:[%s1808 + $0x1c] sm:$0x1]
      %v2301 = vld [vmem:[%s1808 + $0x20] sm:$0xe]
      %v2302 = vld [vmem:[%s1808 + $0x24] sm:$0x1]
      %v2303 = vld [vmem:[%s1808 + $0x28] sm:$0xe]
      %v2304 = vld [vmem:[%s1808 + $0x2c] sm:$0x1]
      %v2305 = vld [vmem:[%s1808 + $0x30] sm:$0xe]
      %v2306 = vld [vmem:[%s1808 + $0x34] sm:$0x1]
      %v2307 = vld [vmem:[%s1808 + $0x38] sm:$0xe]
      %v2308 = vld [vmem:[%s1808 + $0x3c] sm:$0x1]
      %v2309 = vld [vmem:[#allocation2] sm:$0xff]
      %v2310 = vld [vmem:[#allocation2 + $0x8] sm:$0xff]
      %v2311 = vld [vmem:[#allocation2 + $0x10] sm:$0xff]
      %v2312 = vld [vmem:[#allocation2 + $0x18] sm:$0xff]
      %v2313 = vld [vmem:[#allocation2 + $0x20] sm:$0xff]
      %v2314 = vld [vmem:[#allocation2 + $0x28] sm:$0xff]
      %v2315 = vld [vmem:[#allocation2 + $0x30] sm:$0xff]
      %v2316 = vld [vmem:[#allocation2 + $0x38] sm:$0xff]
      %v2333 = vrot.slane %v2293, 5
      %v2334 = vrot.slane %v2333, 4
      %v2335 = vrot.slane %v2294, 5
      %v2336 = vsel %vm894, %v2334, %v2335
      %v2337 = vrot.slane %v2295, 5
      %v2338 = vrot.slane %v2337, 4
      %v2339 = vrot.slane %v2296, 5
      %v2340 = vsel %vm894, %v2338, %v2339
      %v2341 = vrot.slane %v2297, 5
      %v2342 = vrot.slane %v2341, 4
      %v2343 = vrot.slane %v2298, 5
      %v2344 = vsel %vm894, %v2342, %v2343
      %v2345 = vrot.slane %v2299, 5
      %v2346 = vrot.slane %v2345, 4
      %v2347 = vrot.slane %v2300, 5
      %v2348 = vsel %vm894, %v2346, %v2347
      %v2349 = vrot.slane %v2301, 5
      %v2350 = vrot.slane %v2349, 4
      %v2351 = vrot.slane %v2302, 5
      %v2352 = vsel %vm894, %v2350, %v2351
      %v2353 = vrot.slane %v2303, 5
      %v2354 = vrot.slane %v2353, 4
      %v2355 = vrot.slane %v2304, 5
      %v2356 = vsel %vm894, %v2354, %v2355
      %v2357 = vrot.slane %v2305, 5
      %v2358 = vrot.slane %v2357, 4
      %v2359 = vrot.slane %v2306, 5
      %v2360 = vsel %vm894, %v2358, %v2359
      %v2361 = vrot.slane %v2307, 5
      %v2362 = vrot.slane %v2361, 4
      %v2363 = vrot.slane %v2308, 5
      %v2364 = vsel %vm894, %v2362, %v2363
      %s2365 = scalar_lea.vmem %s332, 512
      %v2366 = vld [vmem:[%s2365] sm:$0xf]
      %v2367 = vld [vmem:[%s2365 + $0x4] sm:$0xf]
      %v2368 = vld [vmem:[%s2365 + $0x8] sm:$0xf]
      %v2369 = vld [vmem:[%s2365 + $0xc] sm:$0xf]
      %v2370 = vld [vmem:[%s2365 + $0x10] sm:$0xf]
      %v2371 = vld [vmem:[%s2365 + $0x14] sm:$0xf]
      %v2372 = vld [vmem:[%s2365 + $0x18] sm:$0xf]
      %v2373 = vld [vmem:[%s2365 + $0x1c] sm:$0xf]
      %v2374 = vld [vmem:[%s2365 + $0x20] sm:$0xf]
      %v2375 = vld [vmem:[%s2365 + $0x24] sm:$0xf]
      %v2376 = vld [vmem:[%s2365 + $0x28] sm:$0xf]
      %v2377 = vld [vmem:[%s2365 + $0x2c] sm:$0xf]
      %v2378 = vld [vmem:[%s2365 + $0x30] sm:$0xf]
      %v2379 = vld [vmem:[%s2365 + $0x34] sm:$0xf]
      %v2380 = vld [vmem:[%s2365 + $0x38] sm:$0xf]
      %v2381 = vld [vmem:[%s2365 + $0x3c] sm:$0xf]
      %v2382 = vunpack.c.l.b16 %v2336
      %v2383 = vunpack.c.l.b16 %v2340
      %v2384 = vunpack.c.l.b16 %v2344
      %v2385 = vunpack.c.l.b16 %v2348
      %v2386 = vunpack.c.l.b16 %v2352
      %v2387 = vunpack.c.l.b16 %v2356
      %v2388 = vunpack.c.l.b16 %v2360
      %v2389 = vunpack.c.l.b16 %v2364
      %v2390 = vpack.c.b16 %v2383, %v2382
      %v2391 = vpack.c.b16 %v2385, %v2384
      %v2392 = vpack.c.b16 %v2387, %v2386
      %v2393 = vpack.c.b16 %v2389, %v2388
      %v2414 = vunpack.c.l.b16 %v2366
      %v2415 = vunpack.c.l.b16 %v2367
      %v2416 = vunpack.c.l.b16 %v2368
      %v2417 = vunpack.c.l.b16 %v2369
      %v2418 = vunpack.c.l.b16 %v2370
      %v2419 = vunpack.c.l.b16 %v2371
      %v2420 = vunpack.c.l.b16 %v2372
      %v2421 = vunpack.c.l.b16 %v2373
      %v2422 = vunpack.c.l.b16 %v2374
      %v2423 = vunpack.c.l.b16 %v2375
      %v2424 = vunpack.c.l.b16 %v2376
      %v2425 = vunpack.c.l.b16 %v2377
      %v2426 = vunpack.c.l.b16 %v2378
      %v2427 = vunpack.c.l.b16 %v2379
      %v2428 = vunpack.c.l.b16 %v2380
      %v2429 = vunpack.c.l.b16 %v2381
      %v2430 = vpack.c.b16 %v2415, %v2414
      %v2431 = vpack.c.b16 %v2417, %v2416
      %v2432 = vpack.c.b16 %v2419, %v2418
      %v2433 = vpack.c.b16 %v2421, %v2420
      %v2434 = vpack.c.b16 %v2423, %v2422
      %v2435 = vpack.c.b16 %v2425, %v2424
      %v2436 = vpack.c.b16 %v2427, %v2426
      %v2437 = vpack.c.b16 %v2429, %v2428
      %2446 = vmatprep.subr.bf16.mxu0 0
      %2447 = vmatpush1.bf16.msra.mxu0 %v2430
      %2448 = vmatprep.subr.bf16.mxu0 0
      %2449 = vmatpush1.bf16.msra.mxu0 %v2431
      %2450 = vmatprep.subr.bf16.mxu0 0
      %2451 = vmatpush1.bf16.msra.mxu0 %v2432
      %2452 = vmatprep.subr.bf16.mxu0 0
      %2453 = vmatpush1.bf16.msra.mxu0 %v2433
      %2454 = vmatprep.subr.bf16.mxu0 0
      %2455 = vmatpush1.bf16.msra.mxu0 %v2434
      %2456 = vmatprep.subr.bf16.mxu0 0
      %2457 = vmatpush1.bf16.msra.mxu0 %v2435
      %2458 = vmatprep.subr.bf16.mxu0 0
      %2459 = vmatpush1.bf16.msra.mxu0 %v2436
      %2460 = vmatprep.subr.bf16.mxu0 0
      %2461 = vmatpush1.bf16.msra.mxu0 %v2437
      %2462 = vmatprep.subr.bf16.mxu0 0
      %2463 = vmatpush1.bf16.msra.mxu0 0
      %2464 = vmatprep.subr.bf16.mxu0 0
      %2465 = vmatpush1.bf16.msra.mxu0 0
      %2466 = vmatprep.subr.bf16.mxu0 0
      %2467 = vmatpush1.bf16.msra.mxu0 0
      %2468 = vmatprep.subr.bf16.mxu0 0
      %2469 = vmatpush1.bf16.msra.mxu0 0
      %2470 = vmatprep.subr.bf16.mxu0 0
      %2471 = vmatpush1.bf16.msra.mxu0 0
      %2472 = vmatprep.subr.bf16.mxu0 0
      %2473 = vmatpush1.bf16.msra.mxu0 0
      %2474 = vmatprep.subr.bf16.mxu0 0
      %2475 = vmatpush1.bf16.msra.mxu0 0
      %2476 = vmatprep.subr.bf16.mxu0 0
      %2477 = vmatpush1.bf16.msra.mxu0 0
      %2478 = vmatprep.mubr.bf16.mxu0 0
      %2479 = vmatmul.mubr.bf16.gmra.mrb[0].mxu0 %v2390
      %v2480 = vpop.f32.mrb[0].mxu0
      %v2481 = vadd.f32 0.0, %v2480
      %v2482 = vpop.f32.mrb[0].mxu0
      %v2483 = vpop.f32.mrb[0].mxu0
      %v2484 = vadd.f32 0.0, %v2483
      %v2485 = vpop.f32.mrb[0].mxu0
      %2486 = vmatprep.mubr.bf16.mxu0 0
      %2487 = vmatmul.mubr.bf16.gmra.mrb[0].mxu0 %v2391
      %v2488 = vpop.f32.mrb[0].mxu0
      %v2489 = vadd.f32 0.0, %v2488
      %v2490 = vpop.f32.mrb[0].mxu0
      %v2491 = vpop.f32.mrb[0].mxu0
      %v2492 = vadd.f32 0.0, %v2491
      %v2493 = vpop.f32.mrb[0].mxu0
      %2494 = vmatprep.mubr.bf16.mxu0 0
      %2495 = vmatmul.mubr.bf16.gmra.mrb[0].mxu0 %v2392
      %v2496 = vpop.f32.mrb[0].mxu0
      %v2497 = vadd.f32 0.0, %v2496
      %v2498 = vpop.f32.mrb[0].mxu0
      %v2499 = vpop.f32.mrb[0].mxu0
      %v2500 = vadd.f32 0.0, %v2499
      %v2501 = vpop.f32.mrb[0].mxu0
      %2502 = vmatprep.mubr.bf16.mxu0 0
      %2503 = vmatmul.mubr.bf16.gmra.mrb[0].mxu0 %v2393
      %v2504 = vpop.f32.mrb[0].mxu0
      %v2505 = vadd.f32 0.0, %v2504
      %v2506 = vpop.f32.mrb[0].mxu0
      %v2507 = vpop.f32.mrb[0].mxu0
      %v2508 = vadd.f32 0.0, %v2507
      %v2509 = vpop.f32.mrb[0].mxu0
      %2510 = vdwg.mxu0
      %v2511 = vadd.f32 %v2309, %v2481
      %v2512 = vadd.f32 %v2310, %v2484
      %v2513 = vadd.f32 %v2311, %v2489
      %v2514 = vadd.f32 %v2312, %v2492
      %v2515 = vadd.f32 %v2313, %v2497
      %v2516 = vadd.f32 %v2314, %v2500
      %v2517 = vadd.f32 %v2315, %v2505
      %v2518 = vadd.f32 %v2316, %v2508
      %2519 = vst [vmem:[#allocation2] sm:$0xff] %v2511
      %2520 = vst [vmem:[#allocation2 + $0x8] sm:$0xff] %v2512
      %2521 = vst [vmem:[#allocation2 + $0x10] sm:$0xff] %v2513
      %2522 = vst [vmem:[#allocation2 + $0x18] sm:$0xff] %v2514
      %2523 = vst [vmem:[#allocation2 + $0x20] sm:$0xff] %v2515
      %2524 = vst [vmem:[#allocation2 + $0x28] sm:$0xff] %v2516
      %2525 = vst [vmem:[#allocation2 + $0x30] sm:$0xff] %v2517
      %2526 = vst [vmem:[#allocation2 + $0x38] sm:$0xff] %v2518
      %v2527 = vld [vmem:[#allocation2] sm:$0xff]
      %v2528 = vld [vmem:[#allocation2 + $0x8] sm:$0xff]
      %v2529 = vld [vmem:[#allocation2 + $0x10] sm:$0xff]
      %v2530 = vld [vmem:[#allocation2 + $0x18] sm:$0xff]
      %v2531 = vld [vmem:[#allocation2 + $0x20] sm:$0xff]
      %v2532 = vld [vmem:[#allocation2 + $0x28] sm:$0xff]
      %v2533 = vld [vmem:[#allocation2 + $0x30] sm:$0xff]
      %v2534 = vld [vmem:[#allocation2 + $0x38] sm:$0xff]
      %v2535 = vld [vmem:[%s335] sm:$0x1]
      %v2537 = vlaneseq
      %v2538 = vshrl.u32 %v2537, 7
      %v2539 = vsub.s32 0, %v2538
      %v2540 = vrot.slane %v2535, %v2539
      %v2542 = vadd.f32 %v2527, %v2540
      %v2543 = vadd.f32 %v2528, %v2540
      %v2544 = vadd.f32 %v2529, %v2540
      %v2545 = vadd.f32 %v2530, %v2540
      %v2546 = vadd.f32 %v2531, %v2540
      %v2547 = vadd.f32 %v2532, %v2540
      %v2548 = vadd.f32 %v2533, %v2540
      %v2549 = vadd.f32 %v2534, %v2540
      %v2550 = vld [vmem:[%s341] sm:$0xf]
      %v2551 = vld [vmem:[%s341 + $0x8] sm:$0xf]
      %v2552 = vld [vmem:[%s341 + $0x10] sm:$0xf]
      %v2553 = vld [vmem:[%s341 + $0x18] sm:$0xf]
      %v2554 = vld [vmem:[%s341 + $0x20] sm:$0xf]
      %v2555 = vld [vmem:[%s341 + $0x28] sm:$0xf]
      %v2556 = vld [vmem:[%s341 + $0x30] sm:$0xf]
      %v2557 = vld [vmem:[%s341 + $0x38] sm:$0xf]
      %v2558 = vld [vmem:[%s345] sm:$0xf]
      %v2559 = vld [vmem:[%s345 + $0x4] sm:$0xf]
      %v2560 = vld [vmem:[%s345 + $0x8] sm:$0xf]
      %v2561 = vld [vmem:[%s345 + $0xc] sm:$0xf]
      %v2562 = vld [vmem:[%s345 + $0x10] sm:$0xf]
      %v2563 = vld [vmem:[%s345 + $0x14] sm:$0xf]
      %v2564 = vld [vmem:[%s345 + $0x18] sm:$0xf]
      %v2565 = vld [vmem:[%s345 + $0x1c] sm:$0xf]
      %v2566 = vld [vmem:[%s345 + $0x20] sm:$0xf]
      %v2567 = vld [vmem:[%s345 + $0x24] sm:$0xf]
      %v2568 = vld [vmem:[%s345 + $0x28] sm:$0xf]
      %v2569 = vld [vmem:[%s345 + $0x2c] sm:$0xf]
      %v2570 = vld [vmem:[%s345 + $0x30] sm:$0xf]
      %v2571 = vld [vmem:[%s345 + $0x34] sm:$0xf]
      %v2572 = vld [vmem:[%s345 + $0x38] sm:$0xf]
      %v2573 = vld [vmem:[%s345 + $0x3c] sm:$0xf]
      %v2582 = vunpack.c.l.b16 %v2550
      %v2583 = vunpack.c.l.b16 %v2551
      %v2584 = vunpack.c.l.b16 %v2552
      %v2585 = vunpack.c.l.b16 %v2553
      %v2586 = vunpack.c.l.b16 %v2554
      %v2587 = vunpack.c.l.b16 %v2555
      %v2588 = vunpack.c.l.b16 %v2556
      %v2589 = vunpack.c.l.b16 %v2557
      %v2590 = vpack.c.b16 %v2583, %v2582
      %v2591 = vpack.c.b16 %v2585, %v2584
      %v2592 = vpack.c.b16 %v2587, %v2586
      %v2593 = vpack.c.b16 %v2589, %v2588
      %v2614 = vunpack.c.l.b16 %v2558
      %v2615 = vunpack.c.l.b16 %v2559
      %v2616 = vunpack.c.l.b16 %v2560
      %v2617 = vunpack.c.l.b16 %v2561
      %v2618 = vunpack.c.l.b16 %v2562
      %v2619 = vunpack.c.l.b16 %v2563
      %v2620 = vunpack.c.l.b16 %v2564
      %v2621 = vunpack.c.l.b16 %v2565
      %v2622 = vunpack.c.l.b16 %v2566
      %v2623 = vunpack.c.l.b16 %v2567
      %v2624 = vunpack.c.l.b16 %v2568
      %v2625 = vunpack.c.l.b16 %v2569
      %v2626 = vunpack.c.l.b16 %v2570
      %v2627 = vunpack.c.l.b16 %v2571
      %v2628 = vunpack.c.l.b16 %v2572
      %v2629 = vunpack.c.l.b16 %v2573
      %v2630 = vpack.c.b16 %v2615, %v2614
      %v2631 = vpack.c.b16 %v2617, %v2616
      %v2632 = vpack.c.b16 %v2619, %v2618
      %v2633 = vpack.c.b16 %v2621, %v2620
      %v2634 = vpack.c.b16 %v2623, %v2622
      %v2635 = vpack.c.b16 %v2625, %v2624
      %v2636 = vpack.c.b16 %v2627, %v2626
      %v2637 = vpack.c.b16 %v2629, %v2628
      %2646 = vmatprep.subr.bf16.mxu0 0
      %2647 = vmatpush1.bf16.msra.mxu0 %v2630
      %2648 = vmatprep.subr.bf16.mxu0 0
      %2649 = vmatpush1.bf16.msra.mxu0 %v2631
      %2650 = vmatprep.subr.bf16.mxu0 0
      %2651 = vmatpush1.bf16.msra.mxu0 %v2632
      %2652 = vmatprep.subr.bf16.mxu0 0
      %2653 = vmatpush1.bf16.msra.mxu0 %v2633
      %2654 = vmatprep.subr.bf16.mxu0 0
      %2655 = vmatpush1.bf16.msra.mxu0 %v2634
      %2656 = vmatprep.subr.bf16.mxu0 0
      %2657 = vmatpush1.bf16.msra.mxu0 %v2635
      %2658 = vmatprep.subr.bf16.mxu0 0
      %2659 = vmatpush1.bf16.msra.mxu0 %v2636
      %2660 = vmatprep.subr.bf16.mxu0 0
      %2661 = vmatpush1.bf16.msra.mxu0 %v2637
      %2662 = vmatprep.subr.bf16.mxu0 0
      %2663 = vmatpush1.bf16.msra.mxu0 0
      %2664 = vmatprep.subr.bf16.mxu0 0
      %2665 = vmatpush1.bf16.msra.mxu0 0
      %2666 = vmatprep.subr.bf16.mxu0 0
      %2667 = vmatpush1.bf16.msra.mxu0 0
      %2668 = vmatprep.subr.bf16.mxu0 0
      %2669 = vmatpush1.bf16.msra.mxu0 0
      %2670 = vmatprep.subr.bf16.mxu0 0
      %2671 = vmatpush1.bf16.msra.mxu0 0
      %2672 = vmatprep.subr.bf16.mxu0 0
      %2673 = vmatpush1.bf16.msra.mxu0 0
      %2674 = vmatprep.subr.bf16.mxu0 0
      %2675 = vmatpush1.bf16.msra.mxu0 0
      %2676 = vmatprep.subr.bf16.mxu0 0
      %2677 = vmatpush1.bf16.msra.mxu0 0
      %2678 = vmatprep.mubr.bf16.mxu0 0
      %2679 = vmatmul.mubr.bf16.gmra.mrb[0].mxu0 %v2590
      %v2680 = vpop.f32.mrb[0].mxu0
      %v2681 = vadd.f32 0.0, %v2680
      %v2682 = vpop.f32.mrb[0].mxu0
      %v2683 = vpop.f32.mrb[0].mxu0
      %v2684 = vadd.f32 0.0, %v2683
      %v2685 = vpop.f32.mrb[0].mxu0
      %2686 = vmatprep.mubr.bf16.mxu0 0
      %2687 = vmatmul.mubr.bf16.gmra.mrb[0].mxu0 %v2591
      %v2688 = vpop.f32.mrb[0].mxu0
      %v2689 = vadd.f32 0.0, %v2688
      %v2690 = vpop.f32.mrb[0].mxu0
      %v2691 = vpop.f32.mrb[0].mxu0
      %v2692 = vadd.f32 0.0, %v2691
      %v2693 = vpop.f32.mrb[0].mxu0
      %2694 = vmatprep.mubr.bf16.mxu0 0
      %2695 = vmatmul.mubr.bf16.gmra.mrb[0].mxu0 %v2592
      %v2696 = vpop.f32.mrb[0].mxu0
      %v2697 = vadd.f32 0.0, %v2696
      %v2698 = vpop.f32.mrb[0].mxu0
      %v2699 = vpop.f32.mrb[0].mxu0
      %v2700 = vadd.f32 0.0, %v2699
      %v2701 = vpop.f32.mrb[0].mxu0
      %2702 = vmatprep.mubr.bf16.mxu0 0
      %2703 = vmatmul.mubr.bf16.gmra.mrb[0].mxu0 %v2593
      %v2704 = vpop.f32.mrb[0].mxu0
      %v2705 = vadd.f32 0.0, %v2704
      %v2706 = vpop.f32.mrb[0].mxu0
      %v2707 = vpop.f32.mrb[0].mxu0
      %v2708 = vadd.f32 0.0, %v2707
      %v2709 = vpop.f32.mrb[0].mxu0
      %2710 = vdwg.mxu0
      %v2711 = vadd.f32 %v2542, %v2681
      %v2712 = vadd.f32 %v2543, %v2684
      %v2713 = vadd.f32 %v2544, %v2689
      %v2714 = vadd.f32 %v2545, %v2692
      %v2715 = vadd.f32 %v2546, %v2697
      %v2716 = vadd.f32 %v2547, %v2700
      %v2717 = vadd.f32 %v2548, %v2705
      %v2718 = vadd.f32 %v2549, %v2708
      %v2719 = vld [vmem:[%s348] sm:$0x1]
      %v2721 = vlaneseq
      %v2722 = vshrl.u32 %v2721, 7
      %v2723 = vsub.s32 0, %v2722
      %v2724 = vrot.slane %v2719, %v2723
      %v2726 = vadd.f32 %v2711, %v2724
      %v2727 = vadd.f32 %v2712, %v2724
      %v2728 = vadd.f32 %v2713, %v2724
      %v2729 = vadd.f32 %v2714, %v2724
      %v2730 = vadd.f32 %v2715, %v2724
      %v2731 = vadd.f32 %v2716, %v2724
      %v2732 = vadd.f32 %v2717, %v2724
      %v2733 = vadd.f32 %v2718, %v2724
      %v2734 = vmax.f32 %v2726, 0.0
      %v2735 = vmax.f32 %v2727, 0.0
      %v2736 = vmax.f32 %v2728, 0.0
      %v2737 = vmax.f32 %v2729, 0.0
      %v2738 = vmax.f32 %v2730, 0.0
      %v2739 = vmax.f32 %v2731, 0.0
      %v2740 = vmax.f32 %v2732, 0.0
      %v2741 = vmax.f32 %v2733, 0.0
      %2742 = vst [vmem:[%s356] sm:$0xff] %v2734
      %2743 = vst [vmem:[%s356 + $0x8] sm:$0xff] %v2735
      %2744 = vst [vmem:[%s356 + $0x10] sm:$0xff] %v2736
      %2745 = vst [vmem:[%s356 + $0x18] sm:$0xff] %v2737
      %2746 = vst [vmem:[%s356 + $0x20] sm:$0xff] %v2738
      %2747 = vst [vmem:[%s356 + $0x28] sm:$0xff] %v2739
      %2748 = vst [vmem:[%s356 + $0x30] sm:$0xff] %v2740
      %2749 = vst [vmem:[%s356 + $0x38] sm:$0xff] %v2741
      %p2750 = scmp.lt.s32.totalorder %s22, 1
      %s2751 = scalar_select %p2750, %s22, 1
      %p2752 = scmp.lt.s32.totalorder %s21, 0
      %s2753 = scalar_select %p2752, %s21, 0
      %s2754 = smul.addr %s2751, 8
      %s2755 = sadd.s32 %s2753, %s2754
      %s2756 = smul.addr %s2755, 8
      %s2757 = scalar_lea.vmem %s6, %s2756
      // Predicated region
      $region45: #{residual_block.3} parent=43 // pred_check
        %p2758 = pneg %p205
      $region46: #{residual_block.3} parent=43 // pred_check_branch
        %2760 = sbr.rel (%p2758) target = $region48
      $region47: #{residual_block.3} parent=43 // pred_region
        _
      $region48: #{residual_block.3} parent=43 // pred_fallthru
        _
    $region44: #{residual_block.3} parent=5 // pred_fallthru
      _
    %p2761 = scmp.le.s32.totalorder 2, %s12
    // Predicated region
    $region49: #{residual_block.3} parent=5 // pred_check
      %p2762 = pneg %p2761
    $region50: #{residual_block.3} parent=5 // pred_check_branch
      %2764 = sbr.rel (%p2762) target = $region52
    $region51: #{residual_block.3} parent=5 // pred_region
      %s2765 = ssub.s32 %s12, 2
      // Predicated region
      $region53: #{residual_block.3} parent=51 // pred_check
        %p2766 = pneg %p211
      $region54: #{residual_block.3} parent=51 // pred_check_branch
        %2768 = sbr.rel (%p2766) target = $region56
      $region55: #{residual_block.3} parent=51 // pred_region
        %p2769 = scmp.lt.s32.totalorder %s24, 1
        %s2770 = scalar_select %p2769, %s24, 1
        %p2771 = scmp.lt.s32.totalorder %s23, 0
        %s2772 = scalar_select %p2771, %s23, 0
        %s2773 = smul.addr %s2770, 8
        %s2774 = sadd.s32 %s2772, %s2773
        %s2775 = smul.addr %s2774, 8
        %s2776 = scalar_lea.vmem %s6, %s2775
      $region56: #{residual_block.3} parent=51 // pred_fallthru
        _
    $region52: #{residual_block.3} parent=5 // pred_fallthru
      _
  $region6: #{residual_block.3} parent=0 // loop_footer
    %s16 = sadd.s32 1, %s12
  $region7: #{residual_block.3} parent=0 // loop_footer_branch
    %11 = sbr.rel target = $region3
  $region8: #{residual_block.3} parent=0 // loop_exit
    _

// kernel: residual_block.2
$region0: #{residual_block.2}
  #allocation0 [shape = 'u32[]', space=smem, size = 0x4, offset = 0x4, fixed_abs, tag = 'smem constant byte address 0x4 - core index']
  #allocation1 [shape = 'u32[144,128]{1,0:T(1,128)}', space=vmem, size = 0x12000, scoped, tag = 'internal scratch']
  #allocation2 [shape = 'f32[64,128]{1,0:T(8,128)}', space=vmem, size = 0x8000, scoped, tag = 'scratch operand']
  %s0 = inlined_call_operand.vmem [shape: bf16[2,4,9,9,128], index: 0, kind: input, shape index: {}]
  %s1 = inlined_call_operand.vmem [shape: bf16[9,128,128], index: 1, kind: input, shape index: {}]
  %s2 = inlined_call_operand.vmem [shape: f32[1,128], index: 2, kind: input, shape index: {}]
  %s3 = inlined_call_operand.vmem [shape: bf16[2,64,128], index: 3, kind: output, shape index: {}]
  %s4 = sld [smem:[#allocation0]]
  $region45: #{residual_block.2} parent=0
    _
  %s6 = ssub.s32 1, %s4
  %s7 = scalar_select 0, %s6, %s4
  loop: start=0, step=1, limit=4
  $region2: #{residual_block.2} parent=0 // loop_pre_header
    _
  $region3: #{residual_block.2} parent=0 // loop_header
    %s9 = sphi 0, %s13
    %p10 = scmp.ge.s32.totalorder %s9, 4
    %s16 = sphi 0, %s28
    %s17 = sphi 0, %s24
    %s18 = sphi 0, %s16
    %s19 = sphi 0, %s17
    %s20 = sphi 0, %s18
    %s21 = sphi 0, %s19
    %s31 = sphi 0, %s33
    %s34 = sphi 0, %s31
    %s35 = sphi 0, %s34
    %s51 = sphi 0, %s35
    %s57 = sphi 0, %s59
    %s60 = sphi 0, %s57
    %s61 = sphi 0, %s60
    %s77 = sphi 0, %s61
    %s83 = sphi 0, %s85
    %s86 = sphi 0, %s83
    %s87 = sphi 0, %s86
    %s103 = sphi 0, %s87
    %s111 = sphi 0, %s113
    %s114 = sphi 0, %s111
    %s115 = sphi 0, %s114
    %s131 = sphi 0, %s115
  $region4: #{residual_block.2} parent=0 // loop_header_branch
    %12 = sbr.rel (%p10) target = $region8
  $region5: #{residual_block.2} parent=0 // loop_body
    %s14 = ssub.s32 %s9, 1
    %s15 = ssub.s32 %s9, 2
    %s22 = sadd.s32 1, %s17
    %p23 = scmp.ge.s32.totalorder %s22, 2
    %s24 = scalar_select %p23, 0, %s22
    %s25 = sadd.s32 1, %s16
    %s26 = scalar_select %p23, %s25, %s16
    %p27 = scmp.ge.s32.totalorder %s26, 1
    %s28 = scalar_select %p27, 0, %s26
    %s29 = ssub.s32 %s17, %s24
    %p30 = scmp.eq.s32.totalorder %s29, 0
    %s32 = sadd.s32 %s31, 1
    %s33 = scalar_select %p30, %s31, %s32
    %p36 = pneg %p30
    %p37 = scmp.eq.s32.totalorder %s9, 1
    %p38 = por %p36, %p37
    %p39 = scmp.ne.s32.totalorder %s31, %s34
    %p40 = scmp.eq.s32.totalorder %s9, 0
    %p41 = por %p39, %p40
    %p42 = scmp.ne.s32.totalorder %s31, %s34
    %p43 = scmp.eq.s32.totalorder %s14, 1
    %p44 = por %p42, %p43
    %p45 = scmp.ne.s32.totalorder %s34, %s35
    %p46 = scmp.eq.s32.totalorder %s14, 0
    %p47 = por %p45, %p46
    %p48 = scmp.ne.s32.totalorder %s34, %s35
    %p49 = scmp.eq.s32.totalorder %s15, 1
    %p50 = por %p48, %p49
    %p52 = scmp.ne.s32.totalorder %s35, %s51
    %p53 = scmp.eq.s32.totalorder %s15, 0
    %p54 = por %p52, %p53
    %s55 = ssub.s32 %s16, %s28
    %p56 = scmp.eq.s32.totalorder %s55, 0
    %s58 = sadd.s32 %s57, 1
    %s59 = scalar_select %p56, %s57, %s58
    %p62 = pneg %p56
    %p63 = scmp.eq.s32.totalorder %s9, 1
    %p64 = por %p62, %p63
    %p65 = scmp.ne.s32.totalorder %s57, %s60
    %p66 = scmp.eq.s32.totalorder %s9, 0
    %p67 = por %p65, %p66
    %p68 = scmp.ne.s32.totalorder %s57, %s60
    %p69 = scmp.eq.s32.totalorder %s14, 1
    %p70 = por %p68, %p69
    %p71 = scmp.ne.s32.totalorder %s60, %s61
    %p72 = scmp.eq.s32.totalorder %s14, 0
    %p73 = por %p71, %p72
    %p74 = scmp.ne.s32.totalorder %s60, %s61
    %p75 = scmp.eq.s32.totalorder %s15, 1
    %p76 = por %p74, %p75
    %p78 = scmp.ne.s32.totalorder %s61, %s77
    %p79 = scmp.eq.s32.totalorder %s15, 0
    %p80 = por %p78, %p79
    %s81 = ssub.s32 %s16, %s28
    %p82 = scmp.eq.s32.totalorder %s81, 0
    %s84 = sadd.s32 %s83, 1
    %s85 = scalar_select %p82, %s83, %s84
    %p88 = pneg %p82
    %p89 = scmp.eq.s32.totalorder %s9, 1
    %p90 = por %p88, %p89
    %p91 = scmp.ne.s32.totalorder %s83, %s86
    %p92 = scmp.eq.s32.totalorder %s9, 0
    %p93 = por %p91, %p92
    %p94 = scmp.ne.s32.totalorder %s83, %s86
    %p95 = scmp.eq.s32.totalorder %s14, 1
    %p96 = por %p94, %p95
    %p97 = scmp.ne.s32.totalorder %s86, %s87
    %p98 = scmp.eq.s32.totalorder %s14, 0
    %p99 = por %p97, %p98
    %p100 = scmp.ne.s32.totalorder %s86, %s87
    %p101 = scmp.eq.s32.totalorder %s15, 1
    %p102 = por %p100, %p101
    %p104 = scmp.ne.s32.totalorder %s87, %s103
    %p105 = scmp.eq.s32.totalorder %s15, 0
    %p106 = por %p104, %p105
    %s107 = ssub.s32 %s17, %s24
    %s108 = ssub.s32 %s16, %s28
    %s109 = sor.u32 %s107, %s108
    %p110 = scmp.eq.s32.totalorder %s109, 0
    %s112 = sadd.s32 %s111, 1
    %s113 = scalar_select %p110, %s111, %s112
    %p116 = pneg %p110
    %p117 = scmp.eq.s32.totalorder %s9, 1
    %p118 = por %p116, %p117
    %p119 = scmp.ne.s32.totalorder %s111, %s114
    %p120 = scmp.eq.s32.totalorder %s9, 0
    %p121 = por %p119, %p120
    %p122 = scmp.ne.s32.totalorder %s111, %s114
    %p123 = scmp.eq.s32.totalorder %s14, 1
    %p124 = por %p122, %p123
    %p125 = scmp.ne.s32.totalorder %s114, %s115
    %p126 = scmp.eq.s32.totalorder %s14, 0
    %p127 = por %p125, %p126
    %p128 = scmp.ne.s32.totalorder %s114, %s115
    %p129 = scmp.eq.s32.totalorder %s15, 1
    %p130 = por %p128, %p129
    %p132 = scmp.ne.s32.totalorder %s115, %s131
    %p133 = scmp.eq.s32.totalorder %s15, 0
    %p134 = por %p132, %p133
    %p135 = scmp.le.s32.totalorder 1, %s9
    %p136 = scmp.lt.s32.totalorder %s9, 3
    %p137 = pnand %p135, %p136
    %p138 = pneg %p137
    // Predicated region
    $region9: #{residual_block.2} parent=5 // pred_check
      _
    $region10: #{residual_block.2} parent=5 // pred_check_branch
      %140 = sbr.rel (%p137) target = $region12
    $region11: #{residual_block.2} parent=5 // pred_region
      %s141 = ssub.s32 %s9, 1
      // Predicated region
      $region13: #{residual_block.2} parent=11 // pred_check
        %p142 = pneg %p73
      $region14: #{residual_block.2} parent=11 // pred_check_branch
        %144 = sbr.rel (%p142) target = $region16
      $region15: #{residual_block.2} parent=11 // pred_region
        %p145 = scmp.lt.s32.totalorder %s18, 0
        %s146 = scalar_select %p145, %s18, 0
        %s147 = smul.addr %s146, 4
        %s148 = scalar_lea.vmem %s1, %s147
      $region16: #{residual_block.2} parent=11 // pred_fallthru
        _
      // Predicated region
      $region17: #{residual_block.2} parent=11 // pred_check
        %p149 = pneg %p99
      $region18: #{residual_block.2} parent=11 // pred_check_branch
        %151 = sbr.rel (%p149) target = $region20
      $region19: #{residual_block.2} parent=11 // pred_region
        %p152 = scmp.lt.s32.totalorder %s18, 0
        %s153 = scalar_select %p152, %s18, 0
        %s154 = scalar_lea.vmem %s2, %s153
      $region20: #{residual_block.2} parent=11 // pred_fallthru
        _
    $region12: #{residual_block.2} parent=5 // pred_fallthru
      _
    %p155 = scmp.lt.s32.totalorder %s9, 2
    // Predicated region
    $region21: #{residual_block.2} parent=5 // pred_check
      %p156 = pneg %p155
    $region22: #{residual_block.2} parent=5 // pred_check_branch
      %158 = sbr.rel (%p156) target = $region24
    $region23: #{residual_block.2} parent=5 // pred_region
      // Predicated region
      $region25: #{residual_block.2} parent=23 // pred_check
        %p159 = pneg %p41
      $region26: #{residual_block.2} parent=23 // pred_check_branch
        %161 = sbr.rel (%p159) target = $region28
      $region27: #{residual_block.2} parent=23 // pred_region
        %p162 = scmp.lt.s32.totalorder %s17, 1
        %s163 = scalar_select %p162, %s17, 1
        %s164 = smul.addr %s163, 72
        %s165 = smul.addr %s164, 4
        %s166 = scalar_lea.vmem %s0, %s165
      $region28: #{residual_block.2} parent=23 // pred_fallthru
        _
    $region24: #{residual_block.2} parent=5 // pred_fallthru
      _
    %p167 = scmp.le.s32.totalorder 1, %s9
    %p168 = scmp.lt.s32.totalorder %s9, 3
    %p169 = pnand %p167, %p168
    %p170 = pneg %p169
    // Predicated region
    $region29: #{residual_block.2} parent=5 // pred_check
      _
    $region30: #{residual_block.2} parent=5 // pred_check_branch
      %172 = sbr.rel (%p169) target = $region32
    $region31: #{residual_block.2} parent=5 // pred_region
      %s173 = ssub.s32 %s9, 1
      %p174 = scmp.lt.s32.totalorder %s19, 1
      %s175 = scalar_select %p174, %s19, 1
      %s176 = smul.addr %s175, 72
      %s177 = smul.addr %s176, 4
      %s178 = scalar_lea.vmem %s0, %s177
      %p179 = pneg %p47
      %p180 = pneg %p44
      %p181 = scmp.lt.s32.totalorder %s18, 0
      %s182 = scalar_select %p181, %s18, 0
      %s183 = smul.addr %s182, 4
      %s184 = scalar_lea.vmem %s1, %s183
      %p185 = pneg %p73
      %p186 = pneg %p70
      %p187 = scmp.lt.s32.totalorder %s18, 0
      %s188 = scalar_select %p187, %s18, 0
      %s189 = scalar_lea.vmem %s2, %s188
      %p190 = pneg %p99
      %p191 = pneg %p96
      %p192 = pneg %p127
      %p193 = pneg %p124
      %p194 = scmp.lt.s32.totalorder %s19, 1
      %s195 = scalar_select %p194, %s19, 1
      %p196 = scmp.lt.s32.totalorder %s18, 0
      %s197 = scalar_select %p196, %s18, 0
      %s198 = smul.addr %s195, 8
      %s199 = sadd.s32 %s197, %s198
      %s200 = smul.addr %s199, 4
      %s201 = scalar_lea.vmem %s3, %s200
      %p202 = scmp.lt.s32.totalorder %s19, 1
      %s203 = scalar_select %p202, %s19, 1
      %s204 = smul.addr %s203, 72
      %s205 = smul.addr %s204, 4
      %s206 = scalar_lea.vmem %s0, %s205
      %p207 = scmp.lt.s32.totalorder %s18, 0
      %s208 = scalar_select %p207, %s18, 0
      %s209 = smul.addr %s208, 4
      %s210 = scalar_lea.vmem %s1, %s209
      %p211 = scmp.lt.s32.totalorder %s18, 0
      %s212 = scalar_select %p211, %s18, 0
      %s213 = scalar_lea.vmem %s2, %s212
      %p214 = scmp.lt.s32.totalorder %s19, 1
      %s215 = scalar_select %p214, %s19, 1
      %p216 = scmp.lt.s32.totalorder %s18, 0
      %s217 = scalar_select %p216, %s18, 0
      %s218 = smul.addr %s215, 8
      %s219 = sadd.s32 %s217, %s218
      %s220 = smul.addr %s219, 4
      %s221 = scalar_lea.vmem %s3, %s220
      %223 = vst [vmem:[#allocation2] sm:$0xff] 0.0
      %224 = vst [vmem:[#allocation2 + $0x8] sm:$0xff] 0.0
      %225 = vst [vmem:[#allocation2 + $0x10] sm:$0xff] 0.0
      %226 = vst [vmem:[#allocation2 + $0x18] sm:$0xff] 0.0
      %227 = vst [vmem:[#allocation2 + $0x20] sm:$0xff] 0.0
      %228 = vst [vmem:[#allocation2 + $0x28] sm:$0xff] 0.0
      %229 = vst [vmem:[#allocation2 + $0x30] sm:$0xff] 0.0
      %230 = vst [vmem:[#allocation2 + $0x38] sm:$0xff] 0.0
      %v231 = vld [vmem:[%s206] sm:$0xf]
      %v232 = vld [vmem:[%s206 + $0x8] sm:$0xf]
      %v233 = vld [vmem:[%s206 + $0x10] sm:$0xf]
      %v234 = vld [vmem:[%s206 + $0x18] sm:$0xf]
      %v235 = vld [vmem:[%s206 + $0x20] sm:$0xf]
      %v236 = vld [vmem:[%s206 + $0x28] sm:$0xf]
      %v237 = vld [vmem:[%s206 + $0x30] sm:$0xf]
      %v238 = vld [vmem:[%s206 + $0x38] sm:$0xf]
      %v239 = vld [vmem:[#allocation2] sm:$0xff]
      %v240 = vld [vmem:[#allocation2 + $0x8] sm:$0xff]
      %v241 = vld [vmem:[#allocation2 + $0x10] sm:$0xff]
      %v242 = vld [vmem:[#allocation2 + $0x18] sm:$0xff]
      %v243 = vld [vmem:[#allocation2 + $0x20] sm:$0xff]
      %v244 = vld [vmem:[#allocation2 + $0x28] sm:$0xff]
      %v245 = vld [vmem:[#allocation2 + $0x30] sm:$0xff]
      %v246 = vld [vmem:[#allocation2 + $0x38] sm:$0xff]
      %v247 = vld [vmem:[%s210] sm:$0xf]
      %v248 = vld [vmem:[%s210 + $0x4] sm:$0xf]
      %v249 = vld [vmem:[%s210 + $0x8] sm:$0xf]
      %v250 = vld [vmem:[%s210 + $0xc] sm:$0xf]
      %v251 = vld [vmem:[%s210 + $0x10] sm:$0xf]
      %v252 = vld [vmem:[%s210 + $0x14] sm:$0xf]
      %v253 = vld [vmem:[%s210 + $0x18] sm:$0xf]
      %v254 = vld [vmem:[%s210 + $0x1c] sm:$0xf]
      %v255 = vld [vmem:[%s210 + $0x20] sm:$0xf]
      %v256 = vld [vmem:[%s210 + $0x24] sm:$0xf]
      %v257 = vld [vmem:[%s210 + $0x28] sm:$0xf]
      %v258 = vld [vmem:[%s210 + $0x2c] sm:$0xf]
      %v259 = vld [vmem:[%s210 + $0x30] sm:$0xf]
      %v260 = vld [vmem:[%s210 + $0x34] sm:$0xf]
      %v261 = vld [vmem:[%s210 + $0x38] sm:$0xf]
      %v262 = vld [vmem:[%s210 + $0x3c] sm:$0xf]
      %v271 = vunpack.c.l.b16 %v231
      %v272 = vunpack.c.l.b16 %v232
      %v273 = vunpack.c.l.b16 %v233
      %v274 = vunpack.c.l.b16 %v234
      %v275 = vunpack.c.l.b16 %v235
      %v276 = vunpack.c.l.b16 %v236
      %v277 = vunpack.c.l.b16 %v237
      %v278 = vunpack.c.l.b16 %v238
      %v279 = vpack.c.b16 %v272, %v271
      %v280 = vpack.c.b16 %v274, %v273
      %v281 = vpack.c.b16 %v276, %v275
      %v282 = vpack.c.b16 %v278, %v277
      %v303 = vunpack.c.l.b16 %v247
      %v304 = vunpack.c.l.b16 %v248
      %v305 = vunpack.c.l.b16 %v249
      %v306 = vunpack.c.l.b16 %v250
      %v307 = vunpack.c.l.b16 %v251
      %v308 = vunpack.c.l.b16 %v252
      %v309 = vunpack.c.l.b16 %v253
      %v310 = vunpack.c.l.b16 %v254
      %v311 = vunpack.c.l.b16 %v255
      %v312 = vunpack.c.l.b16 %v256
      %v313 = vunpack.c.l.b16 %v257
      %v314 = vunpack.c.l.b16 %v258
      %v315 = vunpack.c.l.b16 %v259
      %v316 = vunpack.c.l.b16 %v260
      %v317 = vunpack.c.l.b16 %v261
      %v318 = vunpack.c.l.b16 %v262
      %v319 = vpack.c.b16 %v304, %v303
      %v320 = vpack.c.b16 %v306, %v305
      %v321 = vpack.c.b16 %v308, %v307
      %v322 = vpack.c.b16 %v310, %v309
      %v323 = vpack.c.b16 %v312, %v311
      %v324 = vpack.c.b16 %v314, %v313
      %v325 = vpack.c.b16 %v316, %v315
      %v326 = vpack.c.b16 %v318, %v317
      %335 = vmatprep.subr.bf16.mxu0 0
      %336 = vmatpush1.bf16.msra.mxu0 %v319
      %337 = vmatprep.subr.bf16.mxu0 0
      %338 = vmatpush1.bf16.msra.mxu0 %v320
      %339 = vmatprep.subr.bf16.mxu0 0
      %340 = vmatpush1.bf16.msra.mxu0 %v321
      %341 = vmatprep.subr.bf16.mxu0 0
      %342 = vmatpush1.bf16.msra.mxu0 %v322
      %343 = vmatprep.subr.bf16.mxu0 0
      %344 = vmatpush1.bf16.msra.mxu0 %v323
      %345 = vmatprep.subr.bf16.mxu0 0
      %346 = vmatpush1.bf16.msra.mxu0 %v324
      %347 = vmatprep.subr.bf16.mxu0 0
      %348 = vmatpush1.bf16.msra.mxu0 %v325
      %349 = vmatprep.subr.bf16.mxu0 0
      %350 = vmatpush1.bf16.msra.mxu0 %v326
      %351 = vmatprep.subr.bf16.mxu0 0
      %352 = vmatpush1.bf16.msra.mxu0 0
      %353 = vmatprep.subr.bf16.mxu0 0
      %354 = vmatpush1.bf16.msra.mxu0 0
      %355 = vmatprep.subr.bf16.mxu0 0
      %356 = vmatpush1.bf16.msra.mxu0 0
      %357 = vmatprep.subr.bf16.mxu0 0
      %358 = vmatpush1.bf16.msra.mxu0 0
      %359 = vmatprep.subr.bf16.mxu0 0
      %360 = vmatpush1.bf16.msra.mxu0 0
      %361 = vmatprep.subr.bf16.mxu0 0
      %362 = vmatpush1.bf16.msra.mxu0 0
      %363 = vmatprep.subr.bf16.mxu0 0
      %364 = vmatpush1.bf16.msra.mxu0 0
      %365 = vmatprep.subr.bf16.mxu0 0
      %366 = vmatpush1.bf16.msra.mxu0 0
      %367 = vmatprep.mubr.bf16.mxu0 0
      %368 = vmatmul.mubr.bf16.gmra.mrb[0].mxu0 %v279
      %v369 = vpop.f32.mrb[0].mxu0
      %v370 = vadd.f32 0.0, %v369
      %v371 = vpop.f32.mrb[0].mxu0
      %v372 = vpop.f32.mrb[0].mxu0
      %v373 = vadd.f32 0.0, %v372
      %v374 = vpop.f32.mrb[0].mxu0
      %375 = vmatprep.mubr.bf16.mxu0 0
      %376 = vmatmul.mubr.bf16.gmra.mrb[0].mxu0 %v280
      %v377 = vpop.f32.mrb[0].mxu0
      %v378 = vadd.f32 0.0, %v377
      %v379 = vpop.f32.mrb[0].mxu0
      %v380 = vpop.f32.mrb[0].mxu0
      %v381 = vadd.f32 0.0, %v380
      %v382 = vpop.f32.mrb[0].mxu0
      %383 = vmatprep.mubr.bf16.mxu0 0
      %384 = vmatmul.mubr.bf16.gmra.mrb[0].mxu0 %v281
      %v385 = vpop.f32.mrb[0].mxu0
      %v386 = vadd.f32 0.0, %v385
      %v387 = vpop.f32.mrb[0].mxu0
      %v388 = vpop.f32.mrb[0].mxu0
      %v389 = vadd.f32 0.0, %v388
      %v390 = vpop.f32.mrb[0].mxu0
      %391 = vmatprep.mubr.bf16.mxu0 0
      %392 = vmatmul.mubr.bf16.gmra.mrb[0].mxu0 %v282
      %v393 = vpop.f32.mrb[0].mxu0
      %v394 = vadd.f32 0.0, %v393
      %v395 = vpop.f32.mrb[0].mxu0
      %v396 = vpop.f32.mrb[0].mxu0
      %v397 = vadd.f32 0.0, %v396
      %v398 = vpop.f32.mrb[0].mxu0
      %399 = vdwg.mxu0
      %v400 = vadd.f32 %v239, %v370
      %v401 = vadd.f32 %v240, %v373
      %v402 = vadd.f32 %v241, %v378
      %v403 = vadd.f32 %v242, %v381
      %v404 = vadd.f32 %v243, %v386
      %v405 = vadd.f32 %v244, %v389
      %v406 = vadd.f32 %v245, %v394
      %v407 = vadd.f32 %v246, %v397
      %408 = vst [vmem:[#allocation2] sm:$0xff] %v400
      %409 = vst [vmem:[#allocation2 + $0x8] sm:$0xff] %v401
      %410 = vst [vmem:[#allocation2 + $0x10] sm:$0xff] %v402
      %411 = vst [vmem:[#allocation2 + $0x18] sm:$0xff] %v403
      %412 = vst [vmem:[#allocation2 + $0x20] sm:$0xff] %v404
      %413 = vst [vmem:[#allocation2 + $0x28] sm:$0xff] %v405
      %414 = vst [vmem:[#allocation2 + $0x30] sm:$0xff] %v406
      %415 = vst [vmem:[#allocation2 + $0x38] sm:$0xff] %v407
      %s416 = scalar_lea.vmem %s206, 72
      %v417 = vld [vmem:[%s416] sm:$0xf]
      %v418 = vld [vmem:[%s416 + $0x8] sm:$0xf]
      %v419 = vld [vmem:[%s416 + $0x10] sm:$0xf]
      %v420 = vld [vmem:[%s416 + $0x18] sm:$0xf]
      %v421 = vld [vmem:[%s416 + $0x20] sm:$0xf]
      %v422 = vld [vmem:[%s416 + $0x28] sm:$0xf]
      %v423 = vld [vmem:[%s416 + $0x30] sm:$0xf]
      %v424 = vld [vmem:[%s416 + $0x38] sm:$0xf]
      %v425 = vld [vmem:[#allocation2] sm:$0xff]
      %v426 = vld [vmem:[#allocation2 + $0x8] sm:$0xff]
      %v427 = vld [vmem:[#allocation2 + $0x10] sm:$0xff]
      %v428 = vld [vmem:[#allocation2 + $0x18] sm:$0xff]
      %v429 = vld [vmem:[#allocation2 + $0x20] sm:$0xff]
      %v430 = vld [vmem:[#allocation2 + $0x28] sm:$0xff]
      %v431 = vld [vmem:[#allocation2 + $0x30] sm:$0xff]
      %v432 = vld [vmem:[#allocation2 + $0x38] sm:$0xff]
      %s433 = scalar_lea.vmem %s210, 64
      %v434 = vld [vmem:[%s433] sm:$0xf]
      %v435 = vld [vmem:[%s433 + $0x4] sm:$0xf]
      %v436 = vld [vmem:[%s433 + $0x8] sm:$0xf]
      %v437 = vld [vmem:[%s433 + $0xc] sm:$0xf]
      %v438 = vld [vmem:[%s433 + $0x10] sm:$0xf]
      %v439 = vld [vmem:[%s433 + $0x14] sm:$0xf]
      %v440 = vld [vmem:[%s433 + $0x18] sm:$0xf]
      %v441 = vld [vmem:[%s433 + $0x1c] sm:$0xf]
      %v442 = vld [vmem:[%s433 + $0x20] sm:$0xf]
      %v443 = vld [vmem:[%s433 + $0x24] sm:$0xf]
      %v444 = vld [vmem:[%s433 + $0x28] sm:$0xf]
      %v445 = vld [vmem:[%s433 + $0x2c] sm:$0xf]
      %v446 = vld [vmem:[%s433 + $0x30] sm:$0xf]
      %v447 = vld [vmem:[%s433 + $0x34] sm:$0xf]
      %v448 = vld [vmem:[%s433 + $0x38] sm:$0xf]
      %v449 = vld [vmem:[%s433 + $0x3c] sm:$0xf]
      %v458 = vunpack.c.l.b16 %v417
      %v459 = vunpack.c.l.b16 %v418
      %v460 = vunpack.c.l.b16 %v419
      %v461 = vunpack.c.l.b16 %v420
      %v462 = vunpack.c.l.b16 %v421
      %v463 = vunpack.c.l.b16 %v422
      %v464 = vunpack.c.l.b16 %v423
      %v465 = vunpack.c.l.b16 %v424
      %v466 = vpack.c.b16 %v459, %v458
      %v467 = vpack.c.b16 %v461, %v460
      %v468 = vpack.c.b16 %v463, %v462
      %v469 = vpack.c.b16 %v465, %v464
      %v490 = vunpack.c.l.b16 %v434
      %v491 = vunpack.c.l.b16 %v435
      %v492 = vunpack.c.l.b16 %v436
      %v493 = vunpack.c.l.b16 %v437
      %v494 = vunpack.c.l.b16 %v438
      %v495 = vunpack.c.l.b16 %v439
      %v496 = vunpack.c.l.b16 %v440
      %v497 = vunpack.c.l.b16 %v441
      %v498 = vunpack.c.l.b16 %v442
      %v499 = vunpack.c.l.b16 %v443
      %v500 = vunpack.c.l.b16 %v444
      %v501 = vunpack.c.l.b16 %v445
      %v502 = vunpack.c.l.b16 %v446
      %v503 = vunpack.c.l.b16 %v447
      %v504 = vunpack.c.l.b16 %v448
      %v505 = vunpack.c.l.b16 %v449
      %v506 = vpack.c.b16 %v491, %v490
      %v507 = vpack.c.b16 %v493, %v492
      %v508 = vpack.c.b16 %v495, %v494
      %v509 = vpack.c.b16 %v497, %v496
      %v510 = vpack.c.b16 %v499, %v498
      %v511 = vpack.c.b16 %v501, %v500
      %v512 = vpack.c.b16 %v503, %v502
      %v513 = vpack.c.b16 %v505, %v504
      %522 = vmatprep.subr.bf16.mxu0 0
      %523 = vmatpush1.bf16.msra.mxu0 %v506
      %524 = vmatprep.subr.bf16.mxu0 0
      %525 = vmatpush1.bf16.msra.mxu0 %v507
      %526 = vmatprep.subr.bf16.mxu0 0
      %527 = vmatpush1.bf16.msra.mxu0 %v508
      %528 = vmatprep.subr.bf16.mxu0 0
      %529 = vmatpush1.bf16.msra.mxu0 %v509
      %530 = vmatprep.subr.bf16.mxu0 0
      %531 = vmatpush1.bf16.msra.mxu0 %v510
      %532 = vmatprep.subr.bf16.mxu0 0
      %533 = vmatpush1.bf16.msra.mxu0 %v511
      %534 = vmatprep.subr.bf16.mxu0 0
      %535 = vmatpush1.bf16.msra.mxu0 %v512
      %536 = vmatprep.subr.bf16.mxu0 0
      %537 = vmatpush1.bf16.msra.mxu0 %v513
      %538 = vmatprep.subr.bf16.mxu0 0
      %539 = vmatpush1.bf16.msra.mxu0 0
      %540 = vmatprep.subr.bf16.mxu0 0
      %541 = vmatpush1.bf16.msra.mxu0 0
      %542 = vmatprep.subr.bf16.mxu0 0
      %543 = vmatpush1.bf16.msra.mxu0 0
      %544 = vmatprep.subr.bf16.mxu0 0
      %545 = vmatpush1.bf16.msra.mxu0 0
      %546 = vmatprep.subr.bf16.mxu0 0
      %547 = vmatpush1.bf16.msra.mxu0 0
      %548 = vmatprep.subr.bf16.mxu0 0
      %549 = vmatpush1.bf16.msra.mxu0 0
      %550 = vmatprep.subr.bf16.mxu0 0
      %551 = vmatpush1.bf16.msra.mxu0 0
      %552 = vmatprep.subr.bf16.mxu0 0
      %553 = vmatpush1.bf16.msra.mxu0 0
      %554 = vmatprep.mubr.bf16.mxu0 0
      %555 = vmatmul.mubr.bf16.gmra.mrb[0].mxu0 %v466
      %v556 = vpop.f32.mrb[0].mxu0
      %v557 = vadd.f32 0.0, %v556
      %v558 = vpop.f32.mrb[0].mxu0
      %v559 = vpop.f32.mrb[0].mxu0
      %v560 = vadd.f32 0.0, %v559
      %v561 = vpop.f32.mrb[0].mxu0
      %562 = vmatprep.mubr.bf16.mxu0 0
      %563 = vmatmul.mubr.bf16.gmra.mrb[0].mxu0 %v467
      %v564 = vpop.f32.mrb[0].mxu0
      %v565 = vadd.f32 0.0, %v564
      %v566 = vpop.f32.mrb[0].mxu0
      %v567 = vpop.f32.mrb[0].mxu0
      %v568 = vadd.f32 0.0, %v567
      %v569 = vpop.f32.mrb[0].mxu0
      %570 = vmatprep.mubr.bf16.mxu0 0
      %571 = vmatmul.mubr.bf16.gmra.mrb[0].mxu0 %v468
      %v572 = vpop.f32.mrb[0].mxu0
      %v573 = vadd.f32 0.0, %v572
      %v574 = vpop.f32.mrb[0].mxu0
      %v575 = vpop.f32.mrb[0].mxu0
      %v576 = vadd.f32 0.0, %v575
      %v577 = vpop.f32.mrb[0].mxu0
      %578 = vmatprep.mubr.bf16.mxu0 0
      %579 = vmatmul.mubr.bf16.gmra.mrb[0].mxu0 %v469
      %v580 = vpop.f32.mrb[0].mxu0
      %v581 = vadd.f32 0.0, %v580
      %v582 = vpop.f32.mrb[0].mxu0
      %v583 = vpop.f32.mrb[0].mxu0
      %v584 = vadd.f32 0.0, %v583
      %v585 = vpop.f32.mrb[0].mxu0
      %586 = vdwg.mxu0
      %v587 = vadd.f32 %v425, %v557
      %v588 = vadd.f32 %v426, %v560
      %v589 = vadd.f32 %v427, %v565
      %v590 = vadd.f32 %v428, %v568
      %v591 = vadd.f32 %v429, %v573
      %v592 = vadd.f32 %v430, %v576
      %v593 = vadd.f32 %v431, %v581
      %v594 = vadd.f32 %v432, %v584
      %595 = vst [vmem:[#allocation2] sm:$0xff] %v587
      %596 = vst [vmem:[#allocation2 + $0x8] sm:$0xff] %v588
      %597 = vst [vmem:[#allocation2 + $0x10] sm:$0xff] %v589
      %598 = vst [vmem:[#allocation2 + $0x18] sm:$0xff] %v590
      %599 = vst [vmem:[#allocation2 + $0x20] sm:$0xff] %v591
      %600 = vst [vmem:[#allocation2 + $0x28] sm:$0xff] %v592
      %601 = vst [vmem:[#allocation2 + $0x30] sm:$0xff] %v593
      %602 = vst [vmem:[#allocation2 + $0x38] sm:$0xff] %v594
      %v603 = vld [vmem:[%s206] sm:$0xf]
      %v604 = vld [vmem:[%s206 + $0x4] sm:$0x1]
      %v605 = vld [vmem:[%s206 + $0x8] sm:$0xf]
      %v606 = vld [vmem:[%s206 + $0xc] sm:$0x1]
      %v607 = vld [vmem:[%s206 + $0x10] sm:$0xf]
      %v608 = vld [vmem:[%s206 + $0x14] sm:$0x1]
      %v609 = vld [vmem:[%s206 + $0x18] sm:$0xf]
      %v610 = vld [vmem:[%s206 + $0x1c] sm:$0x1]
      %v611 = vld [vmem:[%s206 + $0x20] sm:$0xf]
      %v612 = vld [vmem:[%s206 + $0x24] sm:$0x1]
      %v613 = vld [vmem:[%s206 + $0x28] sm:$0xf]
      %v614 = vld [vmem:[%s206 + $0x2c] sm:$0x1]
      %v615 = vld [vmem:[%s206 + $0x30] sm:$0xf]
      %v616 = vld [vmem:[%s206 + $0x34] sm:$0x1]
      %v617 = vld [vmem:[%s206 + $0x38] sm:$0xf]
      %v618 = vld [vmem:[%s206 + $0x3c] sm:$0x1]
      %v619 = vld [vmem:[#allocation2] sm:$0xff]
      %v620 = vld [vmem:[#allocation2 + $0x8] sm:$0xff]
      %v621 = vld [vmem:[#allocation2 + $0x10] sm:$0xff]
      %v622 = vld [vmem:[#allocation2 + $0x18] sm:$0xff]
      %v623 = vld [vmem:[#allocation2 + $0x20] sm:$0xff]
      %v624 = vld [vmem:[#allocation2 + $0x28] sm:$0xff]
      %v625 = vld [vmem:[#allocation2 + $0x30] sm:$0xff]
      %v626 = vld [vmem:[#allocation2 + $0x38] sm:$0xff]
      %vm627 = vsmask.f32 3328
      %vm628 = vsmask.f32 7440
      %vm629 = vmor %vm627, %vm628
      %v631 = vshrl.u32 %v603, 16
      %v633 = vrot.slane %v631, 4
      %v634 = vshll.u32 %v603, 16
      %v636 = vrot.slane %v634, 5
      %v637 = vor.u32 %v633, %v636
      %v638 = vrot.slane %v637, 4
      %v640 = vshll.u32 %v604, 16
      %v642 = vrot.slane %v640, 5
      %v643 = vsel %vm629, %v638, %v642
      %v645 = vshrl.u32 %v605, 16
      %v647 = vrot.slane %v645, 4
      %v648 = vshll.u32 %v605, 16
      %v650 = vrot.slane %v648, 5
      %v651 = vor.u32 %v647, %v650
      %v652 = vrot.slane %v651, 4
      %v654 = vshll.u32 %v606, 16
      %v656 = vrot.slane %v654, 5
      %v657 = vsel %vm629, %v652, %v656
      %v659 = vshrl.u32 %v607, 16
      %v661 = vrot.slane %v659, 4
      %v662 = vshll.u32 %v607, 16
      %v664 = vrot.slane %v662, 5
      %v665 = vor.u32 %v661, %v664
      %v666 = vrot.slane %v665, 4
      %v668 = vshll.u32 %v608, 16
      %v670 = vrot.slane %v668, 5
      %v671 = vsel %vm629, %v666, %v670
      %v673 = vshrl.u32 %v609, 16
      %v675 = vrot.slane %v673, 4
      %v676 = vshll.u32 %v609, 16
      %v678 = vrot.slane %v676, 5
      %v679 = vor.u32 %v675, %v678
      %v680 = vrot.slane %v679, 4
      %v682 = vshll.u32 %v610, 16
      %v684 = vrot.slane %v682, 5
      %v685 = vsel %vm629, %v680, %v684
      %v687 = vshrl.u32 %v611, 16
      %v689 = vrot.slane %v687, 4
      %v690 = vshll.u32 %v611, 16
      %v692 = vrot.slane %v690, 5
      %v693 = vor.u32 %v689, %v692
      %v694 = vrot.slane %v693, 4
      %v696 = vshll.u32 %v612, 16
      %v698 = vrot.slane %v696, 5
      %v699 = vsel %vm629, %v694, %v698
      %v701 = vshrl.u32 %v613, 16
      %v703 = vrot.slane %v701, 4
      %v704 = vshll.u32 %v613, 16
      %v706 = vrot.slane %v704, 5
      %v707 = vor.u32 %v703, %v706
      %v708 = vrot.slane %v707, 4
      %v710 = vshll.u32 %v614, 16
      %v712 = vrot.slane %v710, 5
      %v713 = vsel %vm629, %v708, %v712
      %v715 = vshrl.u32 %v615, 16
      %v717 = vrot.slane %v715, 4
      %v718 = vshll.u32 %v615, 16
      %v720 = vrot.slane %v718, 5
      %v721 = vor.u32 %v717, %v720
      %v722 = vrot.slane %v721, 4
      %v724 = vshll.u32 %v616, 16
      %v726 = vrot.slane %v724, 5
      %v727 = vsel %vm629, %v722, %v726
      %v729 = vshrl.u32 %v617, 16
      %v731 = vrot.slane %v729, 4
      %v732 = vshll.u32 %v617, 16
      %v734 = vrot.slane %v732, 5
      %v735 = vor.u32 %v731, %v734
      %v736 = vrot.slane %v735, 4
      %v738 = vshll.u32 %v618, 16
      %v740 = vrot.slane %v738, 5
      %v741 = vsel %vm629, %v736, %v740
      %s742 = scalar_lea.vmem %s210, 128
      %v743 = vld [vmem:[%s742] sm:$0xf]
      %v744 = vld [vmem:[%s742 + $0x4] sm:$0xf]
      %v745 = vld [vmem:[%s742 + $0x8] sm:$0xf]
      %v746 = vld [vmem:[%s742 + $0xc] sm:$0xf]
      %v747 = vld [vmem:[%s742 + $0x10] sm:$0xf]
      %v748 = vld [vmem:[%s742 + $0x14] sm:$0xf]
      %v749 = vld [vmem:[%s742 + $0x18] sm:$0xf]
      %v750 = vld [vmem:[%s742 + $0x1c] sm:$0xf]
      %v751 = vld [vmem:[%s742 + $0x20] sm:$0xf]
      %v752 = vld [vmem:[%s742 + $0x24] sm:$0xf]
      %v753 = vld [vmem:[%s742 + $0x28] sm:$0xf]
      %v754 = vld [vmem:[%s742 + $0x2c] sm:$0xf]
      %v755 = vld [vmem:[%s742 + $0x30] sm:$0xf]
      %v756 = vld [vmem:[%s742 + $0x34] sm:$0xf]
      %v757 = vld [vmem:[%s742 + $0x38] sm:$0xf]
      %v758 = vld [vmem:[%s742 + $0x3c] sm:$0xf]
      %v759 = vunpack.c.l.b16 %v643
      %v760 = vunpack.c.l.b16 %v657
      %v761 = vunpack.c.l.b16 %v671
      %v762 = vunpack.c.l.b16 %v685
      %v763 = vunpack.c.l.b16 %v699
      %v764 = vunpack.c.l.b16 %v713
      %v765 = vunpack.c.l.b16 %v727
      %v766 = vunpack.c.l.b16 %v741
      %v767 = vpack.c.b16 %v760, %v759
      %v768 = vpack.c.b16 %v762, %v761
      %v769 = vpack.c.b16 %v764, %v763
      %v770 = vpack.c.b16 %v766, %v765
      %v791 = vunpack.c.l.b16 %v743
      %v792 = vunpack.c.l.b16 %v744
      %v793 = vunpack.c.l.b16 %v745
      %v794 = vunpack.c.l.b16 %v746
      %v795 = vunpack.c.l.b16 %v747
      %v796 = vunpack.c.l.b16 %v748
      %v797 = vunpack.c.l.b16 %v749
      %v798 = vunpack.c.l.b16 %v750
      %v799 = vunpack.c.l.b16 %v751
      %v800 = vunpack.c.l.b16 %v752
      %v801 = vunpack.c.l.b16 %v753
      %v802 = vunpack.c.l.b16 %v754
      %v803 = vunpack.c.l.b16 %v755
      %v804 = vunpack.c.l.b16 %v756
      %v805 = vunpack.c.l.b16 %v757
      %v806 = vunpack.c.l.b16 %v758
      %v807 = vpack.c.b16 %v792, %v791
      %v808 = vpack.c.b16 %v794, %v793
      %v809 = vpack.c.b16 %v796, %v795
      %v810 = vpack.c.b16 %v798, %v797
      %v811 = vpack.c.b16 %v800, %v799
      %v812 = vpack.c.b16 %v802, %v801
      %v813 = vpack.c.b16 %v804, %v803
      %v814 = vpack.c.b16 %v806, %v805
      %823 = vmatprep.subr.bf16.mxu0 0
      %824 = vmatpush1.bf16.msra.mxu0 %v807
      %825 = vmatprep.subr.bf16.mxu0 0
      %826 = vmatpush1.bf16.msra.mxu0 %v808
      %827 = vmatprep.subr.bf16.mxu0 0
      %828 = vmatpush1.bf16.msra.mxu0 %v809
      %829 = vmatprep.subr.bf16.mxu0 0
      %830 = vmatpush1.bf16.msra.mxu0 %v810
      %831 = vmatprep.subr.bf16.mxu0 0
      %832 = vmatpush1.bf16.msra.mxu0 %v811
      %833 = vmatprep.subr.bf16.mxu0 0
      %834 = vmatpush1.bf16.msra.mxu0 %v812
      %835 = vmatprep.subr.bf16.mxu0 0
      %836 = vmatpush1.bf16.msra.mxu0 %v813
      %837 = vmatprep.subr.bf16.mxu0 0
      %838 = vmatpush1.bf16.msra.mxu0 %v814
      %839 = vmatprep.subr.bf16.mxu0 0
      %840 = vmatpush1.bf16.msra.mxu0 0
      %841 = vmatprep.subr.bf16.mxu0 0
      %842 = vmatpush1.bf16.msra.mxu0 0
      %843 = vmatprep.subr.bf16.mxu0 0
      %844 = vmatpush1.bf16.msra.mxu0 0
      %845 = vmatprep.subr.bf16.mxu0 0
      %846 = vmatpush1.bf16.msra.mxu0 0
      %847 = vmatprep.subr.bf16.mxu0 0
      %848 = vmatpush1.bf16.msra.mxu0 0
      %849 = vmatprep.subr.bf16.mxu0 0
      %850 = vmatpush1.bf16.msra.mxu0 0
      %851 = vmatprep.subr.bf16.mxu0 0
      %852 = vmatpush1.bf16.msra.mxu0 0
      %853 = vmatprep.subr.bf16.mxu0 0
      %854 = vmatpush1.bf16.msra.mxu0 0
      %855 = vmatprep.mubr.bf16.mxu0 0
      %856 = vmatmul.mubr.bf16.gmra.mrb[0].mxu0 %v767
      %v857 = vpop.f32.mrb[0].mxu0
      %v858 = vadd.f32 0.0, %v857
      %v859 = vpop.f32.mrb[0].mxu0
      %v860 = vpop.f32.mrb[0].mxu0
      %v861 = vadd.f32 0.0, %v860
      %v862 = vpop.f32.mrb[0].mxu0
      %863 = vmatprep.mubr.bf16.mxu0 0
      %864 = vmatmul.mubr.bf16.gmra.mrb[0].mxu0 %v768
      %v865 = vpop.f32.mrb[0].mxu0
      %v866 = vadd.f32 0.0, %v865
      %v867 = vpop.f32.mrb[0].mxu0
      %v868 = vpop.f32.mrb[0].mxu0
      %v869 = vadd.f32 0.0, %v868
      %v870 = vpop.f32.mrb[0].mxu0
      %871 = vmatprep.mubr.bf16.mxu0 0
      %872 = vmatmul.mubr.bf16.gmra.mrb[0].mxu0 %v769
      %v873 = vpop.f32.mrb[0].mxu0
      %v874 = vadd.f32 0.0, %v873
      %v875 = vpop.f32.mrb[0].mxu0
      %v876 = vpop.f32.mrb[0].mxu0
      %v877 = vadd.f32 0.0, %v876
      %v878 = vpop.f32.mrb[0].mxu0
      %879 = vmatprep.mubr.bf16.mxu0 0
      %880 = vmatmul.mubr.bf16.gmra.mrb[0].mxu0 %v770
      %v881 = vpop.f32.mrb[0].mxu0
      %v882 = vadd.f32 0.0, %v881
      %v883 = vpop.f32.mrb[0].mxu0
      %v884 = vpop.f32.mrb[0].mxu0
      %v885 = vadd.f32 0.0, %v884
      %v886 = vpop.f32.mrb[0].mxu0
      %887 = vdwg.mxu0
      %v888 = vadd.f32 %v619, %v858
      %v889 = vadd.f32 %v620, %v861
      %v890 = vadd.f32 %v621, %v866
      %v891 = vadd.f32 %v622, %v869
      %v892 = vadd.f32 %v623, %v874
      %v893 = vadd.f32 %v624, %v877
      %v894 = vadd.f32 %v625, %v882
      %v895 = vadd.f32 %v626, %v885
      %896 = vst [vmem:[#allocation2] sm:$0xff] %v888
      %897 = vst [vmem:[#allocation2 + $0x8] sm:$0xff] %v889
      %898 = vst [vmem:[#allocation2 + $0x10] sm:$0xff] %v890
      %899 = vst [vmem:[#allocation2 + $0x18] sm:$0xff] %v891
      %900 = vst [vmem:[#allocation2 + $0x20] sm:$0xff] %v892
      %901 = vst [vmem:[#allocation2 + $0x28] sm:$0xff] %v893
      %902 = vst [vmem:[#allocation2 + $0x30] sm:$0xff] %v894
      %903 = vst [vmem:[#allocation2 + $0x38] sm:$0xff] %v895
      %s904 = scalar_lea.vmem %s206, 144
      %v905 = vld [vmem:[%s904] sm:$0xf]
      %v906 = vld [vmem:[%s904 + $0x8] sm:$0xf]
      %v907 = vld [vmem:[%s904 + $0x10] sm:$0xf]
      %v908 = vld [vmem:[%s904 + $0x18] sm:$0xf]
      %v909 = vld [vmem:[%s904 + $0x20] sm:$0xf]
      %v910 = vld [vmem:[%s904 + $0x28] sm:$0xf]
      %v911 = vld [vmem:[%s904 + $0x30] sm:$0xf]
      %v912 = vld [vmem:[%s904 + $0x38] sm:$0xf]
      %v913 = vld [vmem:[#allocation2] sm:$0xff]
      %v914 = vld [vmem:[#allocation2 + $0x8] sm:$0xff]
      %v915 = vld [vmem:[#allocation2 + $0x10] sm:$0xff]
      %v916 = vld [vmem:[#allocation2 + $0x18] sm:$0xff]
      %v917 = vld [vmem:[#allocation2 + $0x20] sm:$0xff]
      %v918 = vld [vmem:[#allocation2 + $0x28] sm:$0xff]
      %v919 = vld [vmem:[#allocation2 + $0x30] sm:$0xff]
      %v920 = vld [vmem:[#allocation2 + $0x38] sm:$0xff]
      %s921 = scalar_lea.vmem %s210, 192
      %v922 = vld [vmem:[%s921] sm:$0xf]
      %v923 = vld [vmem:[%s921 + $0x4] sm:$0xf]
      %v924 = vld [vmem:[%s921 + $0x8] sm:$0xf]
      %v925 = vld [vmem:[%s921 + $0xc] sm:$0xf]
      %v926 = vld [vmem:[%s921 + $0x10] sm:$0xf]
      %v927 = vld [vmem:[%s921 + $0x14] sm:$0xf]
      %v928 = vld [vmem:[%s921 + $0x18] sm:$0xf]
      %v929 = vld [vmem:[%s921 + $0x1c] sm:$0xf]
      %v930 = vld [vmem:[%s921 + $0x20] sm:$0xf]
      %v931 = vld [vmem:[%s921 + $0x24] sm:$0xf]
      %v932 = vld [vmem:[%s921 + $0x28] sm:$0xf]
      %v933 = vld [vmem:[%s921 + $0x2c] sm:$0xf]
      %v934 = vld [vmem:[%s921 + $0x30] sm:$0xf]
      %v935 = vld [vmem:[%s921 + $0x34] sm:$0xf]
      %v936 = vld [vmem:[%s921 + $0x38] sm:$0xf]
      %v937 = vld [vmem:[%s921 + $0x3c] sm:$0xf]
      %v946 = vunpack.c.l.b16 %v905
      %v947 = vunpack.c.l.b16 %v906
      %v948 = vunpack.c.l.b16 %v907
      %v949 = vunpack.c.l.b16 %v908
      %v950 = vunpack.c.l.b16 %v909
      %v951 = vunpack.c.l.b16 %v910
      %v952 = vunpack.c.l.b16 %v911
      %v953 = vunpack.c.l.b16 %v912
      %v954 = vpack.c.b16 %v947, %v946
      %v955 = vpack.c.b16 %v949, %v948
      %v956 = vpack.c.b16 %v951, %v950
      %v957 = vpack.c.b16 %v953, %v952
      %v978 = vunpack.c.l.b16 %v922
      %v979 = vunpack.c.l.b16 %v923
      %v980 = vunpack.c.l.b16 %v924
      %v981 = vunpack.c.l.b16 %v925
      %v982 = vunpack.c.l.b16 %v926
      %v983 = vunpack.c.l.b16 %v927
      %v984 = vunpack.c.l.b16 %v928
      %v985 = vunpack.c.l.b16 %v929
      %v986 = vunpack.c.l.b16 %v930
      %v987 = vunpack.c.l.b16 %v931
      %v988 = vunpack.c.l.b16 %v932
      %v989 = vunpack.c.l.b16 %v933
      %v990 = vunpack.c.l.b16 %v934
      %v991 = vunpack.c.l.b16 %v935
      %v992 = vunpack.c.l.b16 %v936
      %v993 = vunpack.c.l.b16 %v937
      %v994 = vpack.c.b16 %v979, %v978
      %v995 = vpack.c.b16 %v981, %v980
      %v996 = vpack.c.b16 %v983, %v982
      %v997 = vpack.c.b16 %v985, %v984
      %v998 = vpack.c.b16 %v987, %v986
      %v999 = vpack.c.b16 %v989, %v988
      %v1000 = vpack.c.b16 %v991, %v990
      %v1001 = vpack.c.b16 %v993, %v992
      %1010 = vmatprep.subr.bf16.mxu0 0
      %1011 = vmatpush1.bf16.msra.mxu0 %v994
      %1012 = vmatprep.subr.bf16.mxu0 0
      %1013 = vmatpush1.bf16.msra.mxu0 %v995
      %1014 = vmatprep.subr.bf16.mxu0 0
      %1015 = vmatpush1.bf16.msra.mxu0 %v996
      %1016 = vmatprep.subr.bf16.mxu0 0
      %1017 = vmatpush1.bf16.msra.mxu0 %v997
      %1018 = vmatprep.subr.bf16.mxu0 0
      %1019 = vmatpush1.bf16.msra.mxu0 %v998
      %1020 = vmatprep.subr.bf16.mxu0 0
      %1021 = vmatpush1.bf16.msra.mxu0 %v999
      %1022 = vmatprep.subr.bf16.mxu0 0
      %1023 = vmatpush1.bf16.msra.mxu0 %v1000
      %1024 = vmatprep.subr.bf16.mxu0 0
      %1025 = vmatpush1.bf16.msra.mxu0 %v1001
      %1026 = vmatprep.subr.bf16.mxu0 0
      %1027 = vmatpush1.bf16.msra.mxu0 0
      %1028 = vmatprep.subr.bf16.mxu0 0
      %1029 = vmatpush1.bf16.msra.mxu0 0
      %1030 = vmatprep.subr.bf16.mxu0 0
      %1031 = vmatpush1.bf16.msra.mxu0 0
      %1032 = vmatprep.subr.bf16.mxu0 0
      %1033 = vmatpush1.bf16.msra.mxu0 0
      %1034 = vmatprep.subr.bf16.mxu0 0
      %1035 = vmatpush1.bf16.msra.mxu0 0
      %1036 = vmatprep.subr.bf16.mxu0 0
      %1037 = vmatpush1.bf16.msra.mxu0 0
      %1038 = vmatprep.subr.bf16.mxu0 0
      %1039 = vmatpush1.bf16.msra.mxu0 0
      %1040 = vmatprep.subr.bf16.mxu0 0
      %1041 = vmatpush1.bf16.msra.mxu0 0
      %1042 = vmatprep.mubr.bf16.mxu0 0
      %1043 = vmatmul.mubr.bf16.gmra.mrb[0].mxu0 %v954
      %v1044 = vpop.f32.mrb[0].mxu0
      %v1045 = vadd.f32 0.0, %v1044
      %v1046 = vpop.f32.mrb[0].mxu0
      %v1047 = vpop.f32.mrb[0].mxu0
      %v1048 = vadd.f32 0.0, %v1047
      %v1049 = vpop.f32.mrb[0].mxu0
      %1050 = vmatprep.mubr.bf16.mxu0 0
      %1051 = vmatmul.mubr.bf16.gmra.mrb[0].mxu0 %v955
      %v1052 = vpop.f32.mrb[0].mxu0
      %v1053 = vadd.f32 0.0, %v1052
      %v1054 = vpop.f32.mrb[0].mxu0
      %v1055 = vpop.f32.mrb[0].mxu0
      %v1056 = vadd.f32 0.0, %v1055
      %v1057 = vpop.f32.mrb[0].mxu0
      %1058 = vmatprep.mubr.bf16.mxu0 0
      %1059 = vmatmul.mubr.bf16.gmra.mrb[0].mxu0 %v956
      %v1060 = vpop.f32.mrb[0].mxu0
      %v1061 = vadd.f32 0.0, %v1060
      %v1062 = vpop.f32.mrb[0].mxu0
      %v1063 = vpop.f32.mrb[0].mxu0
      %v1064 = vadd.f32 0.0, %v1063
      %v1065 = vpop.f32.mrb[0].mxu0
      %1066 = vmatprep.mubr.bf16.mxu0 0
      %1067 = vmatmul.mubr.bf16.gmra.mrb[0].mxu0 %v957
      %v1068 = vpop.f32.mrb[0].mxu0
      %v1069 = vadd.f32 0.0, %v1068
      %v1070 = vpop.f32.mrb[0].mxu0
      %v1071 = vpop.f32.mrb[0].mxu0
      %v1072 = vadd.f32 0.0, %v1071
      %v1073 = vpop.f32.mrb[0].mxu0
      %1074 = vdwg.mxu0
      %v1075 = vadd.f32 %v913, %v1045
      %v1076 = vadd.f32 %v914, %v1048
      %v1077 = vadd.f32 %v915, %v1053
      %v1078 = vadd.f32 %v916, %v1056
      %v1079 = vadd.f32 %v917, %v1061
      %v1080 = vadd.f32 %v918, %v1064
      %v1081 = vadd.f32 %v919, %v1069
      %v1082 = vadd.f32 %v920, %v1072
      %1083 = vst [vmem:[#allocation2] sm:$0xff] %v1075
      %1084 = vst [vmem:[#allocation2 + $0x8] sm:$0xff] %v1076
      %1085 = vst [vmem:[#allocation2 + $0x10] sm:$0xff] %v1077
      %1086 = vst [vmem:[#allocation2 + $0x18] sm:$0xff] %v1078
      %1087 = vst [vmem:[#allocation2 + $0x20] sm:$0xff] %v1079
      %1088 = vst [vmem:[#allocation2 + $0x28] sm:$0xff] %v1080
      %1089 = vst [vmem:[#allocation2 + $0x30] sm:$0xff] %v1081
      %1090 = vst [vmem:[#allocation2 + $0x38] sm:$0xff] %v1082
      %s1091 = scalar_lea.vmem %s206, 216
      %v1092 = vld [vmem:[%s1091] sm:$0xf]
      %v1093 = vld [vmem:[%s1091 + $0x8] sm:$0xf]
      %v1094 = vld [vmem:[%s1091 + $0x10] sm:$0xf]
      %v1095 = vld [vmem:[%s1091 + $0x18] sm:$0xf]
      %v1096 = vld [vmem:[%s1091 + $0x20] sm:$0xf]
      %v1097 = vld [vmem:[%s1091 + $0x28] sm:$0xf]
      %v1098 = vld [vmem:[%s1091 + $0x30] sm:$0xf]
      %v1099 = vld [vmem:[%s1091 + $0x38] sm:$0xf]
      %v1100 = vld [vmem:[#allocation2] sm:$0xff]
      %v1101 = vld [vmem:[#allocation2 + $0x8] sm:$0xff]
      %v1102 = vld [vmem:[#allocation2 + $0x10] sm:$0xff]
      %v1103 = vld [vmem:[#allocation2 + $0x18] sm:$0xff]
      %v1104 = vld [vmem:[#allocation2 + $0x20] sm:$0xff]
      %v1105 = vld [vmem:[#allocation2 + $0x28] sm:$0xff]
      %v1106 = vld [vmem:[#allocation2 + $0x30] sm:$0xff]
      %v1107 = vld [vmem:[#allocation2 + $0x38] sm:$0xff]
      %s1108 = scalar_lea.vmem %s210, 256
      %v1109 = vld [vmem:[%s1108] sm:$0xf]
      %v1110 = vld [vmem:[%s1108 + $0x4] sm:$0xf]
      %v1111 = vld [vmem:[%s1108 + $0x8] sm:$0xf]
      %v1112 = vld [vmem:[%s1108 + $0xc] sm:$0xf]
      %v1113 = vld [vmem:[%s1108 + $0x10] sm:$0xf]
      %v1114 = vld [vmem:[%s1108 + $0x14] sm:$0xf]
      %v1115 = vld [vmem:[%s1108 + $0x18] sm:$0xf]
      %v1116 = vld [vmem:[%s1108 + $0x1c] sm:$0xf]
      %v1117 = vld [vmem:[%s1108 + $0x20] sm:$0xf]
      %v1118 = vld [vmem:[%s1108 + $0x24] sm:$0xf]
      %v1119 = vld [vmem:[%s1108 + $0x28] sm:$0xf]
      %v1120 = vld [vmem:[%s1108 + $0x2c] sm:$0xf]
      %v1121 = vld [vmem:[%s1108 + $0x30] sm:$0xf]
      %v1122 = vld [vmem:[%s1108 + $0x34] sm:$0xf]
      %v1123 = vld [vmem:[%s1108 + $0x38] sm:$0xf]
      %v1124 = vld [vmem:[%s1108 + $0x3c] sm:$0xf]
      %v1133 = vunpack.c.l.b16 %v1092
      %v1134 = vunpack.c.l.b16 %v1093
      %v1135 = vunpack.c.l.b16 %v1094
      %v1136 = vunpack.c.l.b16 %v1095
      %v1137 = vunpack.c.l.b16 %v1096
      %v1138 = vunpack.c.l.b16 %v1097
      %v1139 = vunpack.c.l.b16 %v1098
      %v1140 = vunpack.c.l.b16 %v1099
      %v1141 = vpack.c.b16 %v1134, %v1133
      %v1142 = vpack.c.b16 %v1136, %v1135
      %v1143 = vpack.c.b16 %v1138, %v1137
      %v1144 = vpack.c.b16 %v1140, %v1139
      %v1165 = vunpack.c.l.b16 %v1109
      %v1166 = vunpack.c.l.b16 %v1110
      %v1167 = vunpack.c.l.b16 %v1111
      %v1168 = vunpack.c.l.b16 %v1112
      %v1169 = vunpack.c.l.b16 %v1113
      %v1170 = vunpack.c.l.b16 %v1114
      %v1171 = vunpack.c.l.b16 %v1115
      %v1172 = vunpack.c.l.b16 %v1116
      %v1173 = vunpack.c.l.b16 %v1117
      %v1174 = vunpack.c.l.b16 %v1118
      %v1175 = vunpack.c.l.b16 %v1119
      %v1176 = vunpack.c.l.b16 %v1120
      %v1177 = vunpack.c.l.b16 %v1121
      %v1178 = vunpack.c.l.b16 %v1122
      %v1179 = vunpack.c.l.b16 %v1123
      %v1180 = vunpack.c.l.b16 %v1124
      %v1181 = vpack.c.b16 %v1166, %v1165
      %v1182 = vpack.c.b16 %v1168, %v1167
      %v1183 = vpack.c.b16 %v1170, %v1169
      %v1184 = vpack.c.b16 %v1172, %v1171
      %v1185 = vpack.c.b16 %v1174, %v1173
      %v1186 = vpack.c.b16 %v1176, %v1175
      %v1187 = vpack.c.b16 %v1178, %v1177
      %v1188 = vpack.c.b16 %v1180, %v1179
      %1197 = vmatprep.subr.bf16.mxu0 0
      %1198 = vmatpush1.bf16.msra.mxu0 %v1181
      %1199 = vmatprep.subr.bf16.mxu0 0
      %1200 = vmatpush1.bf16.msra.mxu0 %v1182
      %1201 = vmatprep.subr.bf16.mxu0 0
      %1202 = vmatpush1.bf16.msra.mxu0 %v1183
      %1203 = vmatprep.subr.bf16.mxu0 0
      %1204 = vmatpush1.bf16.msra.mxu0 %v1184
      %1205 = vmatprep.subr.bf16.mxu0 0
      %1206 = vmatpush1.bf16.msra.mxu0 %v1185
      %1207 = vmatprep.subr.bf16.mxu0 0
      %1208 = vmatpush1.bf16.msra.mxu0 %v1186
      %1209 = vmatprep.subr.bf16.mxu0 0
      %1210 = vmatpush1.bf16.msra.mxu0 %v1187
      %1211 = vmatprep.subr.bf16.mxu0 0
      %1212 = vmatpush1.bf16.msra.mxu0 %v1188
      %1213 = vmatprep.subr.bf16.mxu0 0
      %1214 = vmatpush1.bf16.msra.mxu0 0
      %1215 = vmatprep.subr.bf16.mxu0 0
      %1216 = vmatpush1.bf16.msra.mxu0 0
      %1217 = vmatprep.subr.bf16.mxu0 0
      %1218 = vmatpush1.bf16.msra.mxu0 0
      %1219 = vmatprep.subr.bf16.mxu0 0
      %1220 = vmatpush1.bf16.msra.mxu0 0
      %1221 = vmatprep.subr.bf16.mxu0 0
      %1222 = vmatpush1.bf16.msra.mxu0 0
      %1223 = vmatprep.subr.bf16.mxu0 0
      %1224 = vmatpush1.bf16.msra.mxu0 0
      %1225 = vmatprep.subr.bf16.mxu0 0
      %1226 = vmatpush1.bf16.msra.mxu0 0
      %1227 = vmatprep.subr.bf16.mxu0 0
      %1228 = vmatpush1.bf16.msra.mxu0 0
      %1229 = vmatprep.mubr.bf16.mxu0 0
      %1230 = vmatmul.mubr.bf16.gmra.mrb[0].mxu0 %v1141
      %v1231 = vpop.f32.mrb[0].mxu0
      %v1232 = vadd.f32 0.0, %v1231
      %v1233 = vpop.f32.mrb[0].mxu0
      %v1234 = vpop.f32.mrb[0].mxu0
      %v1235 = vadd.f32 0.0, %v1234
      %v1236 = vpop.f32.mrb[0].mxu0
      %1237 = vmatprep.mubr.bf16.mxu0 0
      %1238 = vmatmul.mubr.bf16.gmra.mrb[0].mxu0 %v1142
      %v1239 = vpop.f32.mrb[0].mxu0
      %v1240 = vadd.f32 0.0, %v1239
      %v1241 = vpop.f32.mrb[0].mxu0
      %v1242 = vpop.f32.mrb[0].mxu0
      %v1243 = vadd.f32 0.0, %v1242
      %v1244 = vpop.f32.mrb[0].mxu0
      %1245 = vmatprep.mubr.bf16.mxu0 0
      %1246 = vmatmul.mubr.bf16.gmra.mrb[0].mxu0 %v1143
      %v1247 = vpop.f32.mrb[0].mxu0
      %v1248 = vadd.f32 0.0, %v1247
      %v1249 = vpop.f32.mrb[0].mxu0
      %v1250 = vpop.f32.mrb[0].mxu0
      %v1251 = vadd.f32 0.0, %v1250
      %v1252 = vpop.f32.mrb[0].mxu0
      %1253 = vmatprep.mubr.bf16.mxu0 0
      %1254 = vmatmul.mubr.bf16.gmra.mrb[0].mxu0 %v1144
      %v1255 = vpop.f32.mrb[0].mxu0
      %v1256 = vadd.f32 0.0, %v1255
      %v1257 = vpop.f32.mrb[0].mxu0
      %v1258 = vpop.f32.mrb[0].mxu0
      %v1259 = vadd.f32 0.0, %v1258
      %v1260 = vpop.f32.mrb[0].mxu0
      %1261 = vdwg.mxu0
      %v1262 = vadd.f32 %v1100, %v1232
      %v1263 = vadd.f32 %v1101, %v1235
      %v1264 = vadd.f32 %v1102, %v1240
      %v1265 = vadd.f32 %v1103, %v1243
      %v1266 = vadd.f32 %v1104, %v1248
      %v1267 = vadd.f32 %v1105, %v1251
      %v1268 = vadd.f32 %v1106, %v1256
      %v1269 = vadd.f32 %v1107, %v1259
      %1270 = vst [vmem:[#allocation2] sm:$0xff] %v1262
      %1271 = vst [vmem:[#allocation2 + $0x8] sm:$0xff] %v1263
      %1272 = vst [vmem:[#allocation2 + $0x10] sm:$0xff] %v1264
      %1273 = vst [vmem:[#allocation2 + $0x18] sm:$0xff] %v1265
      %1274 = vst [vmem:[#allocation2 + $0x20] sm:$0xff] %v1266
      %1275 = vst [vmem:[#allocation2 + $0x28] sm:$0xff] %v1267
      %1276 = vst [vmem:[#allocation2 + $0x30] sm:$0xff] %v1268
      %1277 = vst [vmem:[#allocation2 + $0x38] sm:$0xff] %v1269
      %v1278 = vld [vmem:[%s904] sm:$0xf]
      %v1279 = vld [vmem:[%s904 + $0x4] sm:$0x1]
      %v1280 = vld [vmem:[%s904 + $0x8] sm:$0xf]
      %v1281 = vld [vmem:[%s904 + $0xc] sm:$0x1]
      %v1282 = vld [vmem:[%s904 + $0x10] sm:$0xf]
      %v1283 = vld [vmem:[%s904 + $0x14] sm:$0x1]
      %v1284 = vld [vmem:[%s904 + $0x18] sm:$0xf]
      %v1285 = vld [vmem:[%s904 + $0x1c] sm:$0x1]
      %v1286 = vld [vmem:[%s904 + $0x20] sm:$0xf]
      %v1287 = vld [vmem:[%s904 + $0x24] sm:$0x1]
      %v1288 = vld [vmem:[%s904 + $0x28] sm:$0xf]
      %v1289 = vld [vmem:[%s904 + $0x2c] sm:$0x1]
      %v1290 = vld [vmem:[%s904 + $0x30] sm:$0xf]
      %v1291 = vld [vmem:[%s904 + $0x34] sm:$0x1]
      %v1292 = vld [vmem:[%s904 + $0x38] sm:$0xf]
      %v1293 = vld [vmem:[%s904 + $0x3c] sm:$0x1]
      %v1294 = vld [vmem:[#allocation2] sm:$0xff]
      %v1295 = vld [vmem:[#allocation2 + $0x8] sm:$0xff]
      %v1296 = vld [vmem:[#allocation2 + $0x10] sm:$0xff]
      %v1297 = vld [vmem:[#allocation2 + $0x18] sm:$0xff]
      %v1298 = vld [vmem:[#allocation2 + $0x20] sm:$0xff]
      %v1299 = vld [vmem:[#allocation2 + $0x28] sm:$0xff]
      %v1300 = vld [vmem:[#allocation2 + $0x30] sm:$0xff]
      %v1301 = vld [vmem:[#allocation2 + $0x38] sm:$0xff]
      %v1303 = vshrl.u32 %v1278, 16
      %v1305 = vrot.slane %v1303, 4
      %v1306 = vshll.u32 %v1278, 16
      %v1308 = vrot.slane %v1306, 5
      %v1309 = vor.u32 %v1305, %v1308
      %v1310 = vrot.slane %v1309, 4
      %v1312 = vshll.u32 %v1279, 16
      %v1314 = vrot.slane %v1312, 5
      %v1315 = vsel %vm629, %v1310, %v1314
      %v1317 = vshrl.u32 %v1280, 16
      %v1319 = vrot.slane %v1317, 4
      %v1320 = vshll.u32 %v1280, 16
      %v1322 = vrot.slane %v1320, 5
      %v1323 = vor.u32 %v1319, %v1322
      %v1324 = vrot.slane %v1323, 4
      %v1326 = vshll.u32 %v1281, 16
      %v1328 = vrot.slane %v1326, 5
      %v1329 = vsel %vm629, %v1324, %v1328
      %v1331 = vshrl.u32 %v1282, 16
      %v1333 = vrot.slane %v1331, 4
      %v1334 = vshll.u32 %v1282, 16
      %v1336 = vrot.slane %v1334, 5
      %v1337 = vor.u32 %v1333, %v1336
      %v1338 = vrot.slane %v1337, 4
      %v1340 = vshll.u32 %v1283, 16
      %v1342 = vrot.slane %v1340, 5
      %v1343 = vsel %vm629, %v1338, %v1342
      %v1345 = vshrl.u32 %v1284, 16
      %v1347 = vrot.slane %v1345, 4
      %v1348 = vshll.u32 %v1284, 16
      %v1350 = vrot.slane %v1348, 5
      %v1351 = vor.u32 %v1347, %v1350
      %v1352 = vrot.slane %v1351, 4
      %v1354 = vshll.u32 %v1285, 16
      %v1356 = vrot.slane %v1354, 5
      %v1357 = vsel %vm629, %v1352, %v1356
      %v1359 = vshrl.u32 %v1286, 16
      %v1361 = vrot.slane %v1359, 4
      %v1362 = vshll.u32 %v1286, 16
      %v1364 = vrot.slane %v1362, 5
      %v1365 = vor.u32 %v1361, %v1364
      %v1366 = vrot.slane %v1365, 4
      %v1368 = vshll.u32 %v1287, 16
      %v1370 = vrot.slane %v1368, 5
      %v1371 = vsel %vm629, %v1366, %v1370
      %v1373 = vshrl.u32 %v1288, 16
      %v1375 = vrot.slane %v1373, 4
      %v1376 = vshll.u32 %v1288, 16
      %v1378 = vrot.slane %v1376, 5
      %v1379 = vor.u32 %v1375, %v1378
      %v1380 = vrot.slane %v1379, 4
      %v1382 = vshll.u32 %v1289, 16
      %v1384 = vrot.slane %v1382, 5
      %v1385 = vsel %vm629, %v1380, %v1384
      %v1387 = vshrl.u32 %v1290, 16
      %v1389 = vrot.slane %v1387, 4
      %v1390 = vshll.u32 %v1290, 16
      %v1392 = vrot.slane %v1390, 5
      %v1393 = vor.u32 %v1389, %v1392
      %v1394 = vrot.slane %v1393, 4
      %v1396 = vshll.u32 %v1291, 16
      %v1398 = vrot.slane %v1396, 5
      %v1399 = vsel %vm629, %v1394, %v1398
      %v1401 = vshrl.u32 %v1292, 16
      %v1403 = vrot.slane %v1401, 4
      %v1404 = vshll.u32 %v1292, 16
      %v1406 = vrot.slane %v1404, 5
      %v1407 = vor.u32 %v1403, %v1406
      %v1408 = vrot.slane %v1407, 4
      %v1410 = vshll.u32 %v1293, 16
      %v1412 = vrot.slane %v1410, 5
      %v1413 = vsel %vm629, %v1408, %v1412
      %s1414 = scalar_lea.vmem %s210, 320
      %v1415 = vld [vmem:[%s1414] sm:$0xf]
      %v1416 = vld [vmem:[%s1414 + $0x4] sm:$0xf]
      %v1417 = vld [vmem:[%s1414 + $0x8] sm:$0xf]
      %v1418 = vld [vmem:[%s1414 + $0xc] sm:$0xf]
      %v1419 = vld [vmem:[%s1414 + $0x10] sm:$0xf]
      %v1420 = vld [vmem:[%s1414 + $0x14] sm:$0xf]
      %v1421 = vld [vmem:[%s1414 + $0x18] sm:$0xf]
      %v1422 = vld [vmem:[%s1414 + $0x1c] sm:$0xf]
      %v1423 = vld [vmem:[%s1414 + $0x20] sm:$0xf]
      %v1424 = vld [vmem:[%s1414 + $0x24] sm:$0xf]
      %v1425 = vld [vmem:[%s1414 + $0x28] sm:$0xf]
      %v1426 = vld [vmem:[%s1414 + $0x2c] sm:$0xf]
      %v1427 = vld [vmem:[%s1414 + $0x30] sm:$0xf]
      %v1428 = vld [vmem:[%s1414 + $0x34] sm:$0xf]
      %v1429 = vld [vmem:[%s1414 + $0x38] sm:$0xf]
      %v1430 = vld [vmem:[%s1414 + $0x3c] sm:$0xf]
      %v1431 = vunpack.c.l.b16 %v1315
      %v1432 = vunpack.c.l.b16 %v1329
      %v1433 = vunpack.c.l.b16 %v1343
      %v1434 = vunpack.c.l.b16 %v1357
      %v1435 = vunpack.c.l.b16 %v1371
      %v1436 = vunpack.c.l.b16 %v1385
      %v1437 = vunpack.c.l.b16 %v1399
      %v1438 = vunpack.c.l.b16 %v1413
      %v1439 = vpack.c.b16 %v1432, %v1431
      %v1440 = vpack.c.b16 %v1434, %v1433
      %v1441 = vpack.c.b16 %v1436, %v1435
      %v1442 = vpack.c.b16 %v1438, %v1437
      %v1463 = vunpack.c.l.b16 %v1415
      %v1464 = vunpack.c.l.b16 %v1416
      %v1465 = vunpack.c.l.b16 %v1417
      %v1466 = vunpack.c.l.b16 %v1418
      %v1467 = vunpack.c.l.b16 %v1419
      %v1468 = vunpack.c.l.b16 %v1420
      %v1469 = vunpack.c.l.b16 %v1421
      %v1470 = vunpack.c.l.b16 %v1422
      %v1471 = vunpack.c.l.b16 %v1423
      %v1472 = vunpack.c.l.b16 %v1424
      %v1473 = vunpack.c.l.b16 %v1425
      %v1474 = vunpack.c.l.b16 %v1426
      %v1475 = vunpack.c.l.b16 %v1427
      %v1476 = vunpack.c.l.b16 %v1428
      %v1477 = vunpack.c.l.b16 %v1429
      %v1478 = vunpack.c.l.b16 %v1430
      %v1479 = vpack.c.b16 %v1464, %v1463
      %v1480 = vpack.c.b16 %v1466, %v1465
      %v1481 = vpack.c.b16 %v1468, %v1467
      %v1482 = vpack.c.b16 %v1470, %v1469
      %v1483 = vpack.c.b16 %v1472, %v1471
      %v1484 = vpack.c.b16 %v1474, %v1473
      %v1485 = vpack.c.b16 %v1476, %v1475
      %v1486 = vpack.c.b16 %v1478, %v1477
      %1495 = vmatprep.subr.bf16.mxu0 0
      %1496 = vmatpush1.bf16.msra.mxu0 %v1479
      %1497 = vmatprep.subr.bf16.mxu0 0
      %1498 = vmatpush1.bf16.msra.mxu0 %v1480
      %1499 = vmatprep.subr.bf16.mxu0 0
      %1500 = vmatpush1.bf16.msra.mxu0 %v1481
      %1501 = vmatprep.subr.bf16.mxu0 0
      %1502 = vmatpush1.bf16.msra.mxu0 %v1482
      %1503 = vmatprep.subr.bf16.mxu0 0
      %1504 = vmatpush1.bf16.msra.mxu0 %v1483
      %1505 = vmatprep.subr.bf16.mxu0 0
      %1506 = vmatpush1.bf16.msra.mxu0 %v1484
      %1507 = vmatprep.subr.bf16.mxu0 0
      %1508 = vmatpush1.bf16.msra.mxu0 %v1485
      %1509 = vmatprep.subr.bf16.mxu0 0
      %1510 = vmatpush1.bf16.msra.mxu0 %v1486
      %1511 = vmatprep.subr.bf16.mxu0 0
      %1512 = vmatpush1.bf16.msra.mxu0 0
      %1513 = vmatprep.subr.bf16.mxu0 0
      %1514 = vmatpush1.bf16.msra.mxu0 0
      %1515 = vmatprep.subr.bf16.mxu0 0
      %1516 = vmatpush1.bf16.msra.mxu0 0
      %1517 = vmatprep.subr.bf16.mxu0 0
      %1518 = vmatpush1.bf16.msra.mxu0 0
      %1519 = vmatprep.subr.bf16.mxu0 0
      %1520 = vmatpush1.bf16.msra.mxu0 0
      %1521 = vmatprep.subr.bf16.mxu0 0
      %1522 = vmatpush1.bf16.msra.mxu0 0
      %1523 = vmatprep.subr.bf16.mxu0 0
      %1524 = vmatpush1.bf16.msra.mxu0 0
      %1525 = vmatprep.subr.bf16.mxu0 0
      %1526 = vmatpush1.bf16.msra.mxu0 0
      %1527 = vmatprep.mubr.bf16.mxu0 0
      %1528 = vmatmul.mubr.bf16.gmra.mrb[0].mxu0 %v1439
      %v1529 = vpop.f32.mrb[0].mxu0
      %v1530 = vadd.f32 0.0, %v1529
      %v1531 = vpop.f32.mrb[0].mxu0
      %v1532 = vpop.f32.mrb[0].mxu0
      %v1533 = vadd.f32 0.0, %v1532
      %v1534 = vpop.f32.mrb[0].mxu0
      %1535 = vmatprep.mubr.bf16.mxu0 0
      %1536 = vmatmul.mubr.bf16.gmra.mrb[0].mxu0 %v1440
      %v1537 = vpop.f32.mrb[0].mxu0
      %v1538 = vadd.f32 0.0, %v1537
      %v1539 = vpop.f32.mrb[0].mxu0
      %v1540 = vpop.f32.mrb[0].mxu0
      %v1541 = vadd.f32 0.0, %v1540
      %v1542 = vpop.f32.mrb[0].mxu0
      %1543 = vmatprep.mubr.bf16.mxu0 0
      %1544 = vmatmul.mubr.bf16.gmra.mrb[0].mxu0 %v1441
      %v1545 = vpop.f32.mrb[0].mxu0
      %v1546 = vadd.f32 0.0, %v1545
      %v1547 = vpop.f32.mrb[0].mxu0
      %v1548 = vpop.f32.mrb[0].mxu0
      %v1549 = vadd.f32 0.0, %v1548
      %v1550 = vpop.f32.mrb[0].mxu0
      %1551 = vmatprep.mubr.bf16.mxu0 0
      %1552 = vmatmul.mubr.bf16.gmra.mrb[0].mxu0 %v1442
      %v1553 = vpop.f32.mrb[0].mxu0
      %v1554 = vadd.f32 0.0, %v1553
      %v1555 = vpop.f32.mrb[0].mxu0
      %v1556 = vpop.f32.mrb[0].mxu0
      %v1557 = vadd.f32 0.0, %v1556
      %v1558 = vpop.f32.mrb[0].mxu0
      %1559 = vdwg.mxu0
      %v1560 = vadd.f32 %v1294, %v1530
      %v1561 = vadd.f32 %v1295, %v1533
      %v1562 = vadd.f32 %v1296, %v1538
      %v1563 = vadd.f32 %v1297, %v1541
      %v1564 = vadd.f32 %v1298, %v1546
      %v1565 = vadd.f32 %v1299, %v1549
      %v1566 = vadd.f32 %v1300, %v1554
      %v1567 = vadd.f32 %v1301, %v1557
      %1568 = vst [vmem:[#allocation2] sm:$0xff] %v1560
      %1569 = vst [vmem:[#allocation2 + $0x8] sm:$0xff] %v1561
      %1570 = vst [vmem:[#allocation2 + $0x10] sm:$0xff] %v1562
      %1571 = vst [vmem:[#allocation2 + $0x18] sm:$0xff] %v1563
      %1572 = vst [vmem:[#allocation2 + $0x20] sm:$0xff] %v1564
      %1573 = vst [vmem:[#allocation2 + $0x28] sm:$0xff] %v1565
      %1574 = vst [vmem:[#allocation2 + $0x30] sm:$0xff] %v1566
      %1575 = vst [vmem:[#allocation2 + $0x38] sm:$0xff] %v1567
      %s1576 = scalar_lea.vmem %s206, 8
      %v1577 = vld [vmem:[%s1576] sm:$0xf]
      %v1578 = vld [vmem:[%s1576 + $0x8] sm:$0xf]
      %v1579 = vld [vmem:[%s1576 + $0x10] sm:$0xf]
      %v1580 = vld [vmem:[%s1576 + $0x18] sm:$0xf]
      %v1581 = vld [vmem:[%s1576 + $0x20] sm:$0xf]
      %v1582 = vld [vmem:[%s1576 + $0x28] sm:$0xf]
      %v1583 = vld [vmem:[%s1576 + $0x30] sm:$0xf]
      %v1584 = vld [vmem:[%s1576 + $0x38] sm:$0xf]
      %v1585 = vld [vmem:[#allocation2] sm:$0xff]
      %v1586 = vld [vmem:[#allocation2 + $0x8] sm:$0xff]
      %v1587 = vld [vmem:[#allocation2 + $0x10] sm:$0xff]
      %v1588 = vld [vmem:[#allocation2 + $0x18] sm:$0xff]
      %v1589 = vld [vmem:[#allocation2 + $0x20] sm:$0xff]
      %v1590 = vld [vmem:[#allocation2 + $0x28] sm:$0xff]
      %v1591 = vld [vmem:[#allocation2 + $0x30] sm:$0xff]
      %v1592 = vld [vmem:[#allocation2 + $0x38] sm:$0xff]
      %s1593 = scalar_lea.vmem %s210, 384
      %v1594 = vld [vmem:[%s1593] sm:$0xf]
      %v1595 = vld [vmem:[%s1593 + $0x4] sm:$0xf]
      %v1596 = vld [vmem:[%s1593 + $0x8] sm:$0xf]
      %v1597 = vld [vmem:[%s1593 + $0xc] sm:$0xf]
      %v1598 = vld [vmem:[%s1593 + $0x10] sm:$0xf]
      %v1599 = vld [vmem:[%s1593 + $0x14] sm:$0xf]
      %v1600 = vld [vmem:[%s1593 + $0x18] sm:$0xf]
      %v1601 = vld [vmem:[%s1593 + $0x1c] sm:$0xf]
      %v1602 = vld [vmem:[%s1593 + $0x20] sm:$0xf]
      %v1603 = vld [vmem:[%s1593 + $0x24] sm:$0xf]
      %v1604 = vld [vmem:[%s1593 + $0x28] sm:$0xf]
      %v1605 = vld [vmem:[%s1593 + $0x2c] sm:$0xf]
      %v1606 = vld [vmem:[%s1593 + $0x30] sm:$0xf]
      %v1607 = vld [vmem:[%s1593 + $0x34] sm:$0xf]
      %v1608 = vld [vmem:[%s1593 + $0x38] sm:$0xf]
      %v1609 = vld [vmem:[%s1593 + $0x3c] sm:$0xf]
      %v1618 = vunpack.c.l.b16 %v1577
      %v1619 = vunpack.c.l.b16 %v1578
      %v1620 = vunpack.c.l.b16 %v1579
      %v1621 = vunpack.c.l.b16 %v1580
      %v1622 = vunpack.c.l.b16 %v1581
      %v1623 = vunpack.c.l.b16 %v1582
      %v1624 = vunpack.c.l.b16 %v1583
      %v1625 = vunpack.c.l.b16 %v1584
      %v1626 = vpack.c.b16 %v1619, %v1618
      %v1627 = vpack.c.b16 %v1621, %v1620
      %v1628 = vpack.c.b16 %v1623, %v1622
      %v1629 = vpack.c.b16 %v1625, %v1624
      %v1650 = vunpack.c.l.b16 %v1594
      %v1651 = vunpack.c.l.b16 %v1595
      %v1652 = vunpack.c.l.b16 %v1596
      %v1653 = vunpack.c.l.b16 %v1597
      %v1654 = vunpack.c.l.b16 %v1598
      %v1655 = vunpack.c.l.b16 %v1599
      %v1656 = vunpack.c.l.b16 %v1600
      %v1657 = vunpack.c.l.b16 %v1601
      %v1658 = vunpack.c.l.b16 %v1602
      %v1659 = vunpack.c.l.b16 %v1603
      %v1660 = vunpack.c.l.b16 %v1604
      %v1661 = vunpack.c.l.b16 %v1605
      %v1662 = vunpack.c.l.b16 %v1606
      %v1663 = vunpack.c.l.b16 %v1607
      %v1664 = vunpack.c.l.b16 %v1608
      %v1665 = vunpack.c.l.b16 %v1609
      %v1666 = vpack.c.b16 %v1651, %v1650
      %v1667 = vpack.c.b16 %v1653, %v1652
      %v1668 = vpack.c.b16 %v1655, %v1654
      %v1669 = vpack.c.b16 %v1657, %v1656
      %v1670 = vpack.c.b16 %v1659, %v1658
      %v1671 = vpack.c.b16 %v1661, %v1660
      %v1672 = vpack.c.b16 %v1663, %v1662
      %v1673 = vpack.c.b16 %v1665, %v1664
      %1682 = vmatprep.subr.bf16.mxu0 0
      %1683 = vmatpush1.bf16.msra.mxu0 %v1666
      %1684 = vmatprep.subr.bf16.mxu0 0
      %1685 = vmatpush1.bf16.msra.mxu0 %v1667
      %1686 = vmatprep.subr.bf16.mxu0 0
      %1687 = vmatpush1.bf16.msra.mxu0 %v1668
      %1688 = vmatprep.subr.bf16.mxu0 0
      %1689 = vmatpush1.bf16.msra.mxu0 %v1669
      %1690 = vmatprep.subr.bf16.mxu0 0
      %1691 = vmatpush1.bf16.msra.mxu0 %v1670
      %1692 = vmatprep.subr.bf16.mxu0 0
      %1693 = vmatpush1.bf16.msra.mxu0 %v1671
      %1694 = vmatprep.subr.bf16.mxu0 0
      %1695 = vmatpush1.bf16.msra.mxu0 %v1672
      %1696 = vmatprep.subr.bf16.mxu0 0
      %1697 = vmatpush1.bf16.msra.mxu0 %v1673
      %1698 = vmatprep.subr.bf16.mxu0 0
      %1699 = vmatpush1.bf16.msra.mxu0 0
      %1700 = vmatprep.subr.bf16.mxu0 0
      %1701 = vmatpush1.bf16.msra.mxu0 0
      %1702 = vmatprep.subr.bf16.mxu0 0
      %1703 = vmatpush1.bf16.msra.mxu0 0
      %1704 = vmatprep.subr.bf16.mxu0 0
      %1705 = vmatpush1.bf16.msra.mxu0 0
      %1706 = vmatprep.subr.bf16.mxu0 0
      %1707 = vmatpush1.bf16.msra.mxu0 0
      %1708 = vmatprep.subr.bf16.mxu0 0
      %1709 = vmatpush1.bf16.msra.mxu0 0
      %1710 = vmatprep.subr.bf16.mxu0 0
      %1711 = vmatpush1.bf16.msra.mxu0 0
      %1712 = vmatprep.subr.bf16.mxu0 0
      %1713 = vmatpush1.bf16.msra.mxu0 0
      %1714 = vmatprep.mubr.bf16.mxu0 0
      %1715 = vmatmul.mubr.bf16.gmra.mrb[0].mxu0 %v1626
      %v1716 = vpop.f32.mrb[0].mxu0
      %v1717 = vadd.f32 0.0, %v1716
      %v1718 = vpop.f32.mrb[0].mxu0
      %v1719 = vpop.f32.mrb[0].mxu0
      %v1720 = vadd.f32 0.0, %v1719
      %v1721 = vpop.f32.mrb[0].mxu0
      %1722 = vmatprep.mubr.bf16.mxu0 0
      %1723 = vmatmul.mubr.bf16.gmra.mrb[0].mxu0 %v1627
      %v1724 = vpop.f32.mrb[0].mxu0
      %v1725 = vadd.f32 0.0, %v1724
      %v1726 = vpop.f32.mrb[0].mxu0
      %v1727 = vpop.f32.mrb[0].mxu0
      %v1728 = vadd.f32 0.0, %v1727
      %v1729 = vpop.f32.mrb[0].mxu0
      %1730 = vmatprep.mubr.bf16.mxu0 0
      %1731 = vmatmul.mubr.bf16.gmra.mrb[0].mxu0 %v1628
      %v1732 = vpop.f32.mrb[0].mxu0
      %v1733 = vadd.f32 0.0, %v1732
      %v1734 = vpop.f32.mrb[0].mxu0
      %v1735 = vpop.f32.mrb[0].mxu0
      %v1736 = vadd.f32 0.0, %v1735
      %v1737 = vpop.f32.mrb[0].mxu0
      %1738 = vmatprep.mubr.bf16.mxu0 0
      %1739 = vmatmul.mubr.bf16.gmra.mrb[0].mxu0 %v1629
      %v1740 = vpop.f32.mrb[0].mxu0
      %v1741 = vadd.f32 0.0, %v1740
      %v1742 = vpop.f32.mrb[0].mxu0
      %v1743 = vpop.f32.mrb[0].mxu0
      %v1744 = vadd.f32 0.0, %v1743
      %v1745 = vpop.f32.mrb[0].mxu0
      %1746 = vdwg.mxu0
      %v1747 = vadd.f32 %v1585, %v1717
      %v1748 = vadd.f32 %v1586, %v1720
      %v1749 = vadd.f32 %v1587, %v1725
      %v1750 = vadd.f32 %v1588, %v1728
      %v1751 = vadd.f32 %v1589, %v1733
      %v1752 = vadd.f32 %v1590, %v1736
      %v1753 = vadd.f32 %v1591, %v1741
      %v1754 = vadd.f32 %v1592, %v1744
      %1755 = vst [vmem:[#allocation2] sm:$0xff] %v1747
      %1756 = vst [vmem:[#allocation2 + $0x8] sm:$0xff] %v1748
      %1757 = vst [vmem:[#allocation2 + $0x10] sm:$0xff] %v1749
      %1758 = vst [vmem:[#allocation2 + $0x18] sm:$0xff] %v1750
      %1759 = vst [vmem:[#allocation2 + $0x20] sm:$0xff] %v1751
      %1760 = vst [vmem:[#allocation2 + $0x28] sm:$0xff] %v1752
      %1761 = vst [vmem:[#allocation2 + $0x30] sm:$0xff] %v1753
      %1762 = vst [vmem:[#allocation2 + $0x38] sm:$0xff] %v1754
      %s1763 = scalar_lea.vmem %s206, 80
      %v1764 = vld [vmem:[%s1763] sm:$0xf]
      %v1765 = vld [vmem:[%s1763 + $0x8] sm:$0xf]
      %v1766 = vld [vmem:[%s1763 + $0x10] sm:$0xf]
      %v1767 = vld [vmem:[%s1763 + $0x18] sm:$0xf]
      %v1768 = vld [vmem:[%s1763 + $0x20] sm:$0xf]
      %v1769 = vld [vmem:[%s1763 + $0x28] sm:$0xf]
      %v1770 = vld [vmem:[%s1763 + $0x30] sm:$0xf]
      %v1771 = vld [vmem:[%s1763 + $0x38] sm:$0xf]
      %v1772 = vld [vmem:[#allocation2] sm:$0xff]
      %v1773 = vld [vmem:[#allocation2 + $0x8] sm:$0xff]
      %v1774 = vld [vmem:[#allocation2 + $0x10] sm:$0xff]
      %v1775 = vld [vmem:[#allocation2 + $0x18] sm:$0xff]
      %v1776 = vld [vmem:[#allocation2 + $0x20] sm:$0xff]
      %v1777 = vld [vmem:[#allocation2 + $0x28] sm:$0xff]
      %v1778 = vld [vmem:[#allocation2 + $0x30] sm:$0xff]
      %v1779 = vld [vmem:[#allocation2 + $0x38] sm:$0xff]
      %s1780 = scalar_lea.vmem %s210, 448
      %v1781 = vld [vmem:[%s1780] sm:$0xf]
      %v1782 = vld [vmem:[%s1780 + $0x4] sm:$0xf]
      %v1783 = vld [vmem:[%s1780 + $0x8] sm:$0xf]
      %v1784 = vld [vmem:[%s1780 + $0xc] sm:$0xf]
      %v1785 = vld [vmem:[%s1780 + $0x10] sm:$0xf]
      %v1786 = vld [vmem:[%s1780 + $0x14] sm:$0xf]
      %v1787 = vld [vmem:[%s1780 + $0x18] sm:$0xf]
      %v1788 = vld [vmem:[%s1780 + $0x1c] sm:$0xf]
      %v1789 = vld [vmem:[%s1780 + $0x20] sm:$0xf]
      %v1790 = vld [vmem:[%s1780 + $0x24] sm:$0xf]
      %v1791 = vld [vmem:[%s1780 + $0x28] sm:$0xf]
      %v1792 = vld [vmem:[%s1780 + $0x2c] sm:$0xf]
      %v1793 = vld [vmem:[%s1780 + $0x30] sm:$0xf]
      %v1794 = vld [vmem:[%s1780 + $0x34] sm:$0xf]
      %v1795 = vld [vmem:[%s1780 + $0x38] sm:$0xf]
      %v1796 = vld [vmem:[%s1780 + $0x3c] sm:$0xf]
      %v1805 = vunpack.c.l.b16 %v1764
      %v1806 = vunpack.c.l.b16 %v1765
      %v1807 = vunpack.c.l.b16 %v1766
      %v1808 = vunpack.c.l.b16 %v1767
      %v1809 = vunpack.c.l.b16 %v1768
      %v1810 = vunpack.c.l.b16 %v1769
      %v1811 = vunpack.c.l.b16 %v1770
      %v1812 = vunpack.c.l.b16 %v1771
      %v1813 = vpack.c.b16 %v1806, %v1805
      %v1814 = vpack.c.b16 %v1808, %v1807
      %v1815 = vpack.c.b16 %v1810, %v1809
      %v1816 = vpack.c.b16 %v1812, %v1811
      %v1837 = vunpack.c.l.b16 %v1781
      %v1838 = vunpack.c.l.b16 %v1782
      %v1839 = vunpack.c.l.b16 %v1783
      %v1840 = vunpack.c.l.b16 %v1784
      %v1841 = vunpack.c.l.b16 %v1785
      %v1842 = vunpack.c.l.b16 %v1786
      %v1843 = vunpack.c.l.b16 %v1787
      %v1844 = vunpack.c.l.b16 %v1788
      %v1845 = vunpack.c.l.b16 %v1789
      %v1846 = vunpack.c.l.b16 %v1790
      %v1847 = vunpack.c.l.b16 %v1791
      %v1848 = vunpack.c.l.b16 %v1792
      %v1849 = vunpack.c.l.b16 %v1793
      %v1850 = vunpack.c.l.b16 %v1794
      %v1851 = vunpack.c.l.b16 %v1795
      %v1852 = vunpack.c.l.b16 %v1796
      %v1853 = vpack.c.b16 %v1838, %v1837
      %v1854 = vpack.c.b16 %v1840, %v1839
      %v1855 = vpack.c.b16 %v1842, %v1841
      %v1856 = vpack.c.b16 %v1844, %v1843
      %v1857 = vpack.c.b16 %v1846, %v1845
      %v1858 = vpack.c.b16 %v1848, %v1847
      %v1859 = vpack.c.b16 %v1850, %v1849
      %v1860 = vpack.c.b16 %v1852, %v1851
      %1869 = vmatprep.subr.bf16.mxu0 0
      %1870 = vmatpush1.bf16.msra.mxu0 %v1853
      %1871 = vmatprep.subr.bf16.mxu0 0
      %1872 = vmatpush1.bf16.msra.mxu0 %v1854
      %1873 = vmatprep.subr.bf16.mxu0 0
      %1874 = vmatpush1.bf16.msra.mxu0 %v1855
      %1875 = vmatprep.subr.bf16.mxu0 0
      %1876 = vmatpush1.bf16.msra.mxu0 %v1856
      %1877 = vmatprep.subr.bf16.mxu0 0
      %1878 = vmatpush1.bf16.msra.mxu0 %v1857
      %1879 = vmatprep.subr.bf16.mxu0 0
      %1880 = vmatpush1.bf16.msra.mxu0 %v1858
      %1881 = vmatprep.subr.bf16.mxu0 0
      %1882 = vmatpush1.bf16.msra.mxu0 %v1859
      %1883 = vmatprep.subr.bf16.mxu0 0
      %1884 = vmatpush1.bf16.msra.mxu0 %v1860
      %1885 = vmatprep.subr.bf16.mxu0 0
      %1886 = vmatpush1.bf16.msra.mxu0 0
      %1887 = vmatprep.subr.bf16.mxu0 0
      %1888 = vmatpush1.bf16.msra.mxu0 0
      %1889 = vmatprep.subr.bf16.mxu0 0
      %1890 = vmatpush1.bf16.msra.mxu0 0
      %1891 = vmatprep.subr.bf16.mxu0 0
      %1892 = vmatpush1.bf16.msra.mxu0 0
      %1893 = vmatprep.subr.bf16.mxu0 0
      %1894 = vmatpush1.bf16.msra.mxu0 0
      %1895 = vmatprep.subr.bf16.mxu0 0
      %1896 = vmatpush1.bf16.msra.mxu0 0
      %1897 = vmatprep.subr.bf16.mxu0 0
      %1898 = vmatpush1.bf16.msra.mxu0 0
      %1899 = vmatprep.subr.bf16.mxu0 0
      %1900 = vmatpush1.bf16.msra.mxu0 0
      %1901 = vmatprep.mubr.bf16.mxu0 0
      %1902 = vmatmul.mubr.bf16.gmra.mrb[0].mxu0 %v1813
      %v1903 = vpop.f32.mrb[0].mxu0
      %v1904 = vadd.f32 0.0, %v1903
      %v1905 = vpop.f32.mrb[0].mxu0
      %v1906 = vpop.f32.mrb[0].mxu0
      %v1907 = vadd.f32 0.0, %v1906
      %v1908 = vpop.f32.mrb[0].mxu0
      %1909 = vmatprep.mubr.bf16.mxu0 0
      %1910 = vmatmul.mubr.bf16.gmra.mrb[0].mxu0 %v1814
      %v1911 = vpop.f32.mrb[0].mxu0
      %v1912 = vadd.f32 0.0, %v1911
      %v1913 = vpop.f32.mrb[0].mxu0
      %v1914 = vpop.f32.mrb[0].mxu0
      %v1915 = vadd.f32 0.0, %v1914
      %v1916 = vpop.f32.mrb[0].mxu0
      %1917 = vmatprep.mubr.bf16.mxu0 0
      %1918 = vmatmul.mubr.bf16.gmra.mrb[0].mxu0 %v1815
      %v1919 = vpop.f32.mrb[0].mxu0
      %v1920 = vadd.f32 0.0, %v1919
      %v1921 = vpop.f32.mrb[0].mxu0
      %v1922 = vpop.f32.mrb[0].mxu0
      %v1923 = vadd.f32 0.0, %v1922
      %v1924 = vpop.f32.mrb[0].mxu0
      %1925 = vmatprep.mubr.bf16.mxu0 0
      %1926 = vmatmul.mubr.bf16.gmra.mrb[0].mxu0 %v1816
      %v1927 = vpop.f32.mrb[0].mxu0
      %v1928 = vadd.f32 0.0, %v1927
      %v1929 = vpop.f32.mrb[0].mxu0
      %v1930 = vpop.f32.mrb[0].mxu0
      %v1931 = vadd.f32 0.0, %v1930
      %v1932 = vpop.f32.mrb[0].mxu0
      %1933 = vdwg.mxu0
      %v1934 = vadd.f32 %v1772, %v1904
      %v1935 = vadd.f32 %v1773, %v1907
      %v1936 = vadd.f32 %v1774, %v1912
      %v1937 = vadd.f32 %v1775, %v1915
      %v1938 = vadd.f32 %v1776, %v1920
      %v1939 = vadd.f32 %v1777, %v1923
      %v1940 = vadd.f32 %v1778, %v1928
      %v1941 = vadd.f32 %v1779, %v1931
      %1942 = vst [vmem:[#allocation2] sm:$0xff] %v1934
      %1943 = vst [vmem:[#allocation2 + $0x8] sm:$0xff] %v1935
      %1944 = vst [vmem:[#allocation2 + $0x10] sm:$0xff] %v1936
      %1945 = vst [vmem:[#allocation2 + $0x18] sm:$0xff] %v1937
      %1946 = vst [vmem:[#allocation2 + $0x20] sm:$0xff] %v1938
      %1947 = vst [vmem:[#allocation2 + $0x28] sm:$0xff] %v1939
      %1948 = vst [vmem:[#allocation2 + $0x30] sm:$0xff] %v1940
      %1949 = vst [vmem:[#allocation2 + $0x38] sm:$0xff] %v1941
      %v1950 = vld [vmem:[%s1576] sm:$0xf]
      %v1951 = vld [vmem:[%s1576 + $0x4] sm:$0x1]
      %v1952 = vld [vmem:[%s1576 + $0x8] sm:$0xf]
      %v1953 = vld [vmem:[%s1576 + $0xc] sm:$0x1]
      %v1954 = vld [vmem:[%s1576 + $0x10] sm:$0xf]
      %v1955 = vld [vmem:[%s1576 + $0x14] sm:$0x1]
      %v1956 = vld [vmem:[%s1576 + $0x18] sm:$0xf]
      %v1957 = vld [vmem:[%s1576 + $0x1c] sm:$0x1]
      %v1958 = vld [vmem:[%s1576 + $0x20] sm:$0xf]
      %v1959 = vld [vmem:[%s1576 + $0x24] sm:$0x1]
      %v1960 = vld [vmem:[%s1576 + $0x28] sm:$0xf]
      %v1961 = vld [vmem:[%s1576 + $0x2c] sm:$0x1]
      %v1962 = vld [vmem:[%s1576 + $0x30] sm:$0xf]
      %v1963 = vld [vmem:[%s1576 + $0x34] sm:$0x1]
      %v1964 = vld [vmem:[%s1576 + $0x38] sm:$0xf]
      %v1965 = vld [vmem:[%s1576 + $0x3c] sm:$0x1]
      %v1966 = vld [vmem:[#allocation2] sm:$0xff]
      %v1967 = vld [vmem:[#allocation2 + $0x8] sm:$0xff]
      %v1968 = vld [vmem:[#allocation2 + $0x10] sm:$0xff]
      %v1969 = vld [vmem:[#allocation2 + $0x18] sm:$0xff]
      %v1970 = vld [vmem:[#allocation2 + $0x20] sm:$0xff]
      %v1971 = vld [vmem:[#allocation2 + $0x28] sm:$0xff]
      %v1972 = vld [vmem:[#allocation2 + $0x30] sm:$0xff]
      %v1973 = vld [vmem:[#allocation2 + $0x38] sm:$0xff]
      %v1975 = vshrl.u32 %v1950, 16
      %v1977 = vrot.slane %v1975, 4
      %v1978 = vshll.u32 %v1950, 16
      %v1980 = vrot.slane %v1978, 5
      %v1981 = vor.u32 %v1977, %v1980
      %v1982 = vrot.slane %v1981, 4
      %v1984 = vshll.u32 %v1951, 16
      %v1986 = vrot.slane %v1984, 5
      %v1987 = vsel %vm629, %v1982, %v1986
      %v1989 = vshrl.u32 %v1952, 16
      %v1991 = vrot.slane %v1989, 4
      %v1992 = vshll.u32 %v1952, 16
      %v1994 = vrot.slane %v1992, 5
      %v1995 = vor.u32 %v1991, %v1994
      %v1996 = vrot.slane %v1995, 4
      %v1998 = vshll.u32 %v1953, 16
      %v2000 = vrot.slane %v1998, 5
      %v2001 = vsel %vm629, %v1996, %v2000
      %v2003 = vshrl.u32 %v1954, 16
      %v2005 = vrot.slane %v2003, 4
      %v2006 = vshll.u32 %v1954, 16
      %v2008 = vrot.slane %v2006, 5
      %v2009 = vor.u32 %v2005, %v2008
      %v2010 = vrot.slane %v2009, 4
      %v2012 = vshll.u32 %v1955, 16
      %v2014 = vrot.slane %v2012, 5
      %v2015 = vsel %vm629, %v2010, %v2014
      %v2017 = vshrl.u32 %v1956, 16
      %v2019 = vrot.slane %v2017, 4
      %v2020 = vshll.u32 %v1956, 16
      %v2022 = vrot.slane %v2020, 5
      %v2023 = vor.u32 %v2019, %v2022
      %v2024 = vrot.slane %v2023, 4
      %v2026 = vshll.u32 %v1957, 16
      %v2028 = vrot.slane %v2026, 5
      %v2029 = vsel %vm629, %v2024, %v2028
      %v2031 = vshrl.u32 %v1958, 16
      %v2033 = vrot.slane %v2031, 4
      %v2034 = vshll.u32 %v1958, 16
      %v2036 = vrot.slane %v2034, 5
      %v2037 = vor.u32 %v2033, %v2036
      %v2038 = vrot.slane %v2037, 4
      %v2040 = vshll.u32 %v1959, 16
      %v2042 = vrot.slane %v2040, 5
      %v2043 = vsel %vm629, %v2038, %v2042
      %v2045 = vshrl.u32 %v1960, 16
      %v2047 = vrot.slane %v2045, 4
      %v2048 = vshll.u32 %v1960, 16
      %v2050 = vrot.slane %v2048, 5
      %v2051 = vor.u32 %v2047, %v2050
      %v2052 = vrot.slane %v2051, 4
      %v2054 = vshll.u32 %v1961, 16
      %v2056 = vrot.slane %v2054, 5
      %v2057 = vsel %vm629, %v2052, %v2056
      %v2059 = vshrl.u32 %v1962, 16
      %v2061 = vrot.slane %v2059, 4
      %v2062 = vshll.u32 %v1962, 16
      %v2064 = vrot.slane %v2062, 5
      %v2065 = vor.u32 %v2061, %v2064
      %v2066 = vrot.slane %v2065, 4
      %v2068 = vshll.u32 %v1963, 16
      %v2070 = vrot.slane %v2068, 5
      %v2071 = vsel %vm629, %v2066, %v2070
      %v2073 = vshrl.u32 %v1964, 16
      %v2075 = vrot.slane %v2073, 4
      %v2076 = vshll.u32 %v1964, 16
      %v2078 = vrot.slane %v2076, 5
      %v2079 = vor.u32 %v2075, %v2078
      %v2080 = vrot.slane %v2079, 4
      %v2082 = vshll.u32 %v1965, 16
      %v2084 = vrot.slane %v2082, 5
      %v2085 = vsel %vm629, %v2080, %v2084
      %s2086 = scalar_lea.vmem %s210, 512
      %v2087 = vld [vmem:[%s2086] sm:$0xf]
      %v2088 = vld [vmem:[%s2086 + $0x4] sm:$0xf]
      %v2089 = vld [vmem:[%s2086 + $0x8] sm:$0xf]
      %v2090 = vld [vmem:[%s2086 + $0xc] sm:$0xf]
      %v2091 = vld [vmem:[%s2086 + $0x10] sm:$0xf]
      %v2092 = vld [vmem:[%s2086 + $0x14] sm:$0xf]
      %v2093 = vld [vmem:[%s2086 + $0x18] sm:$0xf]
      %v2094 = vld [vmem:[%s2086 + $0x1c] sm:$0xf]
      %v2095 = vld [vmem:[%s2086 + $0x20] sm:$0xf]
      %v2096 = vld [vmem:[%s2086 + $0x24] sm:$0xf]
      %v2097 = vld [vmem:[%s2086 + $0x28] sm:$0xf]
      %v2098 = vld [vmem:[%s2086 + $0x2c] sm:$0xf]
      %v2099 = vld [vmem:[%s2086 + $0x30] sm:$0xf]
      %v2100 = vld [vmem:[%s2086 + $0x34] sm:$0xf]
      %v2101 = vld [vmem:[%s2086 + $0x38] sm:$0xf]
      %v2102 = vld [vmem:[%s2086 + $0x3c] sm:$0xf]
      %v2103 = vunpack.c.l.b16 %v1987
      %v2104 = vunpack.c.l.b16 %v2001
      %v2105 = vunpack.c.l.b16 %v2015
      %v2106 = vunpack.c.l.b16 %v2029
      %v2107 = vunpack.c.l.b16 %v2043
      %v2108 = vunpack.c.l.b16 %v2057
      %v2109 = vunpack.c.l.b16 %v2071
      %v2110 = vunpack.c.l.b16 %v2085
      %v2111 = vpack.c.b16 %v2104, %v2103
      %v2112 = vpack.c.b16 %v2106, %v2105
      %v2113 = vpack.c.b16 %v2108, %v2107
      %v2114 = vpack.c.b16 %v2110, %v2109
      %v2135 = vunpack.c.l.b16 %v2087
      %v2136 = vunpack.c.l.b16 %v2088
      %v2137 = vunpack.c.l.b16 %v2089
      %v2138 = vunpack.c.l.b16 %v2090
      %v2139 = vunpack.c.l.b16 %v2091
      %v2140 = vunpack.c.l.b16 %v2092
      %v2141 = vunpack.c.l.b16 %v2093
      %v2142 = vunpack.c.l.b16 %v2094
      %v2143 = vunpack.c.l.b16 %v2095
      %v2144 = vunpack.c.l.b16 %v2096
      %v2145 = vunpack.c.l.b16 %v2097
      %v2146 = vunpack.c.l.b16 %v2098
      %v2147 = vunpack.c.l.b16 %v2099
      %v2148 = vunpack.c.l.b16 %v2100
      %v2149 = vunpack.c.l.b16 %v2101
      %v2150 = vunpack.c.l.b16 %v2102
      %v2151 = vpack.c.b16 %v2136, %v2135
      %v2152 = vpack.c.b16 %v2138, %v2137
      %v2153 = vpack.c.b16 %v2140, %v2139
      %v2154 = vpack.c.b16 %v2142, %v2141
      %v2155 = vpack.c.b16 %v2144, %v2143
      %v2156 = vpack.c.b16 %v2146, %v2145
      %v2157 = vpack.c.b16 %v2148, %v2147
      %v2158 = vpack.c.b16 %v2150, %v2149
      %2167 = vmatprep.subr.bf16.mxu0 0
      %2168 = vmatpush1.bf16.msra.mxu0 %v2151
      %2169 = vmatprep.subr.bf16.mxu0 0
      %2170 = vmatpush1.bf16.msra.mxu0 %v2152
      %2171 = vmatprep.subr.bf16.mxu0 0
      %2172 = vmatpush1.bf16.msra.mxu0 %v2153
      %2173 = vmatprep.subr.bf16.mxu0 0
      %2174 = vmatpush1.bf16.msra.mxu0 %v2154
      %2175 = vmatprep.subr.bf16.mxu0 0
      %2176 = vmatpush1.bf16.msra.mxu0 %v2155
      %2177 = vmatprep.subr.bf16.mxu0 0
      %2178 = vmatpush1.bf16.msra.mxu0 %v2156
      %2179 = vmatprep.subr.bf16.mxu0 0
      %2180 = vmatpush1.bf16.msra.mxu0 %v2157
      %2181 = vmatprep.subr.bf16.mxu0 0
      %2182 = vmatpush1.bf16.msra.mxu0 %v2158
      %2183 = vmatprep.subr.bf16.mxu0 0
      %2184 = vmatpush1.bf16.msra.mxu0 0
      %2185 = vmatprep.subr.bf16.mxu0 0
      %2186 = vmatpush1.bf16.msra.mxu0 0
      %2187 = vmatprep.subr.bf16.mxu0 0
      %2188 = vmatpush1.bf16.msra.mxu0 0
      %2189 = vmatprep.subr.bf16.mxu0 0
      %2190 = vmatpush1.bf16.msra.mxu0 0
      %2191 = vmatprep.subr.bf16.mxu0 0
      %2192 = vmatpush1.bf16.msra.mxu0 0
      %2193 = vmatprep.subr.bf16.mxu0 0
      %2194 = vmatpush1.bf16.msra.mxu0 0
      %2195 = vmatprep.subr.bf16.mxu0 0
      %2196 = vmatpush1.bf16.msra.mxu0 0
      %2197 = vmatprep.subr.bf16.mxu0 0
      %2198 = vmatpush1.bf16.msra.mxu0 0
      %2199 = vmatprep.mubr.bf16.mxu0 0
      %2200 = vmatmul.mubr.bf16.gmra.mrb[0].mxu0 %v2111
      %v2201 = vpop.f32.mrb[0].mxu0
      %v2202 = vadd.f32 0.0, %v2201
      %v2203 = vpop.f32.mrb[0].mxu0
      %v2204 = vpop.f32.mrb[0].mxu0
      %v2205 = vadd.f32 0.0, %v2204
      %v2206 = vpop.f32.mrb[0].mxu0
      %2207 = vmatprep.mubr.bf16.mxu0 0
      %2208 = vmatmul.mubr.bf16.gmra.mrb[0].mxu0 %v2112
      %v2209 = vpop.f32.mrb[0].mxu0
      %v2210 = vadd.f32 0.0, %v2209
      %v2211 = vpop.f32.mrb[0].mxu0
      %v2212 = vpop.f32.mrb[0].mxu0
      %v2213 = vadd.f32 0.0, %v2212
      %v2214 = vpop.f32.mrb[0].mxu0
      %2215 = vmatprep.mubr.bf16.mxu0 0
      %2216 = vmatmul.mubr.bf16.gmra.mrb[0].mxu0 %v2113
      %v2217 = vpop.f32.mrb[0].mxu0
      %v2218 = vadd.f32 0.0, %v2217
      %v2219 = vpop.f32.mrb[0].mxu0
      %v2220 = vpop.f32.mrb[0].mxu0
      %v2221 = vadd.f32 0.0, %v2220
      %v2222 = vpop.f32.mrb[0].mxu0
      %2223 = vmatprep.mubr.bf16.mxu0 0
      %2224 = vmatmul.mubr.bf16.gmra.mrb[0].mxu0 %v2114
      %v2225 = vpop.f32.mrb[0].mxu0
      %v2226 = vadd.f32 0.0, %v2225
      %v2227 = vpop.f32.mrb[0].mxu0
      %v2228 = vpop.f32.mrb[0].mxu0
      %v2229 = vadd.f32 0.0, %v2228
      %v2230 = vpop.f32.mrb[0].mxu0
      %2231 = vdwg.mxu0
      %v2232 = vadd.f32 %v1966, %v2202
      %v2233 = vadd.f32 %v1967, %v2205
      %v2234 = vadd.f32 %v1968, %v2210
      %v2235 = vadd.f32 %v1969, %v2213
      %v2236 = vadd.f32 %v1970, %v2218
      %v2237 = vadd.f32 %v1971, %v2221
      %v2238 = vadd.f32 %v1972, %v2226
      %v2239 = vadd.f32 %v1973, %v2229
      %2240 = vst [vmem:[#allocation2] sm:$0xff] %v2232
      %2241 = vst [vmem:[#allocation2 + $0x8] sm:$0xff] %v2233
      %2242 = vst [vmem:[#allocation2 + $0x10] sm:$0xff] %v2234
      %2243 = vst [vmem:[#allocation2 + $0x18] sm:$0xff] %v2235
      %2244 = vst [vmem:[#allocation2 + $0x20] sm:$0xff] %v2236
      %2245 = vst [vmem:[#allocation2 + $0x28] sm:$0xff] %v2237
      %2246 = vst [vmem:[#allocation2 + $0x30] sm:$0xff] %v2238
      %2247 = vst [vmem:[#allocation2 + $0x38] sm:$0xff] %v2239
      %v2248 = vld [vmem:[#allocation2] sm:$0xff]
      %v2249 = vld [vmem:[#allocation2 + $0x8] sm:$0xff]
      %v2250 = vld [vmem:[#allocation2 + $0x10] sm:$0xff]
      %v2251 = vld [vmem:[#allocation2 + $0x18] sm:$0xff]
      %v2252 = vld [vmem:[#allocation2 + $0x20] sm:$0xff]
      %v2253 = vld [vmem:[#allocation2 + $0x28] sm:$0xff]
      %v2254 = vld [vmem:[#allocation2 + $0x30] sm:$0xff]
      %v2255 = vld [vmem:[#allocation2 + $0x38] sm:$0xff]
      %v2256 = vld [vmem:[%s213] sm:$0x1]
      %v2258 = vlaneseq
      %v2259 = vshrl.u32 %v2258, 7
      %v2260 = vsub.s32 0, %v2259
      %v2261 = vrot.slane %v2256, %v2260
      %v2263 = vadd.f32 %v2248, %v2261
      %v2264 = vadd.f32 %v2249, %v2261
      %v2265 = vadd.f32 %v2250, %v2261
      %v2266 = vadd.f32 %v2251, %v2261
      %v2267 = vadd.f32 %v2252, %v2261
      %v2268 = vadd.f32 %v2253, %v2261
      %v2269 = vadd.f32 %v2254, %v2261
      %v2270 = vadd.f32 %v2255, %v2261
      %v2271 = vmax.f32 %v2263, 0.0
      %v2272 = vmax.f32 %v2264, 0.0
      %v2273 = vmax.f32 %v2265, 0.0
      %v2274 = vmax.f32 %v2266, 0.0
      %v2275 = vmax.f32 %v2267, 0.0
      %v2276 = vmax.f32 %v2268, 0.0
      %v2277 = vmax.f32 %v2269, 0.0
      %v2278 = vmax.f32 %v2270, 0.0
      %v2279 = vpack.c.bf16 %v2272, %v2271
      %v2280 = vpack.c.bf16 %v2274, %v2273
      %v2281 = vpack.c.bf16 %v2276, %v2275
      %v2282 = vpack.c.bf16 %v2278, %v2277
      %v2287 = vunpack.c.l.b16 %v2279
      %v2288 = vunpack.c.h.b16 %v2279
      %v2289 = vunpack.c.l.b16 %v2280
      %v2290 = vunpack.c.h.b16 %v2280
      %v2291 = vunpack.c.l.b16 %v2281
      %v2292 = vunpack.c.h.b16 %v2281
      %v2293 = vunpack.c.l.b16 %v2282
      %v2294 = vunpack.c.h.b16 %v2282
      %v2295 = vpack.c.b16 %v2287, %v2287
      %v2296 = vpack.c.b16 %v2288, %v2288
      %v2297 = vpack.c.b16 %v2289, %v2289
      %v2298 = vpack.c.b16 %v2290, %v2290
      %v2299 = vpack.c.b16 %v2291, %v2291
      %v2300 = vpack.c.b16 %v2292, %v2292
      %v2301 = vpack.c.b16 %v2293, %v2293
      %v2302 = vpack.c.b16 %v2294, %v2294
      %2311 = vst [vmem:[%s221] sm:$0xf] %v2295
      %2312 = vst [vmem:[%s221 + $0x4] sm:$0xf] %v2296
      %2313 = vst [vmem:[%s221 + $0x8] sm:$0xf] %v2297
      %2314 = vst [vmem:[%s221 + $0xc] sm:$0xf] %v2298
      %2315 = vst [vmem:[%s221 + $0x10] sm:$0xf] %v2299
      %2316 = vst [vmem:[%s221 + $0x14] sm:$0xf] %v2300
      %2317 = vst [vmem:[%s221 + $0x18] sm:$0xf] %v2301
      %2318 = vst [vmem:[%s221 + $0x1c] sm:$0xf] %v2302
      %p2319 = scmp.lt.s32.totalorder %s19, 1
      %s2320 = scalar_select %p2319, %s19, 1
      %p2321 = scmp.lt.s32.totalorder %s18, 0
      %s2322 = scalar_select %p2321, %s18, 0
      %s2323 = smul.addr %s2320, 8
      %s2324 = sadd.s32 %s2322, %s2323
      %s2325 = smul.addr %s2324, 4
      %s2326 = scalar_lea.vmem %s3, %s2325
      // Predicated region
      $region33: #{residual_block.2} parent=31 // pred_check
        %p2327 = pneg %p124
      $region34: #{residual_block.2} parent=31 // pred_check_branch
        %2329 = sbr.rel (%p2327) target = $region36
      $region35: #{residual_block.2} parent=31 // pred_region
        _
      $region36: #{residual_block.2} parent=31 // pred_fallthru
        _
    $region32: #{residual_block.2} parent=5 // pred_fallthru
      _
    %p2330 = scmp.le.s32.totalorder 2, %s9
    // Predicated region
    $region37: #{residual_block.2} parent=5 // pred_check
      %p2331 = pneg %p2330
    $region38: #{residual_block.2} parent=5 // pred_check_branch
      %2333 = sbr.rel (%p2331) target = $region40
    $region39: #{residual_block.2} parent=5 // pred_region
      %s2334 = ssub.s32 %s9, 2
      // Predicated region
      $region41: #{residual_block.2} parent=39 // pred_check
        %p2335 = pneg %p130
      $region42: #{residual_block.2} parent=39 // pred_check_branch
        %2337 = sbr.rel (%p2335) target = $region44
      $region43: #{residual_block.2} parent=39 // pred_region
        %p2338 = scmp.lt.s32.totalorder %s21, 1
        %s2339 = scalar_select %p2338, %s21, 1
        %p2340 = scmp.lt.s32.totalorder %s20, 0
        %s2341 = scalar_select %p2340, %s20, 0
        %s2342 = smul.addr %s2339, 8
        %s2343 = sadd.s32 %s2341, %s2342
        %s2344 = smul.addr %s2343, 4
        %s2345 = scalar_lea.vmem %s3, %s2344
      $region44: #{residual_block.2} parent=39 // pred_fallthru
        _
    $region40: #{residual_block.2} parent=5 // pred_fallthru
      _
  $region6: #{residual_block.2} parent=0 // loop_footer
    %s13 = sadd.s32 1, %s9
  $region7: #{residual_block.2} parent=0 // loop_footer_branch
    %8 = sbr.rel target = $region3
  $region8: #{residual_block.2} parent=0 // loop_exit
    _

</llo_original>
